<compile_context>
chip_gen: v6e
topology: v6e:2x2x1
jax: 0.10.0
libtpu: 0.0.40
codegen_flags: <defaults>
</compile_context>

<pallas_src>
import jax
import jax.numpy as jnp
from jax import lax
from jax.experimental import pallas as pl
from jax.experimental.pallas import tpu as pltpu

EPS = 1e-5


def _fold_groups(v, groups, gsz):
    """Sum `groups` consecutive lane-groups of width gsz: (k, groups*gsz) -> (k, gsz).
    Log2 tree of static lane slices + adds (instead of a groups-step unrolled loop)."""
    rems = []
    while groups > 1:
        half = groups // 2
        if groups % 2:
            rems.append(v[:, 2 * half * gsz:(2 * half + 1) * gsz])
        v = v[:, :half * gsz] + v[:, half * gsz:2 * half * gsz]
        groups = half
    for r in rems:
        v = v + r
    return v


def _spread_groups(v, groups, gsz):
    """Tile (k, gsz) -> (k, groups*gsz) by lane-concat doubling (log2 concats)."""
    have = 1
    while have * 2 <= groups:
        v = jnp.concatenate([v, v], axis=-1)
        have *= 2
    if have < groups:
        v = jnp.concatenate([v, v[:, :(groups - have) * gsz]], axis=-1)
    return v


def resblock_kernel(x_ref, g1_ref, b1_ref, g2_ref, b2_ref, w1b_hbm, w2b_hbm,
                    o_ref, w1v_ref, w2v_ref, dma_sem):
    N, H, WC = x_ref.shape
    C = g1_ref.shape[1]
    C4 = g2_ref.shape[1]
    W = WC // C
    Ho, Wo = H - 2, W - 2
    R = N * Ho                                      # rows of the lane-dense output slab

    # Kick off the big banded-weight DMAs immediately; BN1 compute hides them.
    w1_cp = pltpu.make_async_copy(w1b_hbm, w1v_ref, dma_sem.at[0])
    w2_cp = pltpu.make_async_copy(w2b_hbm, w2v_ref, dma_sem.at[1])
    w1_cp.start()
    w2_cp.start()

    # ---------------- BN1: two-pass batch stats (mean, then centered variance) --------
    cnt1 = float(N * H * W)
    s_w = jnp.zeros((1, WC), jnp.float32)
    for n in range(N):                              # per-image chunks bound live vregs
        s_w = s_w + jnp.sum(x_ref[n], axis=0, keepdims=True)
    mu1 = _fold_groups(s_w, W, C) / cnt1            # (1, C) per-channel mean
    mu1w = _spread_groups(mu1, W, C)                # (1, W*C)

    q_w = jnp.zeros((1, WC), jnp.float32)
    for n in range(N):
        d = x_ref[n] - mu1w
        q_w = q_w + jnp.sum(d * d, axis=0, keepdims=True)
    var1 = _fold_groups(q_w, W, C) / cnt1           # biased variance, per channel
    a1 = g1_ref[...] * lax.rsqrt(var1 + EPS)        # (1, C)
    c1 = b1_ref[...] - mu1 * a1
    a1w = _spread_groups(a1, W, C)                  # (1, W*C)
    c1w = _spread_groups(c1, W, C)

    # ---------------- Conv3x3 valid (C -> C4): 3 banded MXU matmuls -------------------
    # BN1 affine + ReLU applied on the fly to each dy row window (no staged activation).
    w1_cp.wait()                                    # banded 3x3 weights now in VMEM
    acc = jnp.zeros((R, Wo * C4), dtype=jnp.float32)
    for dy in range(3):
        win = x_ref[:, dy:dy + Ho, :].reshape(R, WC)            # (N*Ho, W*C)
        lhs = jnp.maximum(win * a1w + c1w, 0.0)
        acc = acc + jnp.dot(lhs, w1v_ref[dy],
                            preferred_element_type=jnp.float32)  # (N*Ho, Wo*C4)

    # ---------------- BN2: two-pass batch stats + ReLU --------------------------------
    cnt2 = float(N * Ho * Wo)
    s2 = jnp.sum(acc, axis=0, keepdims=True)        # (1, Wo*C4)
    mu2 = _fold_groups(s2, Wo, C4) / cnt2
    mu2w = _spread_groups(mu2, Wo, C4)
    d2 = acc - mu2w
    q2 = jnp.sum(d2 * d2, axis=0, keepdims=True)
    var2 = _fold_groups(q2, Wo, C4) / cnt2
    a2 = g2_ref[...] * lax.rsqrt(var2 + EPS)        # (1, C4)
    c2 = b2_ref[...] - mu2 * a2
    a2w = _spread_groups(a2, Wo, C4)
    c2w = _spread_groups(c2, Wo, C4)
    h2 = jnp.maximum(acc * a2w + c2w, 0.0)          # (N*Ho, Wo*C4)

    # ---------------- Conv1x1 (block-diagonal matmul) + cropped residual --------------
    w2_cp.wait()
    out = jnp.dot(h2, w2v_ref[...], preferred_element_type=jnp.float32)   # (N*Ho, Wo*C)
    resid = x_ref[:, 1:1 + Ho, :].reshape(R, WC)[:, C:C + Wo * C]         # x[:,:,1:-1,1:-1]
    o_ref[...] = (out + resid).astype(o_ref.dtype)                        # lane-dense store


def _make_banded_weights(w1_hwio, w2, W, Wo):
    """Fold the 3x3 dx-shift + im2col gather and the 1x1 channel mix into static
    banded / block-diagonal matrices.  Built ONCE per weight set (hoisted out of the
    per-call jit path), not on every forward."""
    C, C4 = w1_hwio.shape[2], w1_hwio.shape[3]
    eye = jnp.eye(Wo, dtype=jnp.float32)
    bands = []
    for dy in range(3):
        b = jnp.zeros((W * C, Wo * C4), jnp.float32)
        for dx in range(3):
            blk = jnp.kron(eye, w1_hwio[dy, dx])                          # (Wo*C, Wo*C4)
            blk = jnp.pad(blk, ((dx * C, (W - Wo - dx) * C), (0, 0)))     # dx row shift
            b = b + blk
        bands.append(b)
    w1b = jnp.stack(bands, axis=0)                                        # (3, W*C, Wo*C4)
    w2b = jnp.kron(eye, w2)                                               # (Wo*C4, Wo*C)
    return w1b, w2b


def prepare_resblock_params(params, width):
    """One-time (per weight set / spatial width) preparation.  Cache and reuse."""
    g1, b1, w1_hwio, g2, b2, w2 = params
    C, C4 = g1.shape[0], g2.shape[0]
    w1b, w2b = _make_banded_weights(jnp.asarray(w1_hwio, jnp.float32),
                                    jnp.asarray(w2, jnp.float32), width, width - 2)
    return (jnp.asarray(g1, jnp.float32).reshape(1, C),
            jnp.asarray(b1, jnp.float32).reshape(1, C),
            jnp.asarray(g2, jnp.float32).reshape(1, C4),
            jnp.asarray(b2, jnp.float32).reshape(1, C4),
            w1b, w2b)


@jax.jit
def resblock_forward(x_nchw, prepared):
    """NCHW in / NCHW out (matches the PyTorch module contract).
    NOTE: if the surrounding model can stay NHWC / lane-dense end-to-end, the two
    transposes here disappear — kept only to honour the NCHW module interface."""
    g1r, b1r, g2r, b2r, w1b, w2b = prepared
    N, C, H, W = x_nchw.shape
    C4 = C // 4
    Ho, Wo = H - 2, W - 2

    x3 = jnp.transpose(x_nchw, (0, 2, 3, 1)).astype(jnp.float32).reshape(N, H, W * C)

    out2d = pl.pallas_call(
        resblock_kernel,
        out_shape=jax.ShapeDtypeStruct((N * Ho, Wo * C), jnp.float32),    # (32, 512) lane-dense
        in_specs=[pl.BlockSpec(memory_space=pltpu.MemorySpace.VMEM)] * 5
                 + [pl.BlockSpec(memory_space=pl.ANY)] * 2,               # weights stay in HBM
        out_specs=pl.BlockSpec(memory_space=pltpu.MemorySpace.VMEM),
        scratch_shapes=[
            pltpu.VMEM((3, W * C, Wo * C4), jnp.float32),                 # w1b landing buffer
            pltpu.VMEM((Wo * C4, Wo * C), jnp.float32),                   # w2b landing buffer
            pltpu.SemaphoreType.DMA((2,)),
        ],
    )(x3, g1r, b1r, g2r, b2r, w1b, w2b)

    out_nhwc = out2d.reshape(N, Ho, Wo, C)                                # free reshape
    return jnp.transpose(out_nhwc, (0, 3, 1, 2))                          # back to NCHW


def resblock_ref(x_nchw, params):
    """Pure-JAX reference (same math, NCHW) used only to sanity-check the kernel."""
    g1, b1, w1_hwio, g2, b2, w2 = params

    def bn(t, g, b):
        mu = jnp.mean(t, axis=(0, 2, 3), keepdims=True)
        var = jnp.mean((t - mu) ** 2, axis=(0, 2, 3), keepdims=True)
        t = (t - mu) / jnp.sqrt(var + EPS)
        return t * g.reshape(1, -1, 1, 1) + b.reshape(1, -1, 1, 1)

    h = jax.nn.relu(bn(x_nchw, g1, b1))
    h = lax.conv_general_dilated(
        h, w1_hwio, window_strides=(1, 1), padding='VALID',
        dimension_numbers=('NCHW', 'HWIO', 'NCHW'),
        precision=lax.Precision.HIGHEST)
    h = jax.nn.relu(bn(h, g2, b2))
    h = jnp.einsum('nchw,co->nohw', h, w2, precision=lax.Precision.HIGHEST)
    return h + x_nchw[:, :, 1:-1, 1:-1]


if __name__ == "__main__":
    key = jax.random.PRNGKey(0)
    N, C, H, W = 2, 32, 18, 18          # features=32 -> bottleneck 8; output spatial 16x16
    C4 = C // 4
    ks = jax.random.split(key, 7)

    x  = jax.random.normal(ks[0], (N, C, H, W), jnp.float32)
    g1 = 1.0 + 0.1 * jax.random.normal(ks[1], (C,),  jnp.float32)   # BN1 weight
    b1 = 0.1 * jax.random.normal(ks[2], (C,),  jnp.float32)         # BN1 bias
    w1 = 0.1 * jax.random.normal(ks[3], (3, 3, C, C4), jnp.float32) # conv3x3, HWIO
    g2 = 1.0 + 0.1 * jax.random.normal(ks[4], (C4,), jnp.float32)   # BN2 weight
    b2 = 0.1 * jax.random.normal(ks[5], (C4,), jnp.float32)         # BN2 bias
    w2 = 0.1 * jax.random.normal(ks[6], (C4, C), jnp.float32)       # conv1x1 as (Cin, Cout)
    params = (g1, b1, w1, g2, b2, w2)

    # One-time weight preparation (hoisted out of the per-call path; cache & reuse).
    prepared = jax.tree_util.tree_map(jax.block_until_ready,
                                      prepare_resblock_params(params, W))

    out = jax.block_until_ready(resblock_forward(x, prepared))
    ref = jax.block_until_ready(resblock_ref(x, params))

    assert out.shape == (N, C, H - 2, W - 2), out.shape
    err = float(jnp.max(jnp.abs(out - ref)))
    assert err < 1e-3, f"max abs err = {err}"
    print("KERNEL_OK")
</pallas_src>

<mosaic_0001>
module attributes {stable_mosaic.version = 11 : i64} {
  func.func @resblock_kernel(%arg0: memref<2x18x576xf32, #tpu.memory_space<vmem>>, %arg1: memref<1x32xf32, #tpu.memory_space<vmem>>, %arg2: memref<1x32xf32, #tpu.memory_space<vmem>>, %arg3: memref<1x8xf32, #tpu.memory_space<vmem>>, %arg4: memref<1x8xf32, #tpu.memory_space<vmem>>, %arg5: memref<3x576x128xf32, #tpu.memory_space<any>>, %arg6: memref<128x512xf32, #tpu.memory_space<any>>, %arg7: memref<32x512xf32, #tpu.memory_space<vmem>>, %arg8: memref<3x576x128xf32, #tpu.memory_space<vmem>>, %arg9: memref<128x512xf32, #tpu.memory_space<vmem>>, %arg10: memref<2x!tpu.dma_semaphore, #tpu.memory_space<semaphore_mem>>) attributes {dimension_semantics = [], scalar_prefetch = 0 : i64, scratch_operands = 3 : i64, tpu.core_type = #tpu.core_type<tc>} {
    %c0_i32 = arith.constant 0 : i32
    %0 = tpu.memref_slice %arg10[%c0_i32] : memref<2x!tpu.dma_semaphore, #tpu.memory_space<semaphore_mem>> -> memref<1x!tpu.dma_semaphore, #tpu.memory_space<semaphore_mem>>
    %1 = tpu.memref_squeeze %0 : memref<1x!tpu.dma_semaphore, #tpu.memory_space<semaphore_mem>> -> memref<!tpu.dma_semaphore, #tpu.memory_space<semaphore_mem>>
    tpu.enqueue_dma source(%arg5 : memref<3x576x128xf32, #tpu.memory_space<any>>) target(%arg8 : memref<3x576x128xf32, #tpu.memory_space<vmem>>) target_semaphore(%1 : memref<!tpu.dma_semaphore, #tpu.memory_space<semaphore_mem>>)
    %c1_i32 = arith.constant 1 : i32
    %2 = tpu.memref_slice %arg10[%c1_i32] : memref<2x!tpu.dma_semaphore, #tpu.memory_space<semaphore_mem>> -> memref<1x!tpu.dma_semaphore, #tpu.memory_space<semaphore_mem>>
    %3 = tpu.memref_squeeze %2 : memref<1x!tpu.dma_semaphore, #tpu.memory_space<semaphore_mem>> -> memref<!tpu.dma_semaphore, #tpu.memory_space<semaphore_mem>>
    tpu.enqueue_dma source(%arg6 : memref<128x512xf32, #tpu.memory_space<any>>) target(%arg9 : memref<128x512xf32, #tpu.memory_space<vmem>>) target_semaphore(%3 : memref<!tpu.dma_semaphore, #tpu.memory_space<semaphore_mem>>)
    %cst = arith.constant 0.000000e+00 : f32
    %4 = vector.broadcast %cst : f32 to vector<1x576xf32>
    %c0 = arith.constant 0 : index
    %c0_0 = arith.constant 0 : index
    %c0_1 = arith.constant 0 : index
    %5 = vector.load %arg0[%c0, %c0_0, %c0_1] : memref<2x18x576xf32, #tpu.memory_space<vmem>>, vector<1x18x576xf32>
    %6 = vector.shape_cast %5 : vector<1x18x576xf32> to vector<18x576xf32>
    %cst_2 = arith.constant dense<0.000000e+00> : vector<576xf32>
    %7 = vector.multi_reduction <add>, %6, %cst_2 [0] : vector<18x576xf32> to vector<576xf32>
    %8 = vector.shape_cast %7 : vector<576xf32> to vector<1x576xf32>
    %9 = arith.addf %4, %8 : vector<1x576xf32>
    %c1 = arith.constant 1 : index
    %c0_3 = arith.constant 0 : index
    %c0_4 = arith.constant 0 : index
    %10 = vector.load %arg0[%c1, %c0_3, %c0_4] : memref<2x18x576xf32, #tpu.memory_space<vmem>>, vector<1x18x576xf32>
    %11 = vector.shape_cast %10 : vector<1x18x576xf32> to vector<18x576xf32>
    %cst_5 = arith.constant dense<0.000000e+00> : vector<576xf32>
    %12 = vector.multi_reduction <add>, %11, %cst_5 [0] : vector<18x576xf32> to vector<576xf32>
    %13 = vector.shape_cast %12 : vector<576xf32> to vector<1x576xf32>
    %14 = arith.addf %9, %13 : vector<1x576xf32>
    %15 = vector.extract_strided_slice %14 {offsets = [0, 0], sizes = [1, 288], strides = [1, 1]} : vector<1x576xf32> to vector<1x288xf32>
    %16 = vector.extract_strided_slice %14 {offsets = [0, 288], sizes = [1, 288], strides = [1, 1]} : vector<1x576xf32> to vector<1x288xf32>
    %17 = arith.addf %15, %16 : vector<1x288xf32>
    %18 = vector.extract_strided_slice %17 {offsets = [0, 256], sizes = [1, 32], strides = [1, 1]} : vector<1x288xf32> to vector<1x32xf32>
    %19 = vector.extract_strided_slice %17 {offsets = [0, 0], sizes = [1, 128], strides = [1, 1]} : vector<1x288xf32> to vector<1x128xf32>
    %20 = vector.extract_strided_slice %17 {offsets = [0, 128], sizes = [1, 128], strides = [1, 1]} : vector<1x288xf32> to vector<1x128xf32>
    %21 = arith.addf %19, %20 : vector<1x128xf32>
    %22 = vector.extract_strided_slice %21 {offsets = [0, 0], sizes = [1, 64], strides = [1, 1]} : vector<1x128xf32> to vector<1x64xf32>
    %23 = vector.extract_strided_slice %21 {offsets = [0, 64], sizes = [1, 64], strides = [1, 1]} : vector<1x128xf32> to vector<1x64xf32>
    %24 = arith.addf %22, %23 : vector<1x64xf32>
    %25 = vector.extract_strided_slice %24 {offsets = [0, 0], sizes = [1, 32], strides = [1, 1]} : vector<1x64xf32> to vector<1x32xf32>
    %26 = vector.extract_strided_slice %24 {offsets = [0, 32], sizes = [1, 32], strides = [1, 1]} : vector<1x64xf32> to vector<1x32xf32>
    %27 = arith.addf %25, %26 : vector<1x32xf32>
    %28 = arith.addf %27, %18 : vector<1x32xf32>
    %cst_6 = arith.constant 6.480000e+02 : f32
    %29 = vector.broadcast %cst_6 : f32 to vector<1x32xf32>
    %30 = arith.divf %28, %29 : vector<1x32xf32>
    %31 = tpu.concatenate %30, %30 in 1 : vector<1x32xf32>, vector<1x32xf32> -> vector<1x64xf32>
    %32 = tpu.concatenate %31, %31 in 1 : vector<1x64xf32>, vector<1x64xf32> -> vector<1x128xf32>
    %33 = tpu.concatenate %32, %32 in 1 : vector<1x128xf32>, vector<1x128xf32> -> vector<1x256xf32>
    %34 = tpu.concatenate %33, %33 in 1 : vector<1x256xf32>, vector<1x256xf32> -> vector<1x512xf32>
    %35 = vector.extract_strided_slice %34 {offsets = [0, 0], sizes = [1, 64], strides = [1, 1]} : vector<1x512xf32> to vector<1x64xf32>
    %36 = tpu.concatenate %34, %35 in 1 : vector<1x512xf32>, vector<1x64xf32> -> vector<1x576xf32>
    %cst_7 = arith.constant 0.000000e+00 : f32
    %37 = vector.broadcast %cst_7 : f32 to vector<1x576xf32>
    %c0_8 = arith.constant 0 : index
    %c0_9 = arith.constant 0 : index
    %c0_10 = arith.constant 0 : index
    %38 = vector.load %arg0[%c0_8, %c0_9, %c0_10] : memref<2x18x576xf32, #tpu.memory_space<vmem>>, vector<1x18x576xf32>
    %39 = vector.shape_cast %38 : vector<1x18x576xf32> to vector<18x576xf32>
    %40 = vector.broadcast %36 : vector<1x576xf32> to vector<18x576xf32>
    %41 = arith.subf %39, %40 : vector<18x576xf32>
    %42 = arith.mulf %41, %41 : vector<18x576xf32>
    %cst_11 = arith.constant dense<0.000000e+00> : vector<576xf32>
    %43 = vector.multi_reduction <add>, %42, %cst_11 [0] : vector<18x576xf32> to vector<576xf32>
    %44 = vector.shape_cast %43 : vector<576xf32> to vector<1x576xf32>
    %45 = arith.addf %37, %44 : vector<1x576xf32>
    %c1_12 = arith.constant 1 : index
    %c0_13 = arith.constant 0 : index
    %c0_14 = arith.constant 0 : index
    %46 = vector.load %arg0[%c1_12, %c0_13, %c0_14] : memref<2x18x576xf32, #tpu.memory_space<vmem>>, vector<1x18x576xf32>
    %47 = vector.shape_cast %46 : vector<1x18x576xf32> to vector<18x576xf32>
    %48 = vector.broadcast %36 : vector<1x576xf32> to vector<18x576xf32>
    %49 = arith.subf %47, %48 : vector<18x576xf32>
    %50 = arith.mulf %49, %49 : vector<18x576xf32>
    %cst_15 = arith.constant dense<0.000000e+00> : vector<576xf32>
    %51 = vector.multi_reduction <add>, %50, %cst_15 [0] : vector<18x576xf32> to vector<576xf32>
    %52 = vector.shape_cast %51 : vector<576xf32> to vector<1x576xf32>
    %53 = arith.addf %45, %52 : vector<1x576xf32>
    %54 = vector.extract_strided_slice %53 {offsets = [0, 0], sizes = [1, 288], strides = [1, 1]} : vector<1x576xf32> to vector<1x288xf32>
    %55 = vector.extract_strided_slice %53 {offsets = [0, 288], sizes = [1, 288], strides = [1, 1]} : vector<1x576xf32> to vector<1x288xf32>
    %56 = arith.addf %54, %55 : vector<1x288xf32>
    %57 = vector.extract_strided_slice %56 {offsets = [0, 256], sizes = [1, 32], strides = [1, 1]} : vector<1x288xf32> to vector<1x32xf32>
    %58 = vector.extract_strided_slice %56 {offsets = [0, 0], sizes = [1, 128], strides = [1, 1]} : vector<1x288xf32> to vector<1x128xf32>
    %59 = vector.extract_strided_slice %56 {offsets = [0, 128], sizes = [1, 128], strides = [1, 1]} : vector<1x288xf32> to vector<1x128xf32>
    %60 = arith.addf %58, %59 : vector<1x128xf32>
    %61 = vector.extract_strided_slice %60 {offsets = [0, 0], sizes = [1, 64], strides = [1, 1]} : vector<1x128xf32> to vector<1x64xf32>
    %62 = vector.extract_strided_slice %60 {offsets = [0, 64], sizes = [1, 64], strides = [1, 1]} : vector<1x128xf32> to vector<1x64xf32>
    %63 = arith.addf %61, %62 : vector<1x64xf32>
    %64 = vector.extract_strided_slice %63 {offsets = [0, 0], sizes = [1, 32], strides = [1, 1]} : vector<1x64xf32> to vector<1x32xf32>
    %65 = vector.extract_strided_slice %63 {offsets = [0, 32], sizes = [1, 32], strides = [1, 1]} : vector<1x64xf32> to vector<1x32xf32>
    %66 = arith.addf %64, %65 : vector<1x32xf32>
    %67 = arith.addf %66, %57 : vector<1x32xf32>
    %cst_16 = arith.constant 6.480000e+02 : f32
    %68 = vector.broadcast %cst_16 : f32 to vector<1x32xf32>
    %69 = arith.divf %67, %68 : vector<1x32xf32>
    %c0_17 = arith.constant 0 : index
    %c0_18 = arith.constant 0 : index
    %70 = vector.load %arg1[%c0_17, %c0_18] : memref<1x32xf32, #tpu.memory_space<vmem>>, vector<1x32xf32>
    %cst_19 = arith.constant 9.99999974E-6 : f32
    %71 = vector.broadcast %cst_19 : f32 to vector<1x32xf32>
    %72 = arith.addf %69, %71 : vector<1x32xf32>
    %73 = math.rsqrt %72 : vector<1x32xf32>
    %74 = arith.mulf %70, %73 : vector<1x32xf32>
    %c0_20 = arith.constant 0 : index
    %c0_21 = arith.constant 0 : index
    %75 = vector.load %arg2[%c0_20, %c0_21] : memref<1x32xf32, #tpu.memory_space<vmem>>, vector<1x32xf32>
    %76 = arith.mulf %30, %74 : vector<1x32xf32>
    %77 = arith.subf %75, %76 : vector<1x32xf32>
    %78 = tpu.concatenate %74, %74 in 1 : vector<1x32xf32>, vector<1x32xf32> -> vector<1x64xf32>
    %79 = tpu.concatenate %78, %78 in 1 : vector<1x64xf32>, vector<1x64xf32> -> vector<1x128xf32>
    %80 = tpu.concatenate %79, %79 in 1 : vector<1x128xf32>, vector<1x128xf32> -> vector<1x256xf32>
    %81 = tpu.concatenate %80, %80 in 1 : vector<1x256xf32>, vector<1x256xf32> -> vector<1x512xf32>
    %82 = vector.extract_strided_slice %81 {offsets = [0, 0], sizes = [1, 64], strides = [1, 1]} : vector<1x512xf32> to vector<1x64xf32>
    %83 = tpu.concatenate %81, %82 in 1 : vector<1x512xf32>, vector<1x64xf32> -> vector<1x576xf32>
    %84 = tpu.concatenate %77, %77 in 1 : vector<1x32xf32>, vector<1x32xf32> -> vector<1x64xf32>
    %85 = tpu.concatenate %84, %84 in 1 : vector<1x64xf32>, vector<1x64xf32> -> vector<1x128xf32>
    %86 = tpu.concatenate %85, %85 in 1 : vector<1x128xf32>, vector<1x128xf32> -> vector<1x256xf32>
    %87 = tpu.concatenate %86, %86 in 1 : vector<1x256xf32>, vector<1x256xf32> -> vector<1x512xf32>
    %88 = vector.extract_strided_slice %87 {offsets = [0, 0], sizes = [1, 64], strides = [1, 1]} : vector<1x512xf32> to vector<1x64xf32>
    %89 = tpu.concatenate %87, %88 in 1 : vector<1x512xf32>, vector<1x64xf32> -> vector<1x576xf32>
    %c0_i32_22 = arith.constant 0 : i32
    %90 = tpu.memref_slice %arg10[%c0_i32_22] : memref<2x!tpu.dma_semaphore, #tpu.memory_space<semaphore_mem>> -> memref<1x!tpu.dma_semaphore, #tpu.memory_space<semaphore_mem>>
    %91 = tpu.memref_squeeze %90 : memref<1x!tpu.dma_semaphore, #tpu.memory_space<semaphore_mem>> -> memref<!tpu.dma_semaphore, #tpu.memory_space<semaphore_mem>>
    tpu.wait_dma2 semaphore(%91 : memref<!tpu.dma_semaphore, #tpu.memory_space<semaphore_mem>>) src(%arg5 : memref<3x576x128xf32, #tpu.memory_space<any>>) dst(%arg8 : memref<3x576x128xf32, #tpu.memory_space<vmem>>)
    %cst_23 = arith.constant 0.000000e+00 : f32
    %92 = vector.broadcast %cst_23 : f32 to vector<32x128xf32>
    %c0_24 = arith.constant 0 : index
    %c0_25 = arith.constant 0 : index
    %c0_26 = arith.constant 0 : index
    %93 = vector.load %arg0[%c0_24, %c0_25, %c0_26] : memref<2x18x576xf32, #tpu.memory_space<vmem>>, vector<2x16x576xf32>
    %94 = vector.shape_cast %93 : vector<2x16x576xf32> to vector<32x576xf32>
    %95 = vector.broadcast %83 : vector<1x576xf32> to vector<32x576xf32>
    %96 = arith.mulf %94, %95 : vector<32x576xf32>
    %97 = vector.broadcast %89 : vector<1x576xf32> to vector<32x576xf32>
    %98 = arith.addf %96, %97 : vector<32x576xf32>
    %cst_27 = arith.constant 0.000000e+00 : f32
    %99 = vector.broadcast %cst_27 : f32 to vector<32x576xf32>
    %100 = arith.maximumf %98, %99 : vector<32x576xf32>
    %c0_28 = arith.constant 0 : index
    %c0_29 = arith.constant 0 : index
    %c0_30 = arith.constant 0 : index
    %101 = vector.load %arg8[%c0_28, %c0_29, %c0_30] : memref<3x576x128xf32, #tpu.memory_space<vmem>>, vector<1x576x128xf32>
    %102 = vector.shape_cast %101 : vector<1x576x128xf32> to vector<576x128xf32>
    %cst_31 = arith.constant dense<0.000000e+00> : vector<32x128xf32>
    %103 = tpu.matmul %100, %102, %cst_31 {dimension_numbers = #tpu.dot_dimension_numbers<[1], [0], [0], [1], [0, 0, 1, 1], [], []>} : vector<32x576xf32>, vector<576x128xf32>, vector<32x128xf32> -> vector<32x128xf32>
    %104 = arith.addf %92, %103 : vector<32x128xf32>
    %c0_32 = arith.constant 0 : index
    %c1_33 = arith.constant 1 : index
    %c0_34 = arith.constant 0 : index
    %105 = vector.load %arg0[%c0_32, %c1_33, %c0_34] : memref<2x18x576xf32, #tpu.memory_space<vmem>>, vector<2x16x576xf32>
    %106 = vector.shape_cast %105 : vector<2x16x576xf32> to vector<32x576xf32>
    %107 = vector.broadcast %83 : vector<1x576xf32> to vector<32x576xf32>
    %108 = arith.mulf %106, %107 : vector<32x576xf32>
    %109 = vector.broadcast %89 : vector<1x576xf32> to vector<32x576xf32>
    %110 = arith.addf %108, %109 : vector<32x576xf32>
    %cst_35 = arith.constant 0.000000e+00 : f32
    %111 = vector.broadcast %cst_35 : f32 to vector<32x576xf32>
    %112 = arith.maximumf %110, %111 : vector<32x576xf32>
    %c1_36 = arith.constant 1 : index
    %c0_37 = arith.constant 0 : index
    %c0_38 = arith.constant 0 : index
    %113 = vector.load %arg8[%c1_36, %c0_37, %c0_38] : memref<3x576x128xf32, #tpu.memory_space<vmem>>, vector<1x576x128xf32>
    %114 = vector.shape_cast %113 : vector<1x576x128xf32> to vector<576x128xf32>
    %cst_39 = arith.constant dense<0.000000e+00> : vector<32x128xf32>
    %115 = tpu.matmul %112, %114, %cst_39 {dimension_numbers = #tpu.dot_dimension_numbers<[1], [0], [0], [1], [0, 0, 1, 1], [], []>} : vector<32x576xf32>, vector<576x128xf32>, vector<32x128xf32> -> vector<32x128xf32>
    %116 = arith.addf %104, %115 : vector<32x128xf32>
    %c0_40 = arith.constant 0 : index
    %c2 = arith.constant 2 : index
    %c0_41 = arith.constant 0 : index
    %117 = vector.load %arg0[%c0_40, %c2, %c0_41] : memref<2x18x576xf32, #tpu.memory_space<vmem>>, vector<2x16x576xf32>
    %118 = vector.shape_cast %117 : vector<2x16x576xf32> to vector<32x576xf32>
    %119 = vector.broadcast %83 : vector<1x576xf32> to vector<32x576xf32>
    %120 = arith.mulf %118, %119 : vector<32x576xf32>
    %121 = vector.broadcast %89 : vector<1x576xf32> to vector<32x576xf32>
    %122 = arith.addf %120, %121 : vector<32x576xf32>
    %cst_42 = arith.constant 0.000000e+00 : f32
    %123 = vector.broadcast %cst_42 : f32 to vector<32x576xf32>
    %124 = arith.maximumf %122, %123 : vector<32x576xf32>
    %c2_43 = arith.constant 2 : index
    %c0_44 = arith.constant 0 : index
    %c0_45 = arith.constant 0 : index
    %125 = vector.load %arg8[%c2_43, %c0_44, %c0_45] : memref<3x576x128xf32, #tpu.memory_space<vmem>>, vector<1x576x128xf32>
    %126 = vector.shape_cast %125 : vector<1x576x128xf32> to vector<576x128xf32>
    %cst_46 = arith.constant dense<0.000000e+00> : vector<32x128xf32>
    %127 = tpu.matmul %124, %126, %cst_46 {dimension_numbers = #tpu.dot_dimension_numbers<[1], [0], [0], [1], [0, 0, 1, 1], [], []>} : vector<32x576xf32>, vector<576x128xf32>, vector<32x128xf32> -> vector<32x128xf32>
    %128 = arith.addf %116, %127 : vector<32x128xf32>
    %cst_47 = arith.constant dense<0.000000e+00> : vector<128xf32>
    %129 = vector.multi_reduction <add>, %128, %cst_47 [0] : vector<32x128xf32> to vector<128xf32>
    %130 = vector.shape_cast %129 : vector<128xf32> to vector<1x128xf32>
    %131 = vector.extract_strided_slice %130 {offsets = [0, 0], sizes = [1, 64], strides = [1, 1]} : vector<1x128xf32> to vector<1x64xf32>
    %132 = vector.extract_strided_slice %130 {offsets = [0, 64], sizes = [1, 64], strides = [1, 1]} : vector<1x128xf32> to vector<1x64xf32>
    %133 = arith.addf %131, %132 : vector<1x64xf32>
    %134 = vector.extract_strided_slice %133 {offsets = [0, 0], sizes = [1, 32], strides = [1, 1]} : vector<1x64xf32> to vector<1x32xf32>
    %135 = vector.extract_strided_slice %133 {offsets = [0, 32], sizes = [1, 32], strides = [1, 1]} : vector<1x64xf32> to vector<1x32xf32>
    %136 = arith.addf %134, %135 : vector<1x32xf32>
    %137 = vector.extract_strided_slice %136 {offsets = [0, 0], sizes = [1, 16], strides = [1, 1]} : vector<1x32xf32> to vector<1x16xf32>
    %138 = vector.extract_strided_slice %136 {offsets = [0, 16], sizes = [1, 16], strides = [1, 1]} : vector<1x32xf32> to vector<1x16xf32>
    %139 = arith.addf %137, %138 : vector<1x16xf32>
    %140 = vector.extract_strided_slice %139 {offsets = [0, 0], sizes = [1, 8], strides = [1, 1]} : vector<1x16xf32> to vector<1x8xf32>
    %141 = vector.extract_strided_slice %139 {offsets = [0, 8], sizes = [1, 8], strides = [1, 1]} : vector<1x16xf32> to vector<1x8xf32>
    %142 = arith.addf %140, %141 : vector<1x8xf32>
    %cst_48 = arith.constant 5.120000e+02 : f32
    %143 = vector.broadcast %cst_48 : f32 to vector<1x8xf32>
    %144 = arith.divf %142, %143 : vector<1x8xf32>
    %145 = tpu.concatenate %144, %144 in 1 : vector<1x8xf32>, vector<1x8xf32> -> vector<1x16xf32>
    %146 = tpu.concatenate %145, %145 in 1 : vector<1x16xf32>, vector<1x16xf32> -> vector<1x32xf32>
    %147 = tpu.concatenate %146, %146 in 1 : vector<1x32xf32>, vector<1x32xf32> -> vector<1x64xf32>
    %148 = tpu.concatenate %147, %147 in 1 : vector<1x64xf32>, vector<1x64xf32> -> vector<1x128xf32>
    %149 = vector.broadcast %148 : vector<1x128xf32> to vector<32x128xf32>
    %150 = arith.subf %128, %149 : vector<32x128xf32>
    %151 = arith.mulf %150, %150 : vector<32x128xf32>
    %cst_49 = arith.constant dense<0.000000e+00> : vector<128xf32>
    %152 = vector.multi_reduction <add>, %151, %cst_49 [0] : vector<32x128xf32> to vector<128xf32>
    %153 = vector.shape_cast %152 : vector<128xf32> to vector<1x128xf32>
    %154 = vector.extract_strided_slice %153 {offsets = [0, 0], sizes = [1, 64], strides = [1, 1]} : vector<1x128xf32> to vector<1x64xf32>
    %155 = vector.extract_strided_slice %153 {offsets = [0, 64], sizes = [1, 64], strides = [1, 1]} : vector<1x128xf32> to vector<1x64xf32>
    %156 = arith.addf %154, %155 : vector<1x64xf32>
    %157 = vector.extract_strided_slice %156 {offsets = [0, 0], sizes = [1, 32], strides = [1, 1]} : vector<1x64xf32> to vector<1x32xf32>
    %158 = vector.extract_strided_slice %156 {offsets = [0, 32], sizes = [1, 32], strides = [1, 1]} : vector<1x64xf32> to vector<1x32xf32>
    %159 = arith.addf %157, %158 : vector<1x32xf32>
    %160 = vector.extract_strided_slice %159 {offsets = [0, 0], sizes = [1, 16], strides = [1, 1]} : vector<1x32xf32> to vector<1x16xf32>
    %161 = vector.extract_strided_slice %159 {offsets = [0, 16], sizes = [1, 16], strides = [1, 1]} : vector<1x32xf32> to vector<1x16xf32>
    %162 = arith.addf %160, %161 : vector<1x16xf32>
    %163 = vector.extract_strided_slice %162 {offsets = [0, 0], sizes = [1, 8], strides = [1, 1]} : vector<1x16xf32> to vector<1x8xf32>
    %164 = vector.extract_strided_slice %162 {offsets = [0, 8], sizes = [1, 8], strides = [1, 1]} : vector<1x16xf32> to vector<1x8xf32>
    %165 = arith.addf %163, %164 : vector<1x8xf32>
    %cst_50 = arith.constant 5.120000e+02 : f32
    %166 = vector.broadcast %cst_50 : f32 to vector<1x8xf32>
    %167 = arith.divf %165, %166 : vector<1x8xf32>
    %c0_51 = arith.constant 0 : index
    %c0_52 = arith.constant 0 : index
    %168 = vector.load %arg3[%c0_51, %c0_52] : memref<1x8xf32, #tpu.memory_space<vmem>>, vector<1x8xf32>
    %cst_53 = arith.constant 9.99999974E-6 : f32
    %169 = vector.broadcast %cst_53 : f32 to vector<1x8xf32>
    %170 = arith.addf %167, %169 : vector<1x8xf32>
    %171 = math.rsqrt %170 : vector<1x8xf32>
    %172 = arith.mulf %168, %171 : vector<1x8xf32>
    %c0_54 = arith.constant 0 : index
    %c0_55 = arith.constant 0 : index
    %173 = vector.load %arg4[%c0_54, %c0_55] : memref<1x8xf32, #tpu.memory_space<vmem>>, vector<1x8xf32>
    %174 = arith.mulf %144, %172 : vector<1x8xf32>
    %175 = arith.subf %173, %174 : vector<1x8xf32>
    %176 = tpu.concatenate %172, %172 in 1 : vector<1x8xf32>, vector<1x8xf32> -> vector<1x16xf32>
    %177 = tpu.concatenate %176, %176 in 1 : vector<1x16xf32>, vector<1x16xf32> -> vector<1x32xf32>
    %178 = tpu.concatenate %177, %177 in 1 : vector<1x32xf32>, vector<1x32xf32> -> vector<1x64xf32>
    %179 = tpu.concatenate %178, %178 in 1 : vector<1x64xf32>, vector<1x64xf32> -> vector<1x128xf32>
    %180 = tpu.concatenate %175, %175 in 1 : vector<1x8xf32>, vector<1x8xf32> -> vector<1x16xf32>
    %181 = tpu.concatenate %180, %180 in 1 : vector<1x16xf32>, vector<1x16xf32> -> vector<1x32xf32>
    %182 = tpu.concatenate %181, %181 in 1 : vector<1x32xf32>, vector<1x32xf32> -> vector<1x64xf32>
    %183 = tpu.concatenate %182, %182 in 1 : vector<1x64xf32>, vector<1x64xf32> -> vector<1x128xf32>
    %184 = vector.broadcast %179 : vector<1x128xf32> to vector<32x128xf32>
    %185 = arith.mulf %128, %184 : vector<32x128xf32>
    %186 = vector.broadcast %183 : vector<1x128xf32> to vector<32x128xf32>
    %187 = arith.addf %185, %186 : vector<32x128xf32>
    %cst_56 = arith.constant 0.000000e+00 : f32
    %188 = vector.broadcast %cst_56 : f32 to vector<32x128xf32>
    %189 = arith.maximumf %187, %188 : vector<32x128xf32>
    %c1_i32_57 = arith.constant 1 : i32
    %190 = tpu.memref_slice %arg10[%c1_i32_57] : memref<2x!tpu.dma_semaphore, #tpu.memory_space<semaphore_mem>> -> memref<1x!tpu.dma_semaphore, #tpu.memory_space<semaphore_mem>>
    %191 = tpu.memref_squeeze %190 : memref<1x!tpu.dma_semaphore, #tpu.memory_space<semaphore_mem>> -> memref<!tpu.dma_semaphore, #tpu.memory_space<semaphore_mem>>
    tpu.wait_dma2 semaphore(%191 : memref<!tpu.dma_semaphore, #tpu.memory_space<semaphore_mem>>) src(%arg6 : memref<128x512xf32, #tpu.memory_space<any>>) dst(%arg9 : memref<128x512xf32, #tpu.memory_space<vmem>>)
    %c0_58 = arith.constant 0 : index
    %c0_59 = arith.constant 0 : index
    %192 = vector.load %arg9[%c0_58, %c0_59] : memref<128x512xf32, #tpu.memory_space<vmem>>, vector<128x512xf32>
    %cst_60 = arith.constant dense<0.000000e+00> : vector<32x512xf32>
    %193 = tpu.matmul %189, %192, %cst_60 {dimension_numbers = #tpu.dot_dimension_numbers<[1], [0], [0], [1], [0, 0, 1, 1], [], []>} : vector<32x128xf32>, vector<128x512xf32>, vector<32x512xf32> -> vector<32x512xf32>
    %c0_61 = arith.constant 0 : index
    %c1_62 = arith.constant 1 : index
    %c0_63 = arith.constant 0 : index
    %194 = vector.load %arg0[%c0_61, %c1_62, %c0_63] : memref<2x18x576xf32, #tpu.memory_space<vmem>>, vector<2x16x576xf32>
    %195 = vector.shape_cast %194 : vector<2x16x576xf32> to vector<32x576xf32>
    %196 = vector.extract_strided_slice %195 {offsets = [0, 32], sizes = [32, 512], strides = [1, 1]} : vector<32x576xf32> to vector<32x512xf32>
    %197 = arith.addf %193, %196 : vector<32x512xf32>
    %c0_64 = arith.constant 0 : index
    %c0_65 = arith.constant 0 : index
    %198 = vector.load %arg7[%c0_64, %c0_65] : memref<32x512xf32, #tpu.memory_space<vmem>>, vector<32x512xf32>
    tpu.vector_store %arg7[%c0_64, %c0_65], %197 {strides = array<i32>} : memref<32x512xf32, #tpu.memory_space<vmem>>, vector<32x512xf32>,
    return
  }
}

</mosaic_0001>

<llo_original>
// kernel: resblock_forward.1
$region0: #{resblock_forward.1}
  #allocation0 [shape = 'u32[]', space=smem, size = 0x4, offset = 0x4, fixed_abs, tag = 'smem constant byte address 0x4 - core index']
  #allocation1 [shape = 'u32[144,128]{1,0:T(1,128)}', space=vmem, size = 0x12000, scoped, tag = 'internal scratch']
  #allocation2 [shape = 'f32[3,576,128]{2,1,0:T(8,128)}', space=vmem, size = 0xd8000, scoped, tag = 'scratch operand']
  #allocation3 [shape = 'f32[128,512]{1,0:T(8,128)}', space=vmem, size = 0x40000, scoped, tag = 'scratch operand']
  #allocation4 [shape = 's32[2]{0}', space=sflag, size = 0x8, scoped, tag = 'scratch operand']
  #allocation5 [shape = 's32[]', space=sflag, size = 0x4, offset = 0, fixed_abs, tag = 'sflag constant byte address 0x0 - dummy sync flag']
  #allocation6 [shape = 's32[]', space=sflag, size = 0x4, offset = 0, fixed_abs, tag = 'sflag constant byte address 0x0 - dummy sync flag']
  %s0 = inlined_call_operand.vmem [shape: f32[2,18,576], index: 0, kind: input, shape index: {}]
  %s1 = inlined_call_operand.vmem [shape: f32[1,32], index: 1, kind: input, shape index: {}]
  %s2 = inlined_call_operand.vmem [shape: f32[1,32], index: 2, kind: input, shape index: {}]
  %s3 = inlined_call_operand.vmem [shape: f32[1,8], index: 3, kind: input, shape index: {}]
  %s4 = inlined_call_operand.vmem [shape: f32[1,8], index: 4, kind: input, shape index: {}]
  %s5 = inlined_call_operand.vmem [shape: f32[3,576,128], index: 5, kind: input, shape index: {}]
  %s6 = inlined_call_operand.vmem [shape: f32[128,512], index: 6, kind: input, shape index: {}]
  %s7 = inlined_call_operand.vmem [shape: f32[32,512], index: 7, kind: output, shape index: {}]
  %s8 = sld [smem:[#allocation0]]
  $region98: #{resblock_forward.1} parent=0
    _
  %s10 = ssub.s32 1, %s8
  %s11 = scalar_select 0, %s10, %s8
  // Predicated region
  $region2: #{resblock_forward.1} parent=0 // pred_check
    _
  $region3: #{resblock_forward.1} parent=0 // pred_check_branch
    %13 = sbr.rel (0) target = $region5
  $region4: #{resblock_forward.1} parent=0 // pred_region
    _
  $region5: #{resblock_forward.1} parent=0 // pred_fallthru
    _
  // Predicated region
  $region6: #{resblock_forward.1} parent=0 // pred_check
    _
  $region7: #{resblock_forward.1} parent=0 // pred_check_branch
    %15 = sbr.rel (0) target = $region9
  $region8: #{resblock_forward.1} parent=0 // pred_region
    _
  $region9: #{resblock_forward.1} parent=0 // pred_fallthru
    _
  // Predicated region
  $region10: #{resblock_forward.1} parent=0 // pred_check
    _
  $region11: #{resblock_forward.1} parent=0 // pred_check_branch
    %17 = sbr.rel (0) target = $region13
  $region12: #{resblock_forward.1} parent=0 // pred_region
    _
  $region13: #{resblock_forward.1} parent=0 // pred_fallthru
    _
  // Predicated region
  $region14: #{resblock_forward.1} parent=0 // pred_check
    _
  $region15: #{resblock_forward.1} parent=0 // pred_check_branch
    %19 = sbr.rel (0) target = $region17
  $region16: #{resblock_forward.1} parent=0 // pred_region
    _
  $region17: #{resblock_forward.1} parent=0 // pred_fallthru
    _
  // Predicated region
  $region18: #{resblock_forward.1} parent=0 // pred_check
    _
  $region19: #{resblock_forward.1} parent=0 // pred_check_branch
    %21 = sbr.rel (0) target = $region21
  $region20: #{resblock_forward.1} parent=0 // pred_region
    _
  $region21: #{resblock_forward.1} parent=0 // pred_fallthru
    _
  %p23 = scmp.lt.u32.totalorder 1728, 8
  %p24 = pneg %p23
  // Predicated region
  $region22: #{resblock_forward.1} parent=0 // pred_check
    _
  $region23: #{resblock_forward.1} parent=0 // pred_check_branch
    %26 = sbr.rel (%p23) target = $region25
  $region24: #{resblock_forward.1} parent=0 // pred_region
    %s42 = sand.u32 1728, 7
    %p43 = scmp.eq.s32.totalorder %s42, 0
    // Predicated region
    $region37: #{resblock_forward.1} parent=24 // pred_check
      %p44 = pneg %p43
    $region38: #{resblock_forward.1} parent=24 // pred_check_branch
      %46 = sbr.rel (%p44) target = $region40
    $region39: #{resblock_forward.1} parent=24 // pred_region
      loop: start=0, step=1, limit=1
      $region41: #{resblock_forward.1} parent=39 // loop_pre_header
        _
      $region42: #{resblock_forward.1} parent=39 // loop_header
        %s48 = sphi 0, %s52
        %p49 = scmp.ge.s32.totalorder %s48, 1
        %s53 = sphi %s5, %s5
        %s54 = sphi [#allocation2], [#allocation2]
      $region43: #{resblock_forward.1} parent=39 // loop_header_branch
        %51 = sbr.rel (%p49) target = $region47
      $region44: #{resblock_forward.1} parent=39 // loop_body
        %v55 = vld [vmem:[%s53] sm:$0xff]
        %56 = vst [vmem:[%s54] sm:$0xff] %v55
        %v57 = vld [vmem:[%s53 + $0x8] sm:$0xff]
        %58 = vst [vmem:[%s54 + $0x8] sm:$0xff] %v57
        %v59 = vld [vmem:[%s53 + $0x10] sm:$0xff]
        %60 = vst [vmem:[%s54 + $0x10] sm:$0xff] %v59
        %v61 = vld [vmem:[%s53 + $0x18] sm:$0xff]
        %62 = vst [vmem:[%s54 + $0x18] sm:$0xff] %v61
        %v63 = vld [vmem:[%s53 + $0x20] sm:$0xff]
        %64 = vst [vmem:[%s54 + $0x20] sm:$0xff] %v63
        %v65 = vld [vmem:[%s53 + $0x28] sm:$0xff]
        %66 = vst [vmem:[%s54 + $0x28] sm:$0xff] %v65
        %v67 = vld [vmem:[%s53 + $0x30] sm:$0xff]
        %68 = vst [vmem:[%s54 + $0x30] sm:$0xff] %v67
        %v69 = vld [vmem:[%s53 + $0x38] sm:$0xff]
        %70 = vst [vmem:[%s54 + $0x38] sm:$0xff] %v69
        %v71 = vld [vmem:[%s53 + $0x40] sm:$0xff]
        %72 = vst [vmem:[%s54 + $0x40] sm:$0xff] %v71
        %v73 = vld [vmem:[%s53 + $0x48] sm:$0xff]
        %74 = vst [vmem:[%s54 + $0x48] sm:$0xff] %v73
        %v75 = vld [vmem:[%s53 + $0x50] sm:$0xff]
        %76 = vst [vmem:[%s54 + $0x50] sm:$0xff] %v75
        %v77 = vld [vmem:[%s53 + $0x58] sm:$0xff]
        %78 = vst [vmem:[%s54 + $0x58] sm:$0xff] %v77
        %v79 = vld [vmem:[%s53 + $0x60] sm:$0xff]
        %80 = vst [vmem:[%s54 + $0x60] sm:$0xff] %v79
        %v81 = vld [vmem:[%s53 + $0x68] sm:$0xff]
        %82 = vst [vmem:[%s54 + $0x68] sm:$0xff] %v81
        %v83 = vld [vmem:[%s53 + $0x70] sm:$0xff]
        %84 = vst [vmem:[%s54 + $0x70] sm:$0xff] %v83
        %v85 = vld [vmem:[%s53 + $0x78] sm:$0xff]
        %86 = vst [vmem:[%s54 + $0x78] sm:$0xff] %v85
        %v87 = vld [vmem:[%s53 + $0x80] sm:$0xff]
        %88 = vst [vmem:[%s54 + $0x80] sm:$0xff] %v87
        %v89 = vld [vmem:[%s53 + $0x88] sm:$0xff]
        %90 = vst [vmem:[%s54 + $0x88] sm:$0xff] %v89
        %v91 = vld [vmem:[%s53 + $0x90] sm:$0xff]
        %92 = vst [vmem:[%s54 + $0x90] sm:$0xff] %v91
        %v93 = vld [vmem:[%s53 + $0x98] sm:$0xff]
        %94 = vst [vmem:[%s54 + $0x98] sm:$0xff] %v93
        %v95 = vld [vmem:[%s53 + $0xa0] sm:$0xff]
        %96 = vst [vmem:[%s54 + $0xa0] sm:$0xff] %v95
        %v97 = vld [vmem:[%s53 + $0xa8] sm:$0xff]
        %98 = vst [vmem:[%s54 + $0xa8] sm:$0xff] %v97
        %v99 = vld [vmem:[%s53 + $0xb0] sm:$0xff]
        %100 = vst [vmem:[%s54 + $0xb0] sm:$0xff] %v99
        %v101 = vld [vmem:[%s53 + $0xb8] sm:$0xff]
        %102 = vst [vmem:[%s54 + $0xb8] sm:$0xff] %v101
        %v103 = vld [vmem:[%s53 + $0xc0] sm:$0xff]
        %104 = vst [vmem:[%s54 + $0xc0] sm:$0xff] %v103
        %v105 = vld [vmem:[%s53 + $0xc8] sm:$0xff]
        %106 = vst [vmem:[%s54 + $0xc8] sm:$0xff] %v105
        %v107 = vld [vmem:[%s53 + $0xd0] sm:$0xff]
        %108 = vst [vmem:[%s54 + $0xd0] sm:$0xff] %v107
        %v109 = vld [vmem:[%s53 + $0xd8] sm:$0xff]
        %110 = vst [vmem:[%s54 + $0xd8] sm:$0xff] %v109
        %v111 = vld [vmem:[%s53 + $0xe0] sm:$0xff]
        %112 = vst [vmem:[%s54 + $0xe0] sm:$0xff] %v111
        %v113 = vld [vmem:[%s53 + $0xe8] sm:$0xff]
        %114 = vst [vmem:[%s54 + $0xe8] sm:$0xff] %v113
        %v115 = vld [vmem:[%s53 + $0xf0] sm:$0xff]
        %116 = vst [vmem:[%s54 + $0xf0] sm:$0xff] %v115
        %v117 = vld [vmem:[%s53 + $0xf8] sm:$0xff]
        %118 = vst [vmem:[%s54 + $0xf8] sm:$0xff] %v117
        %v119 = vld [vmem:[%s53 + $0x100] sm:$0xff]
        %120 = vst [vmem:[%s54 + $0x100] sm:$0xff] %v119
        %v121 = vld [vmem:[%s53 + $0x108] sm:$0xff]
        %122 = vst [vmem:[%s54 + $0x108] sm:$0xff] %v121
        %v123 = vld [vmem:[%s53 + $0x110] sm:$0xff]
        %124 = vst [vmem:[%s54 + $0x110] sm:$0xff] %v123
        %v125 = vld [vmem:[%s53 + $0x118] sm:$0xff]
        %126 = vst [vmem:[%s54 + $0x118] sm:$0xff] %v125
        %v127 = vld [vmem:[%s53 + $0x120] sm:$0xff]
        %128 = vst [vmem:[%s54 + $0x120] sm:$0xff] %v127
        %v129 = vld [vmem:[%s53 + $0x128] sm:$0xff]
        %130 = vst [vmem:[%s54 + $0x128] sm:$0xff] %v129
        %v131 = vld [vmem:[%s53 + $0x130] sm:$0xff]
        %132 = vst [vmem:[%s54 + $0x130] sm:$0xff] %v131
        %v133 = vld [vmem:[%s53 + $0x138] sm:$0xff]
        %134 = vst [vmem:[%s54 + $0x138] sm:$0xff] %v133
        %v135 = vld [vmem:[%s53 + $0x140] sm:$0xff]
        %136 = vst [vmem:[%s54 + $0x140] sm:$0xff] %v135
        %v137 = vld [vmem:[%s53 + $0x148] sm:$0xff]
        %138 = vst [vmem:[%s54 + $0x148] sm:$0xff] %v137
        %v139 = vld [vmem:[%s53 + $0x150] sm:$0xff]
        %140 = vst [vmem:[%s54 + $0x150] sm:$0xff] %v139
        %v141 = vld [vmem:[%s53 + $0x158] sm:$0xff]
        %142 = vst [vmem:[%s54 + $0x158] sm:$0xff] %v141
        %v143 = vld [vmem:[%s53 + $0x160] sm:$0xff]
        %144 = vst [vmem:[%s54 + $0x160] sm:$0xff] %v143
        %v145 = vld [vmem:[%s53 + $0x168] sm:$0xff]
        %146 = vst [vmem:[%s54 + $0x168] sm:$0xff] %v145
        %v147 = vld [vmem:[%s53 + $0x170] sm:$0xff]
        %148 = vst [vmem:[%s54 + $0x170] sm:$0xff] %v147
        %v149 = vld [vmem:[%s53 + $0x178] sm:$0xff]
        %150 = vst [vmem:[%s54 + $0x178] sm:$0xff] %v149
        %v151 = vld [vmem:[%s53 + $0x180] sm:$0xff]
        %152 = vst [vmem:[%s54 + $0x180] sm:$0xff] %v151
        %v153 = vld [vmem:[%s53 + $0x188] sm:$0xff]
        %154 = vst [vmem:[%s54 + $0x188] sm:$0xff] %v153
        %v155 = vld [vmem:[%s53 + $0x190] sm:$0xff]
        %156 = vst [vmem:[%s54 + $0x190] sm:$0xff] %v155
        %v157 = vld [vmem:[%s53 + $0x198] sm:$0xff]
        %158 = vst [vmem:[%s54 + $0x198] sm:$0xff] %v157
        %v159 = vld [vmem:[%s53 + $0x1a0] sm:$0xff]
        %160 = vst [vmem:[%s54 + $0x1a0] sm:$0xff] %v159
        %v161 = vld [vmem:[%s53 + $0x1a8] sm:$0xff]
        %162 = vst [vmem:[%s54 + $0x1a8] sm:$0xff] %v161
        %v163 = vld [vmem:[%s53 + $0x1b0] sm:$0xff]
        %164 = vst [vmem:[%s54 + $0x1b0] sm:$0xff] %v163
        %v165 = vld [vmem:[%s53 + $0x1b8] sm:$0xff]
        %166 = vst [vmem:[%s54 + $0x1b8] sm:$0xff] %v165
        %v167 = vld [vmem:[%s53 + $0x1c0] sm:$0xff]
        %168 = vst [vmem:[%s54 + $0x1c0] sm:$0xff] %v167
        %v169 = vld [vmem:[%s53 + $0x1c8] sm:$0xff]
        %170 = vst [vmem:[%s54 + $0x1c8] sm:$0xff] %v169
        %v171 = vld [vmem:[%s53 + $0x1d0] sm:$0xff]
        %172 = vst [vmem:[%s54 + $0x1d0] sm:$0xff] %v171
        %v173 = vld [vmem:[%s53 + $0x1d8] sm:$0xff]
        %174 = vst [vmem:[%s54 + $0x1d8] sm:$0xff] %v173
        %v175 = vld [vmem:[%s53 + $0x1e0] sm:$0xff]
        %176 = vst [vmem:[%s54 + $0x1e0] sm:$0xff] %v175
        %v177 = vld [vmem:[%s53 + $0x1e8] sm:$0xff]
        %178 = vst [vmem:[%s54 + $0x1e8] sm:$0xff] %v177
        %v179 = vld [vmem:[%s53 + $0x1f0] sm:$0xff]
        %180 = vst [vmem:[%s54 + $0x1f0] sm:$0xff] %v179
        %v181 = vld [vmem:[%s53 + $0x1f8] sm:$0xff]
        %182 = vst [vmem:[%s54 + $0x1f8] sm:$0xff] %v181
        %v183 = vld [vmem:[%s53 + $0x200] sm:$0xff]
        %184 = vst [vmem:[%s54 + $0x200] sm:$0xff] %v183
        %v185 = vld [vmem:[%s53 + $0x208] sm:$0xff]
        %186 = vst [vmem:[%s54 + $0x208] sm:$0xff] %v185
        %v187 = vld [vmem:[%s53 + $0x210] sm:$0xff]
        %188 = vst [vmem:[%s54 + $0x210] sm:$0xff] %v187
        %v189 = vld [vmem:[%s53 + $0x218] sm:$0xff]
        %190 = vst [vmem:[%s54 + $0x218] sm:$0xff] %v189
        %v191 = vld [vmem:[%s53 + $0x220] sm:$0xff]
        %192 = vst [vmem:[%s54 + $0x220] sm:$0xff] %v191
        %v193 = vld [vmem:[%s53 + $0x228] sm:$0xff]
        %194 = vst [vmem:[%s54 + $0x228] sm:$0xff] %v193
        %v195 = vld [vmem:[%s53 + $0x230] sm:$0xff]
        %196 = vst [vmem:[%s54 + $0x230] sm:$0xff] %v195
        %v197 = vld [vmem:[%s53 + $0x238] sm:$0xff]
        %198 = vst [vmem:[%s54 + $0x238] sm:$0xff] %v197
        %v199 = vld [vmem:[%s53 + $0x240] sm:$0xff]
        %200 = vst [vmem:[%s54 + $0x240] sm:$0xff] %v199
        %v201 = vld [vmem:[%s53 + $0x248] sm:$0xff]
        %202 = vst [vmem:[%s54 + $0x248] sm:$0xff] %v201
        %v203 = vld [vmem:[%s53 + $0x250] sm:$0xff]
        %204 = vst [vmem:[%s54 + $0x250] sm:$0xff] %v203
        %v205 = vld [vmem:[%s53 + $0x258] sm:$0xff]
        %206 = vst [vmem:[%s54 + $0x258] sm:$0xff] %v205
        %v207 = vld [vmem:[%s53 + $0x260] sm:$0xff]
        %208 = vst [vmem:[%s54 + $0x260] sm:$0xff] %v207
        %v209 = vld [vmem:[%s53 + $0x268] sm:$0xff]
        %210 = vst [vmem:[%s54 + $0x268] sm:$0xff] %v209
        %v211 = vld [vmem:[%s53 + $0x270] sm:$0xff]
        %212 = vst [vmem:[%s54 + $0x270] sm:$0xff] %v211
        %v213 = vld [vmem:[%s53 + $0x278] sm:$0xff]
        %214 = vst [vmem:[%s54 + $0x278] sm:$0xff] %v213
        %v215 = vld [vmem:[%s53 + $0x280] sm:$0xff]
        %216 = vst [vmem:[%s54 + $0x280] sm:$0xff] %v215
        %v217 = vld [vmem:[%s53 + $0x288] sm:$0xff]
        %218 = vst [vmem:[%s54 + $0x288] sm:$0xff] %v217
        %v219 = vld [vmem:[%s53 + $0x290] sm:$0xff]
        %220 = vst [vmem:[%s54 + $0x290] sm:$0xff] %v219
        %v221 = vld [vmem:[%s53 + $0x298] sm:$0xff]
        %222 = vst [vmem:[%s54 + $0x298] sm:$0xff] %v221
        %v223 = vld [vmem:[%s53 + $0x2a0] sm:$0xff]
        %224 = vst [vmem:[%s54 + $0x2a0] sm:$0xff] %v223
        %v225 = vld [vmem:[%s53 + $0x2a8] sm:$0xff]
        %226 = vst [vmem:[%s54 + $0x2a8] sm:$0xff] %v225
        %v227 = vld [vmem:[%s53 + $0x2b0] sm:$0xff]
        %228 = vst [vmem:[%s54 + $0x2b0] sm:$0xff] %v227
        %v229 = vld [vmem:[%s53 + $0x2b8] sm:$0xff]
        %230 = vst [vmem:[%s54 + $0x2b8] sm:$0xff] %v229
        %v231 = vld [vmem:[%s53 + $0x2c0] sm:$0xff]
        %232 = vst [vmem:[%s54 + $0x2c0] sm:$0xff] %v231
        %v233 = vld [vmem:[%s53 + $0x2c8] sm:$0xff]
        %234 = vst [vmem:[%s54 + $0x2c8] sm:$0xff] %v233
        %v235 = vld [vmem:[%s53 + $0x2d0] sm:$0xff]
        %236 = vst [vmem:[%s54 + $0x2d0] sm:$0xff] %v235
        %v237 = vld [vmem:[%s53 + $0x2d8] sm:$0xff]
        %238 = vst [vmem:[%s54 + $0x2d8] sm:$0xff] %v237
        %v239 = vld [vmem:[%s53 + $0x2e0] sm:$0xff]
        %240 = vst [vmem:[%s54 + $0x2e0] sm:$0xff] %v239
        %v241 = vld [vmem:[%s53 + $0x2e8] sm:$0xff]
        %242 = vst [vmem:[%s54 + $0x2e8] sm:$0xff] %v241
        %v243 = vld [vmem:[%s53 + $0x2f0] sm:$0xff]
        %244 = vst [vmem:[%s54 + $0x2f0] sm:$0xff] %v243
        %v245 = vld [vmem:[%s53 + $0x2f8] sm:$0xff]
        %246 = vst [vmem:[%s54 + $0x2f8] sm:$0xff] %v245
        %v247 = vld [vmem:[%s53 + $0x300] sm:$0xff]
        %248 = vst [vmem:[%s54 + $0x300] sm:$0xff] %v247
        %v249 = vld [vmem:[%s53 + $0x308] sm:$0xff]
        %250 = vst [vmem:[%s54 + $0x308] sm:$0xff] %v249
        %v251 = vld [vmem:[%s53 + $0x310] sm:$0xff]
        %252 = vst [vmem:[%s54 + $0x310] sm:$0xff] %v251
        %v253 = vld [vmem:[%s53 + $0x318] sm:$0xff]
        %254 = vst [vmem:[%s54 + $0x318] sm:$0xff] %v253
        %v255 = vld [vmem:[%s53 + $0x320] sm:$0xff]
        %256 = vst [vmem:[%s54 + $0x320] sm:$0xff] %v255
        %v257 = vld [vmem:[%s53 + $0x328] sm:$0xff]
        %258 = vst [vmem:[%s54 + $0x328] sm:$0xff] %v257
        %v259 = vld [vmem:[%s53 + $0x330] sm:$0xff]
        %260 = vst [vmem:[%s54 + $0x330] sm:$0xff] %v259
        %v261 = vld [vmem:[%s53 + $0x338] sm:$0xff]
        %262 = vst [vmem:[%s54 + $0x338] sm:$0xff] %v261
        %v263 = vld [vmem:[%s53 + $0x340] sm:$0xff]
        %264 = vst [vmem:[%s54 + $0x340] sm:$0xff] %v263
        %v265 = vld [vmem:[%s53 + $0x348] sm:$0xff]
        %266 = vst [vmem:[%s54 + $0x348] sm:$0xff] %v265
        %v267 = vld [vmem:[%s53 + $0x350] sm:$0xff]
        %268 = vst [vmem:[%s54 + $0x350] sm:$0xff] %v267
        %v269 = vld [vmem:[%s53 + $0x358] sm:$0xff]
        %270 = vst [vmem:[%s54 + $0x358] sm:$0xff] %v269
        %v271 = vld [vmem:[%s53 + $0x360] sm:$0xff]
        %272 = vst [vmem:[%s54 + $0x360] sm:$0xff] %v271
        %v273 = vld [vmem:[%s53 + $0x368] sm:$0xff]
        %274 = vst [vmem:[%s54 + $0x368] sm:$0xff] %v273
        %v275 = vld [vmem:[%s53 + $0x370] sm:$0xff]
        %276 = vst [vmem:[%s54 + $0x370] sm:$0xff] %v275
        %v277 = vld [vmem:[%s53 + $0x378] sm:$0xff]
        %278 = vst [vmem:[%s54 + $0x378] sm:$0xff] %v277
        %v279 = vld [vmem:[%s53 + $0x380] sm:$0xff]
        %280 = vst [vmem:[%s54 + $0x380] sm:$0xff] %v279
        %v281 = vld [vmem:[%s53 + $0x388] sm:$0xff]
        %282 = vst [vmem:[%s54 + $0x388] sm:$0xff] %v281
        %v283 = vld [vmem:[%s53 + $0x390] sm:$0xff]
        %284 = vst [vmem:[%s54 + $0x390] sm:$0xff] %v283
        %v285 = vld [vmem:[%s53 + $0x398] sm:$0xff]
        %286 = vst [vmem:[%s54 + $0x398] sm:$0xff] %v285
        %v287 = vld [vmem:[%s53 + $0x3a0] sm:$0xff]
        %288 = vst [vmem:[%s54 + $0x3a0] sm:$0xff] %v287
        %v289 = vld [vmem:[%s53 + $0x3a8] sm:$0xff]
        %290 = vst [vmem:[%s54 + $0x3a8] sm:$0xff] %v289
        %v291 = vld [vmem:[%s53 + $0x3b0] sm:$0xff]
        %292 = vst [vmem:[%s54 + $0x3b0] sm:$0xff] %v291
        %v293 = vld [vmem:[%s53 + $0x3b8] sm:$0xff]
        %294 = vst [vmem:[%s54 + $0x3b8] sm:$0xff] %v293
        %v295 = vld [vmem:[%s53 + $0x3c0] sm:$0xff]
        %296 = vst [vmem:[%s54 + $0x3c0] sm:$0xff] %v295
        %v297 = vld [vmem:[%s53 + $0x3c8] sm:$0xff]
        %298 = vst [vmem:[%s54 + $0x3c8] sm:$0xff] %v297
        %v299 = vld [vmem:[%s53 + $0x3d0] sm:$0xff]
        %300 = vst [vmem:[%s54 + $0x3d0] sm:$0xff] %v299
        %v301 = vld [vmem:[%s53 + $0x3d8] sm:$0xff]
        %302 = vst [vmem:[%s54 + $0x3d8] sm:$0xff] %v301
        %v303 = vld [vmem:[%s53 + $0x3e0] sm:$0xff]
        %304 = vst [vmem:[%s54 + $0x3e0] sm:$0xff] %v303
        %v305 = vld [vmem:[%s53 + $0x3e8] sm:$0xff]
        %306 = vst [vmem:[%s54 + $0x3e8] sm:$0xff] %v305
        %v307 = vld [vmem:[%s53 + $0x3f0] sm:$0xff]
        %308 = vst [vmem:[%s54 + $0x3f0] sm:$0xff] %v307
        %v309 = vld [vmem:[%s53 + $0x3f8] sm:$0xff]
        %310 = vst [vmem:[%s54 + $0x3f8] sm:$0xff] %v309
        %v311 = vld [vmem:[%s53 + $0x400] sm:$0xff]
        %312 = vst [vmem:[%s54 + $0x400] sm:$0xff] %v311
        %v313 = vld [vmem:[%s53 + $0x408] sm:$0xff]
        %314 = vst [vmem:[%s54 + $0x408] sm:$0xff] %v313
        %v315 = vld [vmem:[%s53 + $0x410] sm:$0xff]
        %316 = vst [vmem:[%s54 + $0x410] sm:$0xff] %v315
        %v317 = vld [vmem:[%s53 + $0x418] sm:$0xff]
        %318 = vst [vmem:[%s54 + $0x418] sm:$0xff] %v317
        %v319 = vld [vmem:[%s53 + $0x420] sm:$0xff]
        %320 = vst [vmem:[%s54 + $0x420] sm:$0xff] %v319
        %v321 = vld [vmem:[%s53 + $0x428] sm:$0xff]
        %322 = vst [vmem:[%s54 + $0x428] sm:$0xff] %v321
        %v323 = vld [vmem:[%s53 + $0x430] sm:$0xff]
        %324 = vst [vmem:[%s54 + $0x430] sm:$0xff] %v323
        %v325 = vld [vmem:[%s53 + $0x438] sm:$0xff]
        %326 = vst [vmem:[%s54 + $0x438] sm:$0xff] %v325
        %v327 = vld [vmem:[%s53 + $0x440] sm:$0xff]
        %328 = vst [vmem:[%s54 + $0x440] sm:$0xff] %v327
        %v329 = vld [vmem:[%s53 + $0x448] sm:$0xff]
        %330 = vst [vmem:[%s54 + $0x448] sm:$0xff] %v329
        %v331 = vld [vmem:[%s53 + $0x450] sm:$0xff]
        %332 = vst [vmem:[%s54 + $0x450] sm:$0xff] %v331
        %v333 = vld [vmem:[%s53 + $0x458] sm:$0xff]
        %334 = vst [vmem:[%s54 + $0x458] sm:$0xff] %v333
        %v335 = vld [vmem:[%s53 + $0x460] sm:$0xff]
        %336 = vst [vmem:[%s54 + $0x460] sm:$0xff] %v335
        %v337 = vld [vmem:[%s53 + $0x468] sm:$0xff]
        %338 = vst [vmem:[%s54 + $0x468] sm:$0xff] %v337
        %v339 = vld [vmem:[%s53 + $0x470] sm:$0xff]
        %340 = vst [vmem:[%s54 + $0x470] sm:$0xff] %v339
        %v341 = vld [vmem:[%s53 + $0x478] sm:$0xff]
        %342 = vst [vmem:[%s54 + $0x478] sm:$0xff] %v341
        %v343 = vld [vmem:[%s53 + $0x480] sm:$0xff]
        %344 = vst [vmem:[%s54 + $0x480] sm:$0xff] %v343
        %v345 = vld [vmem:[%s53 + $0x488] sm:$0xff]
        %346 = vst [vmem:[%s54 + $0x488] sm:$0xff] %v345
        %v347 = vld [vmem:[%s53 + $0x490] sm:$0xff]
        %348 = vst [vmem:[%s54 + $0x490] sm:$0xff] %v347
        %v349 = vld [vmem:[%s53 + $0x498] sm:$0xff]
        %350 = vst [vmem:[%s54 + $0x498] sm:$0xff] %v349
        %v351 = vld [vmem:[%s53 + $0x4a0] sm:$0xff]
        %352 = vst [vmem:[%s54 + $0x4a0] sm:$0xff] %v351
        %v353 = vld [vmem:[%s53 + $0x4a8] sm:$0xff]
        %354 = vst [vmem:[%s54 + $0x4a8] sm:$0xff] %v353
        %v355 = vld [vmem:[%s53 + $0x4b0] sm:$0xff]
        %356 = vst [vmem:[%s54 + $0x4b0] sm:$0xff] %v355
        %v357 = vld [vmem:[%s53 + $0x4b8] sm:$0xff]
        %358 = vst [vmem:[%s54 + $0x4b8] sm:$0xff] %v357
        %v359 = vld [vmem:[%s53 + $0x4c0] sm:$0xff]
        %360 = vst [vmem:[%s54 + $0x4c0] sm:$0xff] %v359
        %v361 = vld [vmem:[%s53 + $0x4c8] sm:$0xff]
        %362 = vst [vmem:[%s54 + $0x4c8] sm:$0xff] %v361
        %v363 = vld [vmem:[%s53 + $0x4d0] sm:$0xff]
        %364 = vst [vmem:[%s54 + $0x4d0] sm:$0xff] %v363
        %v365 = vld [vmem:[%s53 + $0x4d8] sm:$0xff]
        %366 = vst [vmem:[%s54 + $0x4d8] sm:$0xff] %v365
        %v367 = vld [vmem:[%s53 + $0x4e0] sm:$0xff]
        %368 = vst [vmem:[%s54 + $0x4e0] sm:$0xff] %v367
        %v369 = vld [vmem:[%s53 + $0x4e8] sm:$0xff]
        %370 = vst [vmem:[%s54 + $0x4e8] sm:$0xff] %v369
        %v371 = vld [vmem:[%s53 + $0x4f0] sm:$0xff]
        %372 = vst [vmem:[%s54 + $0x4f0] sm:$0xff] %v371
        %v373 = vld [vmem:[%s53 + $0x4f8] sm:$0xff]
        %374 = vst [vmem:[%s54 + $0x4f8] sm:$0xff] %v373
        %v375 = vld [vmem:[%s53 + $0x500] sm:$0xff]
        %376 = vst [vmem:[%s54 + $0x500] sm:$0xff] %v375
        %v377 = vld [vmem:[%s53 + $0x508] sm:$0xff]
        %378 = vst [vmem:[%s54 + $0x508] sm:$0xff] %v377
        %v379 = vld [vmem:[%s53 + $0x510] sm:$0xff]
        %380 = vst [vmem:[%s54 + $0x510] sm:$0xff] %v379
        %v381 = vld [vmem:[%s53 + $0x518] sm:$0xff]
        %382 = vst [vmem:[%s54 + $0x518] sm:$0xff] %v381
        %v383 = vld [vmem:[%s53 + $0x520] sm:$0xff]
        %384 = vst [vmem:[%s54 + $0x520] sm:$0xff] %v383
        %v385 = vld [vmem:[%s53 + $0x528] sm:$0xff]
        %386 = vst [vmem:[%s54 + $0x528] sm:$0xff] %v385
        %v387 = vld [vmem:[%s53 + $0x530] sm:$0xff]
        %388 = vst [vmem:[%s54 + $0x530] sm:$0xff] %v387
        %v389 = vld [vmem:[%s53 + $0x538] sm:$0xff]
        %390 = vst [vmem:[%s54 + $0x538] sm:$0xff] %v389
        %v391 = vld [vmem:[%s53 + $0x540] sm:$0xff]
        %392 = vst [vmem:[%s54 + $0x540] sm:$0xff] %v391
        %v393 = vld [vmem:[%s53 + $0x548] sm:$0xff]
        %394 = vst [vmem:[%s54 + $0x548] sm:$0xff] %v393
        %v395 = vld [vmem:[%s53 + $0x550] sm:$0xff]
        %396 = vst [vmem:[%s54 + $0x550] sm:$0xff] %v395
        %v397 = vld [vmem:[%s53 + $0x558] sm:$0xff]
        %398 = vst [vmem:[%s54 + $0x558] sm:$0xff] %v397
        %v399 = vld [vmem:[%s53 + $0x560] sm:$0xff]
        %400 = vst [vmem:[%s54 + $0x560] sm:$0xff] %v399
        %v401 = vld [vmem:[%s53 + $0x568] sm:$0xff]
        %402 = vst [vmem:[%s54 + $0x568] sm:$0xff] %v401
        %v403 = vld [vmem:[%s53 + $0x570] sm:$0xff]
        %404 = vst [vmem:[%s54 + $0x570] sm:$0xff] %v403
        %v405 = vld [vmem:[%s53 + $0x578] sm:$0xff]
        %406 = vst [vmem:[%s54 + $0x578] sm:$0xff] %v405
        %v407 = vld [vmem:[%s53 + $0x580] sm:$0xff]
        %408 = vst [vmem:[%s54 + $0x580] sm:$0xff] %v407
        %v409 = vld [vmem:[%s53 + $0x588] sm:$0xff]
        %410 = vst [vmem:[%s54 + $0x588] sm:$0xff] %v409
        %v411 = vld [vmem:[%s53 + $0x590] sm:$0xff]
        %412 = vst [vmem:[%s54 + $0x590] sm:$0xff] %v411
        %v413 = vld [vmem:[%s53 + $0x598] sm:$0xff]
        %414 = vst [vmem:[%s54 + $0x598] sm:$0xff] %v413
        %v415 = vld [vmem:[%s53 + $0x5a0] sm:$0xff]
        %416 = vst [vmem:[%s54 + $0x5a0] sm:$0xff] %v415
        %v417 = vld [vmem:[%s53 + $0x5a8] sm:$0xff]
        %418 = vst [vmem:[%s54 + $0x5a8] sm:$0xff] %v417
        %v419 = vld [vmem:[%s53 + $0x5b0] sm:$0xff]
        %420 = vst [vmem:[%s54 + $0x5b0] sm:$0xff] %v419
        %v421 = vld [vmem:[%s53 + $0x5b8] sm:$0xff]
        %422 = vst [vmem:[%s54 + $0x5b8] sm:$0xff] %v421
        %v423 = vld [vmem:[%s53 + $0x5c0] sm:$0xff]
        %424 = vst [vmem:[%s54 + $0x5c0] sm:$0xff] %v423
        %v425 = vld [vmem:[%s53 + $0x5c8] sm:$0xff]
        %426 = vst [vmem:[%s54 + $0x5c8] sm:$0xff] %v425
        %v427 = vld [vmem:[%s53 + $0x5d0] sm:$0xff]
        %428 = vst [vmem:[%s54 + $0x5d0] sm:$0xff] %v427
        %v429 = vld [vmem:[%s53 + $0x5d8] sm:$0xff]
        %430 = vst [vmem:[%s54 + $0x5d8] sm:$0xff] %v429
        %v431 = vld [vmem:[%s53 + $0x5e0] sm:$0xff]
        %432 = vst [vmem:[%s54 + $0x5e0] sm:$0xff] %v431
        %v433 = vld [vmem:[%s53 + $0x5e8] sm:$0xff]
        %434 = vst [vmem:[%s54 + $0x5e8] sm:$0xff] %v433
        %v435 = vld [vmem:[%s53 + $0x5f0] sm:$0xff]
        %436 = vst [vmem:[%s54 + $0x5f0] sm:$0xff] %v435
        %v437 = vld [vmem:[%s53 + $0x5f8] sm:$0xff]
        %438 = vst [vmem:[%s54 + $0x5f8] sm:$0xff] %v437
        %v439 = vld [vmem:[%s53 + $0x600] sm:$0xff]
        %440 = vst [vmem:[%s54 + $0x600] sm:$0xff] %v439
        %v441 = vld [vmem:[%s53 + $0x608] sm:$0xff]
        %442 = vst [vmem:[%s54 + $0x608] sm:$0xff] %v441
        %v443 = vld [vmem:[%s53 + $0x610] sm:$0xff]
        %444 = vst [vmem:[%s54 + $0x610] sm:$0xff] %v443
        %v445 = vld [vmem:[%s53 + $0x618] sm:$0xff]
        %446 = vst [vmem:[%s54 + $0x618] sm:$0xff] %v445
        %v447 = vld [vmem:[%s53 + $0x620] sm:$0xff]
        %448 = vst [vmem:[%s54 + $0x620] sm:$0xff] %v447
        %v449 = vld [vmem:[%s53 + $0x628] sm:$0xff]
        %450 = vst [vmem:[%s54 + $0x628] sm:$0xff] %v449
        %v451 = vld [vmem:[%s53 + $0x630] sm:$0xff]
        %452 = vst [vmem:[%s54 + $0x630] sm:$0xff] %v451
        %v453 = vld [vmem:[%s53 + $0x638] sm:$0xff]
        %454 = vst [vmem:[%s54 + $0x638] sm:$0xff] %v453
        %v455 = vld [vmem:[%s53 + $0x640] sm:$0xff]
        %456 = vst [vmem:[%s54 + $0x640] sm:$0xff] %v455
        %v457 = vld [vmem:[%s53 + $0x648] sm:$0xff]
        %458 = vst [vmem:[%s54 + $0x648] sm:$0xff] %v457
        %v459 = vld [vmem:[%s53 + $0x650] sm:$0xff]
        %460 = vst [vmem:[%s54 + $0x650] sm:$0xff] %v459
        %v461 = vld [vmem:[%s53 + $0x658] sm:$0xff]
        %462 = vst [vmem:[%s54 + $0x658] sm:$0xff] %v461
        %v463 = vld [vmem:[%s53 + $0x660] sm:$0xff]
        %464 = vst [vmem:[%s54 + $0x660] sm:$0xff] %v463
        %v465 = vld [vmem:[%s53 + $0x668] sm:$0xff]
        %466 = vst [vmem:[%s54 + $0x668] sm:$0xff] %v465
        %v467 = vld [vmem:[%s53 + $0x670] sm:$0xff]
        %468 = vst [vmem:[%s54 + $0x670] sm:$0xff] %v467
        %v469 = vld [vmem:[%s53 + $0x678] sm:$0xff]
        %470 = vst [vmem:[%s54 + $0x678] sm:$0xff] %v469
        %v471 = vld [vmem:[%s53 + $0x680] sm:$0xff]
        %472 = vst [vmem:[%s54 + $0x680] sm:$0xff] %v471
        %v473 = vld [vmem:[%s53 + $0x688] sm:$0xff]
        %474 = vst [vmem:[%s54 + $0x688] sm:$0xff] %v473
        %v475 = vld [vmem:[%s53 + $0x690] sm:$0xff]
        %476 = vst [vmem:[%s54 + $0x690] sm:$0xff] %v475
        %v477 = vld [vmem:[%s53 + $0x698] sm:$0xff]
        %478 = vst [vmem:[%s54 + $0x698] sm:$0xff] %v477
        %v479 = vld [vmem:[%s53 + $0x6a0] sm:$0xff]
        %480 = vst [vmem:[%s54 + $0x6a0] sm:$0xff] %v479
        %v481 = vld [vmem:[%s53 + $0x6a8] sm:$0xff]
        %482 = vst [vmem:[%s54 + $0x6a8] sm:$0xff] %v481
        %v483 = vld [vmem:[%s53 + $0x6b0] sm:$0xff]
        %484 = vst [vmem:[%s54 + $0x6b0] sm:$0xff] %v483
        %v485 = vld [vmem:[%s53 + $0x6b8] sm:$0xff]
        %486 = vst [vmem:[%s54 + $0x6b8] sm:$0xff] %v485
      $region45: #{resblock_forward.1} parent=39 // loop_footer
        %s52 = sadd.s32 1, %s48
      $region46: #{resblock_forward.1} parent=39 // loop_footer_branch
        %47 = sbr.rel target = $region42
      $region47: #{resblock_forward.1} parent=39 // loop_exit
        _
    $region40: #{resblock_forward.1} parent=24 // pred_fallthru
      _
    %p487 = pneg %p43
    // Predicated region
    $region48: #{resblock_forward.1} parent=24 // pred_check
      _
    $region49: #{resblock_forward.1} parent=24 // pred_check_branch
      %489 = sbr.rel (%p43) target = $region51
    $region50: #{resblock_forward.1} parent=24 // pred_region
      %s490 = sand.u32 1728, 7
    $region51: #{resblock_forward.1} parent=24 // pred_fallthru
      _
  $region25: #{resblock_forward.1} parent=0 // pred_fallthru
    _
  // Predicated region
  $region26: #{resblock_forward.1} parent=0 // pred_check
    %p27 = pneg %p23
  $region27: #{resblock_forward.1} parent=0 // pred_check_branch
    %29 = sbr.rel (%p27) target = $region29
  $region28: #{resblock_forward.1} parent=0 // pred_region
    %s30 = sshll.u32 1, 1728
    %s31 = ssub.s32 %s30, 1
    loop: start=0, step=1, limit=1
    $region30: #{resblock_forward.1} parent=28 // loop_pre_header
      _
    $region31: #{resblock_forward.1} parent=28 // loop_header
      %s33 = sphi 0, %s37
      %p34 = scmp.ge.s32.totalorder %s33, 1
      %s38 = sphi %s5, %s5
      %s39 = sphi [#allocation2], [#allocation2]
    $region32: #{resblock_forward.1} parent=28 // loop_header_branch
      %36 = sbr.rel (%p34) target = $region36
    $region33: #{resblock_forward.1} parent=28 // loop_body
      %v40 = vld [vmem:[%s38] sm:%s31]
      %41 = vst [vmem:[%s39] sm:%s31] %v40
    $region34: #{resblock_forward.1} parent=28 // loop_footer
      %s37 = sadd.s32 1, %s33
    $region35: #{resblock_forward.1} parent=28 // loop_footer_branch
      %32 = sbr.rel target = $region31
    $region36: #{resblock_forward.1} parent=28 // loop_exit
      _
  $region29: #{resblock_forward.1} parent=0 // pred_fallthru
    _
  // Predicated region
  $region52: #{resblock_forward.1} parent=0 // pred_check
    _
  $region53: #{resblock_forward.1} parent=0 // pred_check_branch
    %493 = sbr.rel (0) target = $region55
  $region54: #{resblock_forward.1} parent=0 // pred_region
    %494 = vsyncadd [#allocation4], 27648
  $region55: #{resblock_forward.1} parent=0 // pred_fallthru
    _
  %s495 = scalar_lea.sflag [#allocation4], 1
  %p497 = scmp.lt.u32.totalorder 512, 8
  %p498 = pneg %p497
  // Predicated region
  $region56: #{resblock_forward.1} parent=0 // pred_check
    _
  $region57: #{resblock_forward.1} parent=0 // pred_check_branch
    %500 = sbr.rel (%p497) target = $region59
  $region58: #{resblock_forward.1} parent=0 // pred_region
    %s516 = sand.u32 512, 7
    %p517 = scmp.eq.s32.totalorder %s516, 0
    // Predicated region
    $region71: #{resblock_forward.1} parent=58 // pred_check
      %p518 = pneg %p517
    $region72: #{resblock_forward.1} parent=58 // pred_check_branch
      %520 = sbr.rel (%p518) target = $region74
    $region73: #{resblock_forward.1} parent=58 // pred_region
      loop: start=0, step=1, limit=1
      $region75: #{resblock_forward.1} parent=73 // loop_pre_header
        _
      $region76: #{resblock_forward.1} parent=73 // loop_header
        %s522 = sphi 0, %s526
        %p523 = scmp.ge.s32.totalorder %s522, 1
        %s527 = sphi %s6, %s6
        %s528 = sphi [#allocation3], [#allocation3]
      $region77: #{resblock_forward.1} parent=73 // loop_header_branch
        %525 = sbr.rel (%p523) target = $region81
      $region78: #{resblock_forward.1} parent=73 // loop_body
        %v529 = vld [vmem:[%s527] sm:$0xff]
        %530 = vst [vmem:[%s528] sm:$0xff] %v529
        %v531 = vld [vmem:[%s527 + $0x8] sm:$0xff]
        %532 = vst [vmem:[%s528 + $0x8] sm:$0xff] %v531
        %v533 = vld [vmem:[%s527 + $0x10] sm:$0xff]
        %534 = vst [vmem:[%s528 + $0x10] sm:$0xff] %v533
        %v535 = vld [vmem:[%s527 + $0x18] sm:$0xff]
        %536 = vst [vmem:[%s528 + $0x18] sm:$0xff] %v535
        %v537 = vld [vmem:[%s527 + $0x20] sm:$0xff]
        %538 = vst [vmem:[%s528 + $0x20] sm:$0xff] %v537
        %v539 = vld [vmem:[%s527 + $0x28] sm:$0xff]
        %540 = vst [vmem:[%s528 + $0x28] sm:$0xff] %v539
        %v541 = vld [vmem:[%s527 + $0x30] sm:$0xff]
        %542 = vst [vmem:[%s528 + $0x30] sm:$0xff] %v541
        %v543 = vld [vmem:[%s527 + $0x38] sm:$0xff]
        %544 = vst [vmem:[%s528 + $0x38] sm:$0xff] %v543
        %v545 = vld [vmem:[%s527 + $0x40] sm:$0xff]
        %546 = vst [vmem:[%s528 + $0x40] sm:$0xff] %v545
        %v547 = vld [vmem:[%s527 + $0x48] sm:$0xff]
        %548 = vst [vmem:[%s528 + $0x48] sm:$0xff] %v547
        %v549 = vld [vmem:[%s527 + $0x50] sm:$0xff]
        %550 = vst [vmem:[%s528 + $0x50] sm:$0xff] %v549
        %v551 = vld [vmem:[%s527 + $0x58] sm:$0xff]
        %552 = vst [vmem:[%s528 + $0x58] sm:$0xff] %v551
        %v553 = vld [vmem:[%s527 + $0x60] sm:$0xff]
        %554 = vst [vmem:[%s528 + $0x60] sm:$0xff] %v553
        %v555 = vld [vmem:[%s527 + $0x68] sm:$0xff]
        %556 = vst [vmem:[%s528 + $0x68] sm:$0xff] %v555
        %v557 = vld [vmem:[%s527 + $0x70] sm:$0xff]
        %558 = vst [vmem:[%s528 + $0x70] sm:$0xff] %v557
        %v559 = vld [vmem:[%s527 + $0x78] sm:$0xff]
        %560 = vst [vmem:[%s528 + $0x78] sm:$0xff] %v559
        %v561 = vld [vmem:[%s527 + $0x80] sm:$0xff]
        %562 = vst [vmem:[%s528 + $0x80] sm:$0xff] %v561
        %v563 = vld [vmem:[%s527 + $0x88] sm:$0xff]
        %564 = vst [vmem:[%s528 + $0x88] sm:$0xff] %v563
        %v565 = vld [vmem:[%s527 + $0x90] sm:$0xff]
        %566 = vst [vmem:[%s528 + $0x90] sm:$0xff] %v565
        %v567 = vld [vmem:[%s527 + $0x98] sm:$0xff]
        %568 = vst [vmem:[%s528 + $0x98] sm:$0xff] %v567
        %v569 = vld [vmem:[%s527 + $0xa0] sm:$0xff]
        %570 = vst [vmem:[%s528 + $0xa0] sm:$0xff] %v569
        %v571 = vld [vmem:[%s527 + $0xa8] sm:$0xff]
        %572 = vst [vmem:[%s528 + $0xa8] sm:$0xff] %v571
        %v573 = vld [vmem:[%s527 + $0xb0] sm:$0xff]
        %574 = vst [vmem:[%s528 + $0xb0] sm:$0xff] %v573
        %v575 = vld [vmem:[%s527 + $0xb8] sm:$0xff]
        %576 = vst [vmem:[%s528 + $0xb8] sm:$0xff] %v575
        %v577 = vld [vmem:[%s527 + $0xc0] sm:$0xff]
        %578 = vst [vmem:[%s528 + $0xc0] sm:$0xff] %v577
        %v579 = vld [vmem:[%s527 + $0xc8] sm:$0xff]
        %580 = vst [vmem:[%s528 + $0xc8] sm:$0xff] %v579
        %v581 = vld [vmem:[%s527 + $0xd0] sm:$0xff]
        %582 = vst [vmem:[%s528 + $0xd0] sm:$0xff] %v581
        %v583 = vld [vmem:[%s527 + $0xd8] sm:$0xff]
        %584 = vst [vmem:[%s528 + $0xd8] sm:$0xff] %v583
        %v585 = vld [vmem:[%s527 + $0xe0] sm:$0xff]
        %586 = vst [vmem:[%s528 + $0xe0] sm:$0xff] %v585
        %v587 = vld [vmem:[%s527 + $0xe8] sm:$0xff]
        %588 = vst [vmem:[%s528 + $0xe8] sm:$0xff] %v587
        %v589 = vld [vmem:[%s527 + $0xf0] sm:$0xff]
        %590 = vst [vmem:[%s528 + $0xf0] sm:$0xff] %v589
        %v591 = vld [vmem:[%s527 + $0xf8] sm:$0xff]
        %592 = vst [vmem:[%s528 + $0xf8] sm:$0xff] %v591
        %v593 = vld [vmem:[%s527 + $0x100] sm:$0xff]
        %594 = vst [vmem:[%s528 + $0x100] sm:$0xff] %v593
        %v595 = vld [vmem:[%s527 + $0x108] sm:$0xff]
        %596 = vst [vmem:[%s528 + $0x108] sm:$0xff] %v595
        %v597 = vld [vmem:[%s527 + $0x110] sm:$0xff]
        %598 = vst [vmem:[%s528 + $0x110] sm:$0xff] %v597
        %v599 = vld [vmem:[%s527 + $0x118] sm:$0xff]
        %600 = vst [vmem:[%s528 + $0x118] sm:$0xff] %v599
        %v601 = vld [vmem:[%s527 + $0x120] sm:$0xff]
        %602 = vst [vmem:[%s528 + $0x120] sm:$0xff] %v601
        %v603 = vld [vmem:[%s527 + $0x128] sm:$0xff]
        %604 = vst [vmem:[%s528 + $0x128] sm:$0xff] %v603
        %v605 = vld [vmem:[%s527 + $0x130] sm:$0xff]
        %606 = vst [vmem:[%s528 + $0x130] sm:$0xff] %v605
        %v607 = vld [vmem:[%s527 + $0x138] sm:$0xff]
        %608 = vst [vmem:[%s528 + $0x138] sm:$0xff] %v607
        %v609 = vld [vmem:[%s527 + $0x140] sm:$0xff]
        %610 = vst [vmem:[%s528 + $0x140] sm:$0xff] %v609
        %v611 = vld [vmem:[%s527 + $0x148] sm:$0xff]
        %612 = vst [vmem:[%s528 + $0x148] sm:$0xff] %v611
        %v613 = vld [vmem:[%s527 + $0x150] sm:$0xff]
        %614 = vst [vmem:[%s528 + $0x150] sm:$0xff] %v613
        %v615 = vld [vmem:[%s527 + $0x158] sm:$0xff]
        %616 = vst [vmem:[%s528 + $0x158] sm:$0xff] %v615
        %v617 = vld [vmem:[%s527 + $0x160] sm:$0xff]
        %618 = vst [vmem:[%s528 + $0x160] sm:$0xff] %v617
        %v619 = vld [vmem:[%s527 + $0x168] sm:$0xff]
        %620 = vst [vmem:[%s528 + $0x168] sm:$0xff] %v619
        %v621 = vld [vmem:[%s527 + $0x170] sm:$0xff]
        %622 = vst [vmem:[%s528 + $0x170] sm:$0xff] %v621
        %v623 = vld [vmem:[%s527 + $0x178] sm:$0xff]
        %624 = vst [vmem:[%s528 + $0x178] sm:$0xff] %v623
        %v625 = vld [vmem:[%s527 + $0x180] sm:$0xff]
        %626 = vst [vmem:[%s528 + $0x180] sm:$0xff] %v625
        %v627 = vld [vmem:[%s527 + $0x188] sm:$0xff]
        %628 = vst [vmem:[%s528 + $0x188] sm:$0xff] %v627
        %v629 = vld [vmem:[%s527 + $0x190] sm:$0xff]
        %630 = vst [vmem:[%s528 + $0x190] sm:$0xff] %v629
        %v631 = vld [vmem:[%s527 + $0x198] sm:$0xff]
        %632 = vst [vmem:[%s528 + $0x198] sm:$0xff] %v631
        %v633 = vld [vmem:[%s527 + $0x1a0] sm:$0xff]
        %634 = vst [vmem:[%s528 + $0x1a0] sm:$0xff] %v633
        %v635 = vld [vmem:[%s527 + $0x1a8] sm:$0xff]
        %636 = vst [vmem:[%s528 + $0x1a8] sm:$0xff] %v635
        %v637 = vld [vmem:[%s527 + $0x1b0] sm:$0xff]
        %638 = vst [vmem:[%s528 + $0x1b0] sm:$0xff] %v637
        %v639 = vld [vmem:[%s527 + $0x1b8] sm:$0xff]
        %640 = vst [vmem:[%s528 + $0x1b8] sm:$0xff] %v639
        %v641 = vld [vmem:[%s527 + $0x1c0] sm:$0xff]
        %642 = vst [vmem:[%s528 + $0x1c0] sm:$0xff] %v641
        %v643 = vld [vmem:[%s527 + $0x1c8] sm:$0xff]
        %644 = vst [vmem:[%s528 + $0x1c8] sm:$0xff] %v643
        %v645 = vld [vmem:[%s527 + $0x1d0] sm:$0xff]
        %646 = vst [vmem:[%s528 + $0x1d0] sm:$0xff] %v645
        %v647 = vld [vmem:[%s527 + $0x1d8] sm:$0xff]
        %648 = vst [vmem:[%s528 + $0x1d8] sm:$0xff] %v647
        %v649 = vld [vmem:[%s527 + $0x1e0] sm:$0xff]
        %650 = vst [vmem:[%s528 + $0x1e0] sm:$0xff] %v649
        %v651 = vld [vmem:[%s527 + $0x1e8] sm:$0xff]
        %652 = vst [vmem:[%s528 + $0x1e8] sm:$0xff] %v651
        %v653 = vld [vmem:[%s527 + $0x1f0] sm:$0xff]
        %654 = vst [vmem:[%s528 + $0x1f0] sm:$0xff] %v653
        %v655 = vld [vmem:[%s527 + $0x1f8] sm:$0xff]
        %656 = vst [vmem:[%s528 + $0x1f8] sm:$0xff] %v655
      $region79: #{resblock_forward.1} parent=73 // loop_footer
        %s526 = sadd.s32 1, %s522
      $region80: #{resblock_forward.1} parent=73 // loop_footer_branch
        %521 = sbr.rel target = $region76
      $region81: #{resblock_forward.1} parent=73 // loop_exit
        _
    $region74: #{resblock_forward.1} parent=58 // pred_fallthru
      _
    %p657 = pneg %p517
    // Predicated region
    $region82: #{resblock_forward.1} parent=58 // pred_check
      _
    $region83: #{resblock_forward.1} parent=58 // pred_check_branch
      %659 = sbr.rel (%p517) target = $region85
    $region84: #{resblock_forward.1} parent=58 // pred_region
      %s660 = sand.u32 512, 7
    $region85: #{resblock_forward.1} parent=58 // pred_fallthru
      _
  $region59: #{resblock_forward.1} parent=0 // pred_fallthru
    _
  // Predicated region
  $region60: #{resblock_forward.1} parent=0 // pred_check
    %p501 = pneg %p497
  $region61: #{resblock_forward.1} parent=0 // pred_check_branch
    %503 = sbr.rel (%p501) target = $region63
  $region62: #{resblock_forward.1} parent=0 // pred_region
    %s504 = sshll.u32 1, 512
    %s505 = ssub.s32 %s504, 1
    loop: start=0, step=1, limit=1
    $region64: #{resblock_forward.1} parent=62 // loop_pre_header
      _
    $region65: #{resblock_forward.1} parent=62 // loop_header
      %s507 = sphi 0, %s511
      %p508 = scmp.ge.s32.totalorder %s507, 1
      %s512 = sphi %s6, %s6
      %s513 = sphi [#allocation3], [#allocation3]
    $region66: #{resblock_forward.1} parent=62 // loop_header_branch
      %510 = sbr.rel (%p508) target = $region70
    $region67: #{resblock_forward.1} parent=62 // loop_body
      %v514 = vld [vmem:[%s512] sm:%s505]
      %515 = vst [vmem:[%s513] sm:%s505] %v514
    $region68: #{resblock_forward.1} parent=62 // loop_footer
      %s511 = sadd.s32 1, %s507
    $region69: #{resblock_forward.1} parent=62 // loop_footer_branch
      %506 = sbr.rel target = $region65
    $region70: #{resblock_forward.1} parent=62 // loop_exit
      _
  $region63: #{resblock_forward.1} parent=0 // pred_fallthru
    _
  // Predicated region
  $region86: #{resblock_forward.1} parent=0 // pred_check
    _
  $region87: #{resblock_forward.1} parent=0 // pred_check_branch
    %663 = sbr.rel (0) target = $region89
  $region88: #{resblock_forward.1} parent=0 // pred_region
    %664 = vsyncadd %s495, 8192
  $region89: #{resblock_forward.1} parent=0 // pred_fallthru
    _
  %v665 = vld [vmem:[%s0] sm:$0xff]
  %v666 = vld [vmem:[%s0 + $0x8] sm:$0xff]
  %v667 = vld [vmem:[%s0 + $0x10] sm:$0xff]
  %v668 = vld [vmem:[%s0 + $0x18] sm:$0xff]
  %v669 = vld [vmem:[%s0 + $0x20] sm:$0xff]
  %v670 = vld [vmem:[%s0 + $0x28] sm:$0xff]
  %v671 = vld [vmem:[%s0 + $0x30] sm:$0xff]
  %v672 = vld [vmem:[%s0 + $0x38] sm:$0xff]
  %v673 = vld [vmem:[%s0 + $0x40] sm:$0xff]
  %v674 = vld [vmem:[%s0 + $0x48] sm:$0xff]
  %v675 = vld [vmem:[%s0 + $0x50] sm:$0x3]
  %v676 = vld [vmem:[%s0 + $0x58] sm:$0x3]
  %v677 = vld [vmem:[%s0 + $0x60] sm:$0x3]
  %v678 = vld [vmem:[%s0 + $0x68] sm:$0x3]
  %v679 = vld [vmem:[%s0 + $0x70] sm:$0x3]
  %v680 = vadd.f32 %v665, %v670
  %vm681 = vcmask 1041408
  %v682 = vsel %vm681, %v675, 0.0
  %v683 = vadd.f32 %v680, %v682
  %v684 = vrot.slane %v683, 4
  %v685 = vadd.f32 %v683, %v684
  %v686 = vrot.slane %v685, 2
  %v687 = vadd.f32 %v685, %v686
  %v688 = vrot.slane %v687, 1
  %v689 = vadd.f32 %v687, %v688
  %v690 = vadd.f32 %v666, %v671
  %v691 = vsel %vm681, %v676, 0.0
  %v692 = vadd.f32 %v690, %v691
  %v693 = vrot.slane %v692, 4
  %v694 = vadd.f32 %v692, %v693
  %v695 = vrot.slane %v694, 2
  %v696 = vadd.f32 %v694, %v695
  %v697 = vrot.slane %v696, 1
  %v698 = vadd.f32 %v696, %v697
  %v699 = vadd.f32 %v667, %v672
  %v700 = vsel %vm681, %v677, 0.0
  %v701 = vadd.f32 %v699, %v700
  %v702 = vrot.slane %v701, 4
  %v703 = vadd.f32 %v701, %v702
  %v704 = vrot.slane %v703, 2
  %v705 = vadd.f32 %v703, %v704
  %v706 = vrot.slane %v705, 1
  %v707 = vadd.f32 %v705, %v706
  %v708 = vadd.f32 %v668, %v673
  %v709 = vsel %vm681, %v678, 0.0
  %v710 = vadd.f32 %v708, %v709
  %v711 = vrot.slane %v710, 4
  %v712 = vadd.f32 %v710, %v711
  %v713 = vrot.slane %v712, 2
  %v714 = vadd.f32 %v712, %v713
  %v715 = vrot.slane %v714, 1
  %v716 = vadd.f32 %v714, %v715
  %vm717 = vcmask 523264
  %v718 = vsel %vm717, %v669, 0.0
  %v719 = vsel %vm717, %v674, 0.0
  %v720 = vadd.f32 %v718, %v719
  %vm721 = vcmask 517120
  %v722 = vsel %vm721, %v679, 0.0
  %v723 = vadd.f32 %v720, %v722
  %v724 = vrot.slane %v723, 4
  %v725 = vadd.f32 %v723, %v724
  %v726 = vrot.slane %v725, 2
  %v727 = vadd.f32 %v725, %v726
  %v728 = vrot.slane %v727, 1
  %v729 = vadd.f32 %v727, %v728
  %v730 = vadd.f32 %v689, 0.0
  %v731 = vadd.f32 %v698, 0.0
  %v732 = vadd.f32 %v707, 0.0
  %v733 = vadd.f32 %v716, 0.0
  %v734 = vadd.f32 %v729, 0.0
  %s735 = scalar_lea.vmem %s0, 120
  %v736 = vld [vmem:[%s735] sm:$0xff]
  %v737 = vld [vmem:[%s735 + $0x8] sm:$0xff]
  %v738 = vld [vmem:[%s735 + $0x10] sm:$0xff]
  %v739 = vld [vmem:[%s735 + $0x18] sm:$0xff]
  %v740 = vld [vmem:[%s735 + $0x20] sm:$0xff]
  %v741 = vld [vmem:[%s735 + $0x28] sm:$0xff]
  %v742 = vld [vmem:[%s735 + $0x30] sm:$0xff]
  %v743 = vld [vmem:[%s735 + $0x38] sm:$0xff]
  %v744 = vld [vmem:[%s735 + $0x40] sm:$0xff]
  %v745 = vld [vmem:[%s735 + $0x48] sm:$0xff]
  %v746 = vld [vmem:[%s735 + $0x50] sm:$0x3]
  %v747 = vld [vmem:[%s735 + $0x58] sm:$0x3]
  %v748 = vld [vmem:[%s735 + $0x60] sm:$0x3]
  %v749 = vld [vmem:[%s735 + $0x68] sm:$0x3]
  %v750 = vld [vmem:[%s735 + $0x70] sm:$0x3]
  %v751 = vadd.f32 %v736, %v741
  %v752 = vsel %vm681, %v746, 0.0
  %v753 = vadd.f32 %v751, %v752
  %v754 = vrot.slane %v753, 4
  %v755 = vadd.f32 %v753, %v754
  %v756 = vrot.slane %v755, 2
  %v757 = vadd.f32 %v755, %v756
  %v758 = vrot.slane %v757, 1
  %v759 = vadd.f32 %v757, %v758
  %v760 = vadd.f32 %v737, %v742
  %v761 = vsel %vm681, %v747, 0.0
  %v762 = vadd.f32 %v760, %v761
  %v763 = vrot.slane %v762, 4
  %v764 = vadd.f32 %v762, %v763
  %v765 = vrot.slane %v764, 2
  %v766 = vadd.f32 %v764, %v765
  %v767 = vrot.slane %v766, 1
  %v768 = vadd.f32 %v766, %v767
  %v769 = vadd.f32 %v738, %v743
  %v770 = vsel %vm681, %v748, 0.0
  %v771 = vadd.f32 %v769, %v770
  %v772 = vrot.slane %v771, 4
  %v773 = vadd.f32 %v771, %v772
  %v774 = vrot.slane %v773, 2
  %v775 = vadd.f32 %v773, %v774
  %v776 = vrot.slane %v775, 1
  %v777 = vadd.f32 %v775, %v776
  %v778 = vadd.f32 %v739, %v744
  %v779 = vsel %vm681, %v749, 0.0
  %v780 = vadd.f32 %v778, %v779
  %v781 = vrot.slane %v780, 4
  %v782 = vadd.f32 %v780, %v781
  %v783 = vrot.slane %v782, 2
  %v784 = vadd.f32 %v782, %v783
  %v785 = vrot.slane %v784, 1
  %v786 = vadd.f32 %v784, %v785
  %v787 = vsel %vm717, %v740, 0.0
  %v788 = vsel %vm717, %v745, 0.0
  %v789 = vadd.f32 %v787, %v788
  %v790 = vsel %vm721, %v750, 0.0
  %v791 = vadd.f32 %v789, %v790
  %v792 = vrot.slane %v791, 4
  %v793 = vadd.f32 %v791, %v792
  %v794 = vrot.slane %v793, 2
  %v795 = vadd.f32 %v793, %v794
  %v796 = vrot.slane %v795, 1
  %v797 = vadd.f32 %v795, %v796
  %v798 = vadd.f32 %v730, %v759
  %v799 = vadd.f32 %v731, %v768
  %v800 = vadd.f32 %v732, %v777
  %v801 = vadd.f32 %v733, %v786
  %v802 = vadd.f32 %v734, %v797
  %806 = vrot.lane.b32.xlu0 %v800, 96
  %v807 = vpop.permute.xlu0 %806
  %808 = vrot.lane.b32.xlu0 %v801, 96
  %v809 = vpop.permute.xlu0 %808
  %810 = vrot.lane.b32.xlu0 %v802, 96
  %v811 = vpop.permute.xlu0 %810
  %vm812 = vcmask 785408
  %v813 = vsel %vm812, %v807, %v809
  %v814 = vsel %vm812, %v809, %v811
  %v818 = vadd.f32 %v798, %v813
  %v819 = vadd.f32 %v799, %v814
  %v820 = vadd.f32 %v800, %v811
  %v821 = vadd.f32 %v818, %v819
  %823 = vrot.lane.b32.xlu0 %v821, 64
  %v824 = vpop.permute.xlu0 %823
  %v826 = vadd.f32 %v821, %v824
  %828 = vrot.lane.b32.xlu0 %v826, 96
  %v829 = vpop.permute.xlu0 %828
  %v831 = vadd.f32 %v826, %v829
  %v832 = vadd.f32 %v831, %v820
  %v833 = vrcp.pop 648.0
  %v834 = vmul.f32 %v832, %v833
  %836 = vrot.lane.b32.xlu0 %v834, 32
  %v837 = vpop.permute.xlu0 %836
  %vm839 = vcmask 261120
  %v840 = vsel %vm839, %v834, %v837
  %842 = vrot.lane.b32.xlu0 %v840, 64
  %v843 = vpop.permute.xlu0 %842
  %v845 = vsel %vm717, %v840, %v843
  %v846 = vlaneseq
  %v847 = vshrl.u32 %v846, 7
  %v848 = vsub.s32 0, %v847
  %v849 = vrot.slane %v845, %v848
  %v850 = vsub.f32 %v665, %v849
  %v851 = vsub.f32 %v666, %v849
  %v852 = vsub.f32 %v667, %v849
  %v853 = vsub.f32 %v668, %v849
  %v854 = vsub.f32 %v669, %v849
  %v855 = vsub.f32 %v670, %v849
  %v856 = vsub.f32 %v671, %v849
  %v857 = vsub.f32 %v672, %v849
  %v858 = vsub.f32 %v673, %v849
  %v859 = vsub.f32 %v674, %v849
  %v860 = vsub.f32 %v675, %v849
  %v861 = vsub.f32 %v676, %v849
  %v862 = vsub.f32 %v677, %v849
  %v863 = vsub.f32 %v678, %v849
  %v864 = vsub.f32 %v679, %v849
  %v865 = vmul.f32 %v850, %v850
  %v866 = vmul.f32 %v851, %v851
  %v867 = vmul.f32 %v852, %v852
  %v868 = vmul.f32 %v853, %v853
  %v869 = vmul.f32 %v854, %v854
  %v870 = vmul.f32 %v855, %v855
  %v871 = vmul.f32 %v856, %v856
  %v872 = vmul.f32 %v857, %v857
  %v873 = vmul.f32 %v858, %v858
  %v874 = vmul.f32 %v859, %v859
  %v875 = vmul.f32 %v860, %v860
  %v876 = vmul.f32 %v861, %v861
  %v877 = vmul.f32 %v862, %v862
  %v878 = vmul.f32 %v863, %v863
  %v879 = vmul.f32 %v864, %v864
  %v880 = vadd.f32 %v865, %v870
  %v881 = vsel %vm681, %v875, 0.0
  %v882 = vadd.f32 %v880, %v881
  %v883 = vrot.slane %v882, 4
  %v884 = vadd.f32 %v882, %v883
  %v885 = vrot.slane %v884, 2
  %v886 = vadd.f32 %v884, %v885
  %v887 = vrot.slane %v886, 1
  %v888 = vadd.f32 %v886, %v887
  %v889 = vadd.f32 %v866, %v871
  %v890 = vsel %vm681, %v876, 0.0
  %v891 = vadd.f32 %v889, %v890
  %v892 = vrot.slane %v891, 4
  %v893 = vadd.f32 %v891, %v892
  %v894 = vrot.slane %v893, 2
  %v895 = vadd.f32 %v893, %v894
  %v896 = vrot.slane %v895, 1
  %v897 = vadd.f32 %v895, %v896
  %v898 = vadd.f32 %v867, %v872
  %v899 = vsel %vm681, %v877, 0.0
  %v900 = vadd.f32 %v898, %v899
  %v901 = vrot.slane %v900, 4
  %v902 = vadd.f32 %v900, %v901
  %v903 = vrot.slane %v902, 2
  %v904 = vadd.f32 %v902, %v903
  %v905 = vrot.slane %v904, 1
  %v906 = vadd.f32 %v904, %v905
  %v907 = vadd.f32 %v868, %v873
  %v908 = vsel %vm681, %v878, 0.0
  %v909 = vadd.f32 %v907, %v908
  %v910 = vrot.slane %v909, 4
  %v911 = vadd.f32 %v909, %v910
  %v912 = vrot.slane %v911, 2
  %v913 = vadd.f32 %v911, %v912
  %v914 = vrot.slane %v913, 1
  %v915 = vadd.f32 %v913, %v914
  %v916 = vsel %vm717, %v869, 0.0
  %v917 = vsel %vm717, %v874, 0.0
  %v918 = vadd.f32 %v916, %v917
  %v919 = vsel %vm721, %v879, 0.0
  %v920 = vadd.f32 %v918, %v919
  %v921 = vrot.slane %v920, 4
  %v922 = vadd.f32 %v920, %v921
  %v923 = vrot.slane %v922, 2
  %v924 = vadd.f32 %v922, %v923
  %v925 = vrot.slane %v924, 1
  %v926 = vadd.f32 %v924, %v925
  %v927 = vadd.f32 %v888, 0.0
  %v928 = vadd.f32 %v897, 0.0
  %v929 = vadd.f32 %v906, 0.0
  %v930 = vadd.f32 %v915, 0.0
  %v931 = vadd.f32 %v926, 0.0
  %v932 = vsub.f32 %v736, %v849
  %v933 = vsub.f32 %v737, %v849
  %v934 = vsub.f32 %v738, %v849
  %v935 = vsub.f32 %v739, %v849
  %v936 = vsub.f32 %v740, %v849
  %v937 = vsub.f32 %v741, %v849
  %v938 = vsub.f32 %v742, %v849
  %v939 = vsub.f32 %v743, %v849
  %v940 = vsub.f32 %v744, %v849
  %v941 = vsub.f32 %v745, %v849
  %v942 = vsub.f32 %v746, %v849
  %v943 = vsub.f32 %v747, %v849
  %v944 = vsub.f32 %v748, %v849
  %v945 = vsub.f32 %v749, %v849
  %v946 = vsub.f32 %v750, %v849
  %v947 = vmul.f32 %v932, %v932
  %v948 = vmul.f32 %v933, %v933
  %v949 = vmul.f32 %v934, %v934
  %v950 = vmul.f32 %v935, %v935
  %v951 = vmul.f32 %v936, %v936
  %v952 = vmul.f32 %v937, %v937
  %v953 = vmul.f32 %v938, %v938
  %v954 = vmul.f32 %v939, %v939
  %v955 = vmul.f32 %v940, %v940
  %v956 = vmul.f32 %v941, %v941
  %v957 = vmul.f32 %v942, %v942
  %v958 = vmul.f32 %v943, %v943
  %v959 = vmul.f32 %v944, %v944
  %v960 = vmul.f32 %v945, %v945
  %v961 = vmul.f32 %v946, %v946
  %v962 = vadd.f32 %v947, %v952
  %v963 = vsel %vm681, %v957, 0.0
  %v964 = vadd.f32 %v962, %v963
  %v965 = vrot.slane %v964, 4
  %v966 = vadd.f32 %v964, %v965
  %v967 = vrot.slane %v966, 2
  %v968 = vadd.f32 %v966, %v967
  %v969 = vrot.slane %v968, 1
  %v970 = vadd.f32 %v968, %v969
  %v971 = vadd.f32 %v948, %v953
  %v972 = vsel %vm681, %v958, 0.0
  %v973 = vadd.f32 %v971, %v972
  %v974 = vrot.slane %v973, 4
  %v975 = vadd.f32 %v973, %v974
  %v976 = vrot.slane %v975, 2
  %v977 = vadd.f32 %v975, %v976
  %v978 = vrot.slane %v977, 1
  %v979 = vadd.f32 %v977, %v978
  %v980 = vadd.f32 %v949, %v954
  %v981 = vsel %vm681, %v959, 0.0
  %v982 = vadd.f32 %v980, %v981
  %v983 = vrot.slane %v982, 4
  %v984 = vadd.f32 %v982, %v983
  %v985 = vrot.slane %v984, 2
  %v986 = vadd.f32 %v984, %v985
  %v987 = vrot.slane %v986, 1
  %v988 = vadd.f32 %v986, %v987
  %v989 = vadd.f32 %v950, %v955
  %v990 = vsel %vm681, %v960, 0.0
  %v991 = vadd.f32 %v989, %v990
  %v992 = vrot.slane %v991, 4
  %v993 = vadd.f32 %v991, %v992
  %v994 = vrot.slane %v993, 2
  %v995 = vadd.f32 %v993, %v994
  %v996 = vrot.slane %v995, 1
  %v997 = vadd.f32 %v995, %v996
  %v998 = vsel %vm717, %v951, 0.0
  %v999 = vsel %vm717, %v956, 0.0
  %v1000 = vadd.f32 %v998, %v999
  %v1001 = vsel %vm721, %v961, 0.0
  %v1002 = vadd.f32 %v1000, %v1001
  %v1003 = vrot.slane %v1002, 4
  %v1004 = vadd.f32 %v1002, %v1003
  %v1005 = vrot.slane %v1004, 2
  %v1006 = vadd.f32 %v1004, %v1005
  %v1007 = vrot.slane %v1006, 1
  %v1008 = vadd.f32 %v1006, %v1007
  %v1009 = vadd.f32 %v927, %v970
  %v1010 = vadd.f32 %v928, %v979
  %v1011 = vadd.f32 %v929, %v988
  %v1012 = vadd.f32 %v930, %v997
  %v1013 = vadd.f32 %v931, %v1008
  %1017 = vrot.lane.b32.xlu0 %v1011, 96
  %v1018 = vpop.permute.xlu0 %1017
  %1019 = vrot.lane.b32.xlu0 %v1012, 96
  %v1020 = vpop.permute.xlu0 %1019
  %1021 = vrot.lane.b32.xlu0 %v1013, 96
  %v1022 = vpop.permute.xlu0 %1021
  %v1023 = vsel %vm812, %v1018, %v1020
  %v1024 = vsel %vm812, %v1020, %v1022
  %v1028 = vadd.f32 %v1009, %v1023
  %v1029 = vadd.f32 %v1010, %v1024
  %v1030 = vadd.f32 %v1011, %v1022
  %v1031 = vadd.f32 %v1028, %v1029
  %1033 = vrot.lane.b32.xlu0 %v1031, 64
  %v1034 = vpop.permute.xlu0 %1033
  %v1036 = vadd.f32 %v1031, %v1034
  %1038 = vrot.lane.b32.xlu0 %v1036, 96
  %v1039 = vpop.permute.xlu0 %1038
  %v1041 = vadd.f32 %v1036, %v1039
  %v1042 = vadd.f32 %v1041, %v1030
  %v1043 = vmul.f32 %v1042, %v833
  %v1044 = vld [vmem:[%s1] sm:$0x1]
  %v1045 = vadd.f32 %v1043, 1e-05
  %v1046 = vrsqrt.pop %v1045
  %v1047 = vmul.f32 %v1044, %v1046
  %v1048 = vld [vmem:[%s2] sm:$0x1]
  %v1049 = vmul.f32 %v834, %v1047
  %v1050 = vsub.f32 %v1048, %v1049
  %v1052 = vlaneseq
  %v1053 = vshrl.u32 %v1052, 7
  %v1054 = vsub.s32 0, %v1053
  %v1055 = vrot.slane %v1047, %v1054
  %1056 = vrot.lane.b32.xlu0 %v1055, 32
  %v1057 = vpop.permute.xlu0 %1056
  %v1059 = vsel %vm839, %v1047, %v1057
  %1061 = vrot.lane.b32.xlu0 %v1059, 64
  %v1062 = vpop.permute.xlu0 %1061
  %v1064 = vsel %vm717, %v1059, %v1062
  %v1066 = vlaneseq
  %v1067 = vshrl.u32 %v1066, 7
  %v1068 = vsub.s32 0, %v1067
  %v1069 = vrot.slane %v1050, %v1068
  %1070 = vrot.lane.b32.xlu0 %v1069, 32
  %v1071 = vpop.permute.xlu0 %1070
  %v1073 = vsel %vm839, %v1050, %v1071
  %1075 = vrot.lane.b32.xlu0 %v1073, 64
  %v1076 = vpop.permute.xlu0 %1075
  %v1078 = vsel %vm717, %v1073, %v1076
  %s1079 = smul.u32 3, 576
  %s1080 = smul.u32 %s1079, 1
  %s1081 = sshll.u32 %s1080, 4
  %1082 = dma.done [#allocation4], %s1081
  %v1083 = vld [vmem:[%s0] sm:$0xff]
  %v1084 = vld [vmem:[%s0 + $0x8] sm:$0xff]
  %v1085 = vld [vmem:[%s0 + $0x10] sm:$0xff]
  %v1086 = vld [vmem:[%s0 + $0x18] sm:$0xff]
  %v1087 = vld [vmem:[%s0 + $0x20] sm:$0xff]
  %v1088 = vld [vmem:[%s0 + $0x28] sm:$0xff]
  %v1089 = vld [vmem:[%s0 + $0x30] sm:$0xff]
  %v1090 = vld [vmem:[%s0 + $0x38] sm:$0xff]
  %v1091 = vld [vmem:[%s0 + $0x40] sm:$0xff]
  %v1092 = vld [vmem:[%s0 + $0x48] sm:$0xff]
  %v1093 = vld [vmem:[%s0 + $0x78] sm:$0xff]
  %v1094 = vld [vmem:[%s0 + $0x80] sm:$0xff]
  %v1095 = vld [vmem:[%s0 + $0x88] sm:$0xff]
  %v1096 = vld [vmem:[%s0 + $0x90] sm:$0xff]
  %v1097 = vld [vmem:[%s0 + $0x98] sm:$0xff]
  %v1098 = vld [vmem:[%s0 + $0xa0] sm:$0xff]
  %v1099 = vld [vmem:[%s0 + $0xa8] sm:$0xff]
  %v1100 = vld [vmem:[%s0 + $0xb0] sm:$0xff]
  %v1101 = vld [vmem:[%s0 + $0xb8] sm:$0xff]
  %v1102 = vld [vmem:[%s0 + $0xc0] sm:$0xff]
  %v1103 = vlaneseq
  %v1104 = vshrl.u32 %v1103, 7
  %v1105 = vsub.s32 0, %v1104
  %v1106 = vrot.slane %v1064, %v1105
  %v1107 = vmul.f32 %v1083, %v1106
  %v1108 = vmul.f32 %v1084, %v1106
  %v1109 = vmul.f32 %v1085, %v1106
  %v1110 = vmul.f32 %v1086, %v1106
  %v1111 = vmul.f32 %v1087, %v1106
  %v1112 = vmul.f32 %v1088, %v1106
  %v1113 = vmul.f32 %v1089, %v1106
  %v1114 = vmul.f32 %v1090, %v1106
  %v1115 = vmul.f32 %v1091, %v1106
  %v1116 = vmul.f32 %v1092, %v1106
  %v1117 = vmul.f32 %v1093, %v1106
  %v1118 = vmul.f32 %v1094, %v1106
  %v1119 = vmul.f32 %v1095, %v1106
  %v1120 = vmul.f32 %v1096, %v1106
  %v1121 = vmul.f32 %v1097, %v1106
  %v1122 = vmul.f32 %v1098, %v1106
  %v1123 = vmul.f32 %v1099, %v1106
  %v1124 = vmul.f32 %v1100, %v1106
  %v1125 = vmul.f32 %v1101, %v1106
  %v1126 = vmul.f32 %v1102, %v1106
  %v1127 = vlaneseq
  %v1128 = vshrl.u32 %v1127, 7
  %v1129 = vsub.s32 0, %v1128
  %v1130 = vrot.slane %v1078, %v1129
  %v1131 = vadd.f32 %v1107, %v1130
  %v1132 = vadd.f32 %v1108, %v1130
  %v1133 = vadd.f32 %v1109, %v1130
  %v1134 = vadd.f32 %v1110, %v1130
  %v1135 = vadd.f32 %v1111, %v1130
  %v1136 = vadd.f32 %v1112, %v1130
  %v1137 = vadd.f32 %v1113, %v1130
  %v1138 = vadd.f32 %v1114, %v1130
  %v1139 = vadd.f32 %v1115, %v1130
  %v1140 = vadd.f32 %v1116, %v1130
  %v1141 = vadd.f32 %v1117, %v1130
  %v1142 = vadd.f32 %v1118, %v1130
  %v1143 = vadd.f32 %v1119, %v1130
  %v1144 = vadd.f32 %v1120, %v1130
  %v1145 = vadd.f32 %v1121, %v1130
  %v1146 = vadd.f32 %v1122, %v1130
  %v1147 = vadd.f32 %v1123, %v1130
  %v1148 = vadd.f32 %v1124, %v1130
  %v1149 = vadd.f32 %v1125, %v1130
  %v1150 = vadd.f32 %v1126, %v1130
  %v1151 = vmax.f32 %v1131, 0.0
  %v1152 = vmax.f32 %v1132, 0.0
  %v1153 = vmax.f32 %v1133, 0.0
  %v1154 = vmax.f32 %v1134, 0.0
  %v1155 = vmax.f32 %v1135, 0.0
  %v1156 = vmax.f32 %v1136, 0.0
  %v1157 = vmax.f32 %v1137, 0.0
  %v1158 = vmax.f32 %v1138, 0.0
  %v1159 = vmax.f32 %v1139, 0.0
  %v1160 = vmax.f32 %v1140, 0.0
  %v1161 = vmax.f32 %v1141, 0.0
  %v1162 = vmax.f32 %v1142, 0.0
  %v1163 = vmax.f32 %v1143, 0.0
  %v1164 = vmax.f32 %v1144, 0.0
  %v1165 = vmax.f32 %v1145, 0.0
  %v1166 = vmax.f32 %v1146, 0.0
  %v1167 = vmax.f32 %v1147, 0.0
  %v1168 = vmax.f32 %v1148, 0.0
  %v1169 = vmax.f32 %v1149, 0.0
  %v1170 = vmax.f32 %v1150, 0.0
  %v1171 = vld [vmem:[#allocation2] sm:$0xff]
  %v1172 = vld [vmem:[#allocation2 + $0x8] sm:$0xff]
  %v1173 = vld [vmem:[#allocation2 + $0x10] sm:$0xff]
  %v1174 = vld [vmem:[#allocation2 + $0x18] sm:$0xff]
  %v1175 = vld [vmem:[#allocation2 + $0x20] sm:$0xff]
  %v1176 = vld [vmem:[#allocation2 + $0x28] sm:$0xff]
  %v1177 = vld [vmem:[#allocation2 + $0x30] sm:$0xff]
  %v1178 = vld [vmem:[#allocation2 + $0x38] sm:$0xff]
  %v1179 = vld [vmem:[#allocation2 + $0x40] sm:$0xff]
  %v1180 = vld [vmem:[#allocation2 + $0x48] sm:$0xff]
  %v1181 = vld [vmem:[#allocation2 + $0x50] sm:$0xff]
  %v1182 = vld [vmem:[#allocation2 + $0x58] sm:$0xff]
  %v1183 = vld [vmem:[#allocation2 + $0x60] sm:$0xff]
  %v1184 = vld [vmem:[#allocation2 + $0x68] sm:$0xff]
  %v1185 = vld [vmem:[#allocation2 + $0x70] sm:$0xff]
  %v1186 = vld [vmem:[#allocation2 + $0x78] sm:$0xff]
  %v1187 = vld [vmem:[#allocation2 + $0x80] sm:$0xff]
  %v1188 = vld [vmem:[#allocation2 + $0x88] sm:$0xff]
  %v1189 = vld [vmem:[#allocation2 + $0x90] sm:$0xff]
  %v1190 = vld [vmem:[#allocation2 + $0x98] sm:$0xff]
  %v1191 = vld [vmem:[#allocation2 + $0xa0] sm:$0xff]
  %v1192 = vld [vmem:[#allocation2 + $0xa8] sm:$0xff]
  %v1193 = vld [vmem:[#allocation2 + $0xb0] sm:$0xff]
  %v1194 = vld [vmem:[#allocation2 + $0xb8] sm:$0xff]
  %v1195 = vld [vmem:[#allocation2 + $0xc0] sm:$0xff]
  %v1196 = vld [vmem:[#allocation2 + $0xc8] sm:$0xff]
  %v1197 = vld [vmem:[#allocation2 + $0xd0] sm:$0xff]
  %v1198 = vld [vmem:[#allocation2 + $0xd8] sm:$0xff]
  %v1199 = vld [vmem:[#allocation2 + $0xe0] sm:$0xff]
  %v1200 = vld [vmem:[#allocation2 + $0xe8] sm:$0xff]
  %v1201 = vld [vmem:[#allocation2 + $0xf0] sm:$0xff]
  %v1202 = vld [vmem:[#allocation2 + $0xf8] sm:$0xff]
  %v1203 = vld [vmem:[#allocation2 + $0x100] sm:$0xff]
  %v1204 = vld [vmem:[#allocation2 + $0x108] sm:$0xff]
  %v1205 = vld [vmem:[#allocation2 + $0x110] sm:$0xff]
  %v1206 = vld [vmem:[#allocation2 + $0x118] sm:$0xff]
  %v1207 = vld [vmem:[#allocation2 + $0x120] sm:$0xff]
  %v1208 = vld [vmem:[#allocation2 + $0x128] sm:$0xff]
  %v1209 = vld [vmem:[#allocation2 + $0x130] sm:$0xff]
  %v1210 = vld [vmem:[#allocation2 + $0x138] sm:$0xff]
  %v1211 = vld [vmem:[#allocation2 + $0x140] sm:$0xff]
  %v1212 = vld [vmem:[#allocation2 + $0x148] sm:$0xff]
  %v1213 = vld [vmem:[#allocation2 + $0x150] sm:$0xff]
  %v1214 = vld [vmem:[#allocation2 + $0x158] sm:$0xff]
  %v1215 = vld [vmem:[#allocation2 + $0x160] sm:$0xff]
  %v1216 = vld [vmem:[#allocation2 + $0x168] sm:$0xff]
  %v1217 = vld [vmem:[#allocation2 + $0x170] sm:$0xff]
  %v1218 = vld [vmem:[#allocation2 + $0x178] sm:$0xff]
  %v1219 = vld [vmem:[#allocation2 + $0x180] sm:$0xff]
  %v1220 = vld [vmem:[#allocation2 + $0x188] sm:$0xff]
  %v1221 = vld [vmem:[#allocation2 + $0x190] sm:$0xff]
  %v1222 = vld [vmem:[#allocation2 + $0x198] sm:$0xff]
  %v1223 = vld [vmem:[#allocation2 + $0x1a0] sm:$0xff]
  %v1224 = vld [vmem:[#allocation2 + $0x1a8] sm:$0xff]
  %v1225 = vld [vmem:[#allocation2 + $0x1b0] sm:$0xff]
  %v1226 = vld [vmem:[#allocation2 + $0x1b8] sm:$0xff]
  %v1227 = vld [vmem:[#allocation2 + $0x1c0] sm:$0xff]
  %v1228 = vld [vmem:[#allocation2 + $0x1c8] sm:$0xff]
  %v1229 = vld [vmem:[#allocation2 + $0x1d0] sm:$0xff]
  %v1230 = vld [vmem:[#allocation2 + $0x1d8] sm:$0xff]
  %v1231 = vld [vmem:[#allocation2 + $0x1e0] sm:$0xff]
  %v1232 = vld [vmem:[#allocation2 + $0x1e8] sm:$0xff]
  %v1233 = vld [vmem:[#allocation2 + $0x1f0] sm:$0xff]
  %v1234 = vld [vmem:[#allocation2 + $0x1f8] sm:$0xff]
  %v1235 = vld [vmem:[#allocation2 + $0x200] sm:$0xff]
  %v1236 = vld [vmem:[#allocation2 + $0x208] sm:$0xff]
  %v1237 = vld [vmem:[#allocation2 + $0x210] sm:$0xff]
  %v1238 = vld [vmem:[#allocation2 + $0x218] sm:$0xff]
  %v1239 = vld [vmem:[#allocation2 + $0x220] sm:$0xff]
  %v1240 = vld [vmem:[#allocation2 + $0x228] sm:$0xff]
  %v1241 = vld [vmem:[#allocation2 + $0x230] sm:$0xff]
  %v1242 = vld [vmem:[#allocation2 + $0x238] sm:$0xff]
  %v1243 = vld [vmem:[%s0] sm:$0xfe]
  %v1244 = vld [vmem:[%s0 + $0x8] sm:$0xfe]
  %v1245 = vld [vmem:[%s0 + $0x10] sm:$0xfe]
  %v1246 = vld [vmem:[%s0 + $0x18] sm:$0xfe]
  %v1247 = vld [vmem:[%s0 + $0x20] sm:$0xfe]
  %v1248 = vld [vmem:[%s0 + $0x50] sm:$0x1]
  %v1249 = vld [vmem:[%s0 + $0x58] sm:$0x1]
  %v1250 = vld [vmem:[%s0 + $0x60] sm:$0x1]
  %v1251 = vld [vmem:[%s0 + $0x68] sm:$0x1]
  %v1252 = vld [vmem:[%s0 + $0x70] sm:$0x1]
  %v1253 = vld [vmem:[%s0 + $0x78] sm:$0xfe]
  %v1254 = vld [vmem:[%s0 + $0x80] sm:$0xfe]
  %v1255 = vld [vmem:[%s0 + $0x88] sm:$0xfe]
  %v1256 = vld [vmem:[%s0 + $0x90] sm:$0xfe]
  %v1257 = vld [vmem:[%s0 + $0x98] sm:$0xfe]
  %v1258 = vld [vmem:[%s0 + $0xc8] sm:$0x1]
  %v1259 = vld [vmem:[%s0 + $0xd0] sm:$0x1]
  %v1260 = vld [vmem:[%s0 + $0xd8] sm:$0x1]
  %v1261 = vld [vmem:[%s0 + $0xe0] sm:$0x1]
  %v1262 = vld [vmem:[%s0 + $0xe8] sm:$0x1]
  %vm1293 = vcmask 1046528
  %v1294 = vrot.slane %v1243, 1
  %v1295 = vrot.slane %v1088, 1
  %v1296 = vsel %vm1293, %v1294, %v1295
  %v1297 = vrot.slane %v1244, 1
  %v1298 = vrot.slane %v1089, 1
  %v1299 = vsel %vm1293, %v1297, %v1298
  %v1300 = vrot.slane %v1245, 1
  %v1301 = vrot.slane %v1090, 1
  %v1302 = vsel %vm1293, %v1300, %v1301
  %v1303 = vrot.slane %v1246, 1
  %v1304 = vrot.slane %v1091, 1
  %v1305 = vsel %vm1293, %v1303, %v1304
  %v1306 = vrot.slane %v1247, 1
  %v1307 = vrot.slane %v1092, 1
  %v1308 = vsel %vm1293, %v1306, %v1307
  %v1309 = vrot.slane %v1248, 1
  %v1310 = vsel %vm1293, %v1295, %v1309
  %v1311 = vrot.slane %v1249, 1
  %v1312 = vsel %vm1293, %v1298, %v1311
  %v1313 = vrot.slane %v1250, 1
  %v1314 = vsel %vm1293, %v1301, %v1313
  %v1315 = vrot.slane %v1251, 1
  %v1316 = vsel %vm1293, %v1304, %v1315
  %v1317 = vrot.slane %v1252, 1
  %v1318 = vsel %vm1293, %v1307, %v1317
  %v1319 = vrot.slane %v1253, 1
  %v1320 = vrot.slane %v1098, 1
  %v1321 = vsel %vm1293, %v1319, %v1320
  %v1322 = vrot.slane %v1254, 1
  %v1323 = vrot.slane %v1099, 1
  %v1324 = vsel %vm1293, %v1322, %v1323
  %v1325 = vrot.slane %v1255, 1
  %v1326 = vrot.slane %v1100, 1
  %v1327 = vsel %vm1293, %v1325, %v1326
  %v1328 = vrot.slane %v1256, 1
  %v1329 = vrot.slane %v1101, 1
  %v1330 = vsel %vm1293, %v1328, %v1329
  %v1331 = vrot.slane %v1257, 1
  %v1332 = vrot.slane %v1102, 1
  %v1333 = vsel %vm1293, %v1331, %v1332
  %v1334 = vrot.slane %v1258, 1
  %v1335 = vsel %vm1293, %v1320, %v1334
  %v1336 = vrot.slane %v1259, 1
  %v1337 = vsel %vm1293, %v1323, %v1336
  %v1338 = vrot.slane %v1260, 1
  %v1339 = vsel %vm1293, %v1326, %v1338
  %v1340 = vrot.slane %v1261, 1
  %v1341 = vsel %vm1293, %v1329, %v1340
  %v1342 = vrot.slane %v1262, 1
  %v1343 = vsel %vm1293, %v1332, %v1342
  %v1364 = vmul.f32 %v1296, %v1106
  %v1365 = vmul.f32 %v1299, %v1106
  %v1366 = vmul.f32 %v1302, %v1106
  %v1367 = vmul.f32 %v1305, %v1106
  %v1368 = vmul.f32 %v1308, %v1106
  %v1369 = vmul.f32 %v1310, %v1106
  %v1370 = vmul.f32 %v1312, %v1106
  %v1371 = vmul.f32 %v1314, %v1106
  %v1372 = vmul.f32 %v1316, %v1106
  %v1373 = vmul.f32 %v1318, %v1106
  %v1374 = vmul.f32 %v1321, %v1106
  %v1375 = vmul.f32 %v1324, %v1106
  %v1376 = vmul.f32 %v1327, %v1106
  %v1377 = vmul.f32 %v1330, %v1106
  %v1378 = vmul.f32 %v1333, %v1106
  %v1379 = vmul.f32 %v1335, %v1106
  %v1380 = vmul.f32 %v1337, %v1106
  %v1381 = vmul.f32 %v1339, %v1106
  %v1382 = vmul.f32 %v1341, %v1106
  %v1383 = vmul.f32 %v1343, %v1106
  %v1384 = vadd.f32 %v1364, %v1130
  %v1385 = vadd.f32 %v1365, %v1130
  %v1386 = vadd.f32 %v1366, %v1130
  %v1387 = vadd.f32 %v1367, %v1130
  %v1388 = vadd.f32 %v1368, %v1130
  %v1389 = vadd.f32 %v1369, %v1130
  %v1390 = vadd.f32 %v1370, %v1130
  %v1391 = vadd.f32 %v1371, %v1130
  %v1392 = vadd.f32 %v1372, %v1130
  %v1393 = vadd.f32 %v1373, %v1130
  %v1394 = vadd.f32 %v1374, %v1130
  %v1395 = vadd.f32 %v1375, %v1130
  %v1396 = vadd.f32 %v1376, %v1130
  %v1397 = vadd.f32 %v1377, %v1130
  %v1398 = vadd.f32 %v1378, %v1130
  %v1399 = vadd.f32 %v1379, %v1130
  %v1400 = vadd.f32 %v1380, %v1130
  %v1401 = vadd.f32 %v1381, %v1130
  %v1402 = vadd.f32 %v1382, %v1130
  %v1403 = vadd.f32 %v1383, %v1130
  %v1404 = vmax.f32 %v1384, 0.0
  %v1405 = vmax.f32 %v1385, 0.0
  %v1406 = vmax.f32 %v1386, 0.0
  %v1407 = vmax.f32 %v1387, 0.0
  %v1408 = vmax.f32 %v1388, 0.0
  %v1409 = vmax.f32 %v1389, 0.0
  %v1410 = vmax.f32 %v1390, 0.0
  %v1411 = vmax.f32 %v1391, 0.0
  %v1412 = vmax.f32 %v1392, 0.0
  %v1413 = vmax.f32 %v1393, 0.0
  %v1414 = vmax.f32 %v1394, 0.0
  %v1415 = vmax.f32 %v1395, 0.0
  %v1416 = vmax.f32 %v1396, 0.0
  %v1417 = vmax.f32 %v1397, 0.0
  %v1418 = vmax.f32 %v1398, 0.0
  %v1419 = vmax.f32 %v1399, 0.0
  %v1420 = vmax.f32 %v1400, 0.0
  %v1421 = vmax.f32 %v1401, 0.0
  %v1422 = vmax.f32 %v1402, 0.0
  %v1423 = vmax.f32 %v1403, 0.0
  %s1424 = scalar_lea.vmem [#allocation2], 576
  %v1425 = vld [vmem:[%s1424] sm:$0xff]
  %v1426 = vld [vmem:[%s1424 + $0x8] sm:$0xff]
  %v1427 = vld [vmem:[%s1424 + $0x10] sm:$0xff]
  %v1428 = vld [vmem:[%s1424 + $0x18] sm:$0xff]
  %v1429 = vld [vmem:[%s1424 + $0x20] sm:$0xff]
  %v1430 = vld [vmem:[%s1424 + $0x28] sm:$0xff]
  %v1431 = vld [vmem:[%s1424 + $0x30] sm:$0xff]
  %v1432 = vld [vmem:[%s1424 + $0x38] sm:$0xff]
  %v1433 = vld [vmem:[%s1424 + $0x40] sm:$0xff]
  %v1434 = vld [vmem:[%s1424 + $0x48] sm:$0xff]
  %v1435 = vld [vmem:[%s1424 + $0x50] sm:$0xff]
  %v1436 = vld [vmem:[%s1424 + $0x58] sm:$0xff]
  %v1437 = vld [vmem:[%s1424 + $0x60] sm:$0xff]
  %v1438 = vld [vmem:[%s1424 + $0x68] sm:$0xff]
  %v1439 = vld [vmem:[%s1424 + $0x70] sm:$0xff]
  %v1440 = vld [vmem:[%s1424 + $0x78] sm:$0xff]
  %v1441 = vld [vmem:[%s1424 + $0x80] sm:$0xff]
  %v1442 = vld [vmem:[%s1424 + $0x88] sm:$0xff]
  %v1443 = vld [vmem:[%s1424 + $0x90] sm:$0xff]
  %v1444 = vld [vmem:[%s1424 + $0x98] sm:$0xff]
  %v1445 = vld [vmem:[%s1424 + $0xa0] sm:$0xff]
  %v1446 = vld [vmem:[%s1424 + $0xa8] sm:$0xff]
  %v1447 = vld [vmem:[%s1424 + $0xb0] sm:$0xff]
  %v1448 = vld [vmem:[%s1424 + $0xb8] sm:$0xff]
  %v1449 = vld [vmem:[%s1424 + $0xc0] sm:$0xff]
  %v1450 = vld [vmem:[%s1424 + $0xc8] sm:$0xff]
  %v1451 = vld [vmem:[%s1424 + $0xd0] sm:$0xff]
  %v1452 = vld [vmem:[%s1424 + $0xd8] sm:$0xff]
  %v1453 = vld [vmem:[%s1424 + $0xe0] sm:$0xff]
  %v1454 = vld [vmem:[%s1424 + $0xe8] sm:$0xff]
  %v1455 = vld [vmem:[%s1424 + $0xf0] sm:$0xff]
  %v1456 = vld [vmem:[%s1424 + $0xf8] sm:$0xff]
  %v1457 = vld [vmem:[%s1424 + $0x100] sm:$0xff]
  %v1458 = vld [vmem:[%s1424 + $0x108] sm:$0xff]
  %v1459 = vld [vmem:[%s1424 + $0x110] sm:$0xff]
  %v1460 = vld [vmem:[%s1424 + $0x118] sm:$0xff]
  %v1461 = vld [vmem:[%s1424 + $0x120] sm:$0xff]
  %v1462 = vld [vmem:[%s1424 + $0x128] sm:$0xff]
  %v1463 = vld [vmem:[%s1424 + $0x130] sm:$0xff]
  %v1464 = vld [vmem:[%s1424 + $0x138] sm:$0xff]
  %v1465 = vld [vmem:[%s1424 + $0x140] sm:$0xff]
  %v1466 = vld [vmem:[%s1424 + $0x148] sm:$0xff]
  %v1467 = vld [vmem:[%s1424 + $0x150] sm:$0xff]
  %v1468 = vld [vmem:[%s1424 + $0x158] sm:$0xff]
  %v1469 = vld [vmem:[%s1424 + $0x160] sm:$0xff]
  %v1470 = vld [vmem:[%s1424 + $0x168] sm:$0xff]
  %v1471 = vld [vmem:[%s1424 + $0x170] sm:$0xff]
  %v1472 = vld [vmem:[%s1424 + $0x178] sm:$0xff]
  %v1473 = vld [vmem:[%s1424 + $0x180] sm:$0xff]
  %v1474 = vld [vmem:[%s1424 + $0x188] sm:$0xff]
  %v1475 = vld [vmem:[%s1424 + $0x190] sm:$0xff]
  %v1476 = vld [vmem:[%s1424 + $0x198] sm:$0xff]
  %v1477 = vld [vmem:[%s1424 + $0x1a0] sm:$0xff]
  %v1478 = vld [vmem:[%s1424 + $0x1a8] sm:$0xff]
  %v1479 = vld [vmem:[%s1424 + $0x1b0] sm:$0xff]
  %v1480 = vld [vmem:[%s1424 + $0x1b8] sm:$0xff]
  %v1481 = vld [vmem:[%s1424 + $0x1c0] sm:$0xff]
  %v1482 = vld [vmem:[%s1424 + $0x1c8] sm:$0xff]
  %v1483 = vld [vmem:[%s1424 + $0x1d0] sm:$0xff]
  %v1484 = vld [vmem:[%s1424 + $0x1d8] sm:$0xff]
  %v1485 = vld [vmem:[%s1424 + $0x1e0] sm:$0xff]
  %v1486 = vld [vmem:[%s1424 + $0x1e8] sm:$0xff]
  %v1487 = vld [vmem:[%s1424 + $0x1f0] sm:$0xff]
  %v1488 = vld [vmem:[%s1424 + $0x1f8] sm:$0xff]
  %v1489 = vld [vmem:[%s1424 + $0x200] sm:$0xff]
  %v1490 = vld [vmem:[%s1424 + $0x208] sm:$0xff]
  %v1491 = vld [vmem:[%s1424 + $0x210] sm:$0xff]
  %v1492 = vld [vmem:[%s1424 + $0x218] sm:$0xff]
  %v1493 = vld [vmem:[%s1424 + $0x220] sm:$0xff]
  %v1494 = vld [vmem:[%s1424 + $0x228] sm:$0xff]
  %v1495 = vld [vmem:[%s1424 + $0x230] sm:$0xff]
  %v1496 = vld [vmem:[%s1424 + $0x238] sm:$0xff]
  %v1498 = vsel %vm717, %v1408, 0
  %v1501 = vsel %vm717, %v1413, 0
  %v1504 = vsel %vm717, %v1418, 0
  %v1507 = vsel %vm717, %v1423, 0
  %1509 = vmatprep.subr.mxu0 0.0
  %1510 = vmatpush1.msra.mxu0 %v1440
  %1511 = vmatprep.subr.mxu0 0.0
  %1512 = vmatpush1.msra.mxu0 %v1439
  %1513 = vmatprep.subr.mxu0 0.0
  %1514 = vmatpush1.msra.mxu0 %v1438
  %1515 = vmatprep.subr.mxu0 0.0
  %1516 = vmatpush1.msra.mxu0 %v1437
  %1517 = vmatprep.subr.mxu0 0.0
  %1518 = vmatpush1.msra.mxu0 %v1436
  %1519 = vmatprep.subr.mxu0 0.0
  %1520 = vmatpush1.msra.mxu0 %v1435
  %1521 = vmatprep.subr.mxu0 0.0
  %1522 = vmatpush1.msra.mxu0 %v1434
  %1523 = vmatprep.subr.mxu0 0.0
  %1524 = vmatpush1.msra.mxu0 %v1433
  %1525 = vmatprep.subr.mxu0 0.0
  %1526 = vmatpush1.msra.mxu0 %v1432
  %1527 = vmatprep.subr.mxu0 0.0
  %1528 = vmatpush1.msra.mxu0 %v1431
  %1529 = vmatprep.subr.mxu0 0.0
  %1530 = vmatpush1.msra.mxu0 %v1430
  %1531 = vmatprep.subr.mxu0 0.0
  %1532 = vmatpush1.msra.mxu0 %v1429
  %1533 = vmatprep.subr.mxu0 0.0
  %1534 = vmatpush1.msra.mxu0 %v1428
  %1535 = vmatprep.subr.mxu0 0.0
  %1536 = vmatpush1.msra.mxu0 %v1427
  %1537 = vmatprep.subr.mxu0 0.0
  %1538 = vmatpush1.msra.mxu0 %v1426
  %1539 = vmatprep.subr.mxu0 0.0
  %1540 = vmatpush1.msra.mxu0 %v1425
  %1541 = vmatprep.subr.mxu0 0.0
  %1542 = vmatpush2.msra.mxu0 %v1456
  %1543 = vmatprep.subr.mxu0 0.0
  %1544 = vmatpush2.msra.mxu0 %v1455
  %1545 = vmatprep.subr.mxu0 0.0
  %1546 = vmatpush2.msra.mxu0 %v1454
  %1547 = vmatprep.subr.mxu0 0.0
  %1548 = vmatpush2.msra.mxu0 %v1453
  %1549 = vmatprep.subr.mxu0 0.0
  %1550 = vmatpush2.msra.mxu0 %v1452
  %1551 = vmatprep.subr.mxu0 0.0
  %1552 = vmatpush2.msra.mxu0 %v1451
  %1553 = vmatprep.subr.mxu0 0.0
  %1554 = vmatpush2.msra.mxu0 %v1450
  %1555 = vmatprep.subr.mxu0 0.0
  %1556 = vmatpush2.msra.mxu0 %v1449
  %1557 = vmatprep.subr.mxu0 0.0
  %1558 = vmatpush2.msra.mxu0 %v1448
  %1559 = vmatprep.subr.mxu0 0.0
  %1560 = vmatpush2.msra.mxu0 %v1447
  %1561 = vmatprep.subr.mxu0 0.0
  %1562 = vmatpush2.msra.mxu0 %v1446
  %1563 = vmatprep.subr.mxu0 0.0
  %1564 = vmatpush2.msra.mxu0 %v1445
  %1565 = vmatprep.subr.mxu0 0.0
  %1566 = vmatpush2.msra.mxu0 %v1444
  %1567 = vmatprep.subr.mxu0 0.0
  %1568 = vmatpush2.msra.mxu0 %v1443
  %1569 = vmatprep.subr.mxu0 0.0
  %1570 = vmatpush2.msra.mxu0 %v1442
  %1571 = vmatprep.subr.mxu0 0.0
  %1572 = vmatpush2.msra.mxu0 %v1441
  %1573 = vmatprep.mubr.f32.mxu0 %v1405
  %1574 = vmatmul.mubr.f32.gmra.mxu0 %v1404
  %v1575 = vpop.f32.mrf.mxu0
  %v1576 = vadd.f32 0.0, %v1575
  %v1577 = vpop.f32.mrf.mxu0
  %1578 = vmatprep.mubr.f32.mxu0 %v1410
  %1579 = vmatmul.mubr.f32.gmra.mxu0 %v1409
  %v1580 = vpop.f32.mrf.mxu0
  %v1581 = vadd.f32 0.0, %v1580
  %v1582 = vpop.f32.mrf.mxu0
  %1583 = vmatprep.mubr.f32.mxu0 %v1415
  %1584 = vmatmul.mubr.f32.gmra.mxu0 %v1414
  %v1585 = vpop.f32.mrf.mxu0
  %v1586 = vadd.f32 0.0, %v1585
  %v1587 = vpop.f32.mrf.mxu0
  %1588 = vmatprep.mubr.f32.mxu0 %v1420
  %1589 = vmatmul.mubr.f32.gmra.mxu0 %v1419
  %v1590 = vpop.f32.mrf.mxu0
  %v1591 = vadd.f32 0.0, %v1590
  %v1592 = vpop.f32.mrf.mxu0
  %1593 = vdwg.mxu0
  %1594 = vmatprep.subr.mxu0 0.0
  %1595 = vmatpush1.msra.mxu0 %v1472
  %1596 = vmatprep.subr.mxu0 0.0
  %1597 = vmatpush1.msra.mxu0 %v1471
  %1598 = vmatprep.subr.mxu0 0.0
  %1599 = vmatpush1.msra.mxu0 %v1470
  %1600 = vmatprep.subr.mxu0 0.0
  %1601 = vmatpush1.msra.mxu0 %v1469
  %1602 = vmatprep.subr.mxu0 0.0
  %1603 = vmatpush1.msra.mxu0 %v1468
  %1604 = vmatprep.subr.mxu0 0.0
  %1605 = vmatpush1.msra.mxu0 %v1467
  %1606 = vmatprep.subr.mxu0 0.0
  %1607 = vmatpush1.msra.mxu0 %v1466
  %1608 = vmatprep.subr.mxu0 0.0
  %1609 = vmatpush1.msra.mxu0 %v1465
  %1610 = vmatprep.subr.mxu0 0.0
  %1611 = vmatpush1.msra.mxu0 %v1464
  %1612 = vmatprep.subr.mxu0 0.0
  %1613 = vmatpush1.msra.mxu0 %v1463
  %1614 = vmatprep.subr.mxu0 0.0
  %1615 = vmatpush1.msra.mxu0 %v1462
  %1616 = vmatprep.subr.mxu0 0.0
  %1617 = vmatpush1.msra.mxu0 %v1461
  %1618 = vmatprep.subr.mxu0 0.0
  %1619 = vmatpush1.msra.mxu0 %v1460
  %1620 = vmatprep.subr.mxu0 0.0
  %1621 = vmatpush1.msra.mxu0 %v1459
  %1622 = vmatprep.subr.mxu0 0.0
  %1623 = vmatpush1.msra.mxu0 %v1458
  %1624 = vmatprep.subr.mxu0 0.0
  %1625 = vmatpush1.msra.mxu0 %v1457
  %1626 = vmatprep.subr.mxu0 0.0
  %1627 = vmatpush2.msra.mxu0 %v1488
  %1628 = vmatprep.subr.mxu0 0.0
  %1629 = vmatpush2.msra.mxu0 %v1487
  %1630 = vmatprep.subr.mxu0 0.0
  %1631 = vmatpush2.msra.mxu0 %v1486
  %1632 = vmatprep.subr.mxu0 0.0
  %1633 = vmatpush2.msra.mxu0 %v1485
  %1634 = vmatprep.subr.mxu0 0.0
  %1635 = vmatpush2.msra.mxu0 %v1484
  %1636 = vmatprep.subr.mxu0 0.0
  %1637 = vmatpush2.msra.mxu0 %v1483
  %1638 = vmatprep.subr.mxu0 0.0
  %1639 = vmatpush2.msra.mxu0 %v1482
  %1640 = vmatprep.subr.mxu0 0.0
  %1641 = vmatpush2.msra.mxu0 %v1481
  %1642 = vmatprep.subr.mxu0 0.0
  %1643 = vmatpush2.msra.mxu0 %v1480
  %1644 = vmatprep.subr.mxu0 0.0
  %1645 = vmatpush2.msra.mxu0 %v1479
  %1646 = vmatprep.subr.mxu0 0.0
  %1647 = vmatpush2.msra.mxu0 %v1478
  %1648 = vmatprep.subr.mxu0 0.0
  %1649 = vmatpush2.msra.mxu0 %v1477
  %1650 = vmatprep.subr.mxu0 0.0
  %1651 = vmatpush2.msra.mxu0 %v1476
  %1652 = vmatprep.subr.mxu0 0.0
  %1653 = vmatpush2.msra.mxu0 %v1475
  %1654 = vmatprep.subr.mxu0 0.0
  %1655 = vmatpush2.msra.mxu0 %v1474
  %1656 = vmatprep.subr.mxu0 0.0
  %1657 = vmatpush2.msra.mxu0 %v1473
  %1658 = vmatprep.mubr.f32.mxu0 %v1407
  %1659 = vmatmul.mubr.f32.gmra.mxu0 %v1406
  %v1660 = vpop.f32.mrf.mxu0
  %v1661 = vadd.f32 %v1576, %v1660
  %v1662 = vpop.f32.mrf.mxu0
  %1663 = vmatprep.mubr.f32.mxu0 %v1412
  %1664 = vmatmul.mubr.f32.gmra.mxu0 %v1411
  %v1665 = vpop.f32.mrf.mxu0
  %v1666 = vadd.f32 %v1581, %v1665
  %v1667 = vpop.f32.mrf.mxu0
  %1668 = vmatprep.mubr.f32.mxu0 %v1417
  %1669 = vmatmul.mubr.f32.gmra.mxu0 %v1416
  %v1670 = vpop.f32.mrf.mxu0
  %v1671 = vadd.f32 %v1586, %v1670
  %v1672 = vpop.f32.mrf.mxu0
  %1673 = vmatprep.mubr.f32.mxu0 %v1422
  %1674 = vmatmul.mubr.f32.gmra.mxu0 %v1421
  %v1675 = vpop.f32.mrf.mxu0
  %v1676 = vadd.f32 %v1591, %v1675
  %v1677 = vpop.f32.mrf.mxu0
  %1678 = vdwg.mxu0
  %1679 = vmatprep.subr.mxu0 0.0
  %1680 = vmatpush1.msra.mxu0 0.0
  %1681 = vmatprep.subr.mxu0 0.0
  %1682 = vmatpush1.msra.mxu0 0.0
  %1683 = vmatprep.subr.mxu0 0.0
  %1684 = vmatpush1.msra.mxu0 0.0
  %1685 = vmatprep.subr.mxu0 0.0
  %1686 = vmatpush1.msra.mxu0 0.0
  %1687 = vmatprep.subr.mxu0 0.0
  %1688 = vmatpush1.msra.mxu0 0.0
  %1689 = vmatprep.subr.mxu0 0.0
  %1690 = vmatpush1.msra.mxu0 0.0
  %1691 = vmatprep.subr.mxu0 0.0
  %1692 = vmatpush1.msra.mxu0 0.0
  %1693 = vmatprep.subr.mxu0 0.0
  %1694 = vmatpush1.msra.mxu0 0.0
  %1695 = vmatprep.subr.mxu0 0.0
  %1696 = vmatpush1.msra.mxu0 %v1496
  %1697 = vmatprep.subr.mxu0 0.0
  %1698 = vmatpush1.msra.mxu0 %v1495
  %1699 = vmatprep.subr.mxu0 0.0
  %1700 = vmatpush1.msra.mxu0 %v1494
  %1701 = vmatprep.subr.mxu0 0.0
  %1702 = vmatpush1.msra.mxu0 %v1493
  %1703 = vmatprep.subr.mxu0 0.0
  %1704 = vmatpush1.msra.mxu0 %v1492
  %1705 = vmatprep.subr.mxu0 0.0
  %1706 = vmatpush1.msra.mxu0 %v1491
  %1707 = vmatprep.subr.mxu0 0.0
  %1708 = vmatpush1.msra.mxu0 %v1490
  %1709 = vmatprep.subr.mxu0 0.0
  %1710 = vmatpush1.msra.mxu0 %v1489
  %1711 = vmatprep.subr.mxu0 0.0
  %1712 = vmatpush2.msra.mxu0 0.0
  %1713 = vmatprep.subr.mxu0 0.0
  %1714 = vmatpush2.msra.mxu0 0.0
  %1715 = vmatprep.subr.mxu0 0.0
  %1716 = vmatpush2.msra.mxu0 0.0
  %1717 = vmatprep.subr.mxu0 0.0
  %1718 = vmatpush2.msra.mxu0 0.0
  %1719 = vmatprep.subr.mxu0 0.0
  %1720 = vmatpush2.msra.mxu0 0.0
  %1721 = vmatprep.subr.mxu0 0.0
  %1722 = vmatpush2.msra.mxu0 0.0
  %1723 = vmatprep.subr.mxu0 0.0
  %1724 = vmatpush2.msra.mxu0 0.0
  %1725 = vmatprep.subr.mxu0 0.0
  %1726 = vmatpush2.msra.mxu0 0.0
  %1727 = vmatprep.subr.mxu0 0.0
  %1728 = vmatpush2.msra.mxu0 0.0
  %1729 = vmatprep.subr.mxu0 0.0
  %1730 = vmatpush2.msra.mxu0 0.0
  %1731 = vmatprep.subr.mxu0 0.0
  %1732 = vmatpush2.msra.mxu0 0.0
  %1733 = vmatprep.subr.mxu0 0.0
  %1734 = vmatpush2.msra.mxu0 0.0
  %1735 = vmatprep.subr.mxu0 0.0
  %1736 = vmatpush2.msra.mxu0 0.0
  %1737 = vmatprep.subr.mxu0 0.0
  %1738 = vmatpush2.msra.mxu0 0.0
  %1739 = vmatprep.subr.mxu0 0.0
  %1740 = vmatpush2.msra.mxu0 0.0
  %1741 = vmatprep.subr.mxu0 0.0
  %1742 = vmatpush2.msra.mxu0 0.0
  %1743 = vmatprep.mubr.f32.mxu0 0.0
  %1744 = vmatmul.mubr.f32.gmra.mxu0 %v1498
  %v1745 = vpop.f32.mrf.mxu0
  %v1746 = vadd.f32 %v1661, %v1745
  %v1747 = vpop.f32.mrf.mxu0
  %1748 = vmatprep.mubr.f32.mxu0 0.0
  %1749 = vmatmul.mubr.f32.gmra.mxu0 %v1501
  %v1750 = vpop.f32.mrf.mxu0
  %v1751 = vadd.f32 %v1666, %v1750
  %v1752 = vpop.f32.mrf.mxu0
  %1753 = vmatprep.mubr.f32.mxu0 0.0
  %1754 = vmatmul.mubr.f32.gmra.mxu0 %v1504
  %v1755 = vpop.f32.mrf.mxu0
  %v1756 = vadd.f32 %v1671, %v1755
  %v1757 = vpop.f32.mrf.mxu0
  %1758 = vmatprep.mubr.f32.mxu0 0.0
  %1759 = vmatmul.mubr.f32.gmra.mxu0 %v1507
  %v1760 = vpop.f32.mrf.mxu0
  %v1761 = vadd.f32 %v1676, %v1760
  %v1762 = vpop.f32.mrf.mxu0
  %1763 = vdwg.mxu0
  %v1765 = vsel %vm717, %v1155, 0
  %v1768 = vsel %vm717, %v1160, 0
  %v1771 = vsel %vm717, %v1165, 0
  %v1774 = vsel %vm717, %v1170, 0
  %1776 = vmatprep.subr.mxu0 0.0
  %1777 = vmatpush1.msra.mxu0 %v1186
  %1778 = vmatprep.subr.mxu0 0.0
  %1779 = vmatpush1.msra.mxu0 %v1185
  %1780 = vmatprep.subr.mxu0 0.0
  %1781 = vmatpush1.msra.mxu0 %v1184
  %1782 = vmatprep.subr.mxu0 0.0
  %1783 = vmatpush1.msra.mxu0 %v1183
  %1784 = vmatprep.subr.mxu0 0.0
  %1785 = vmatpush1.msra.mxu0 %v1182
  %1786 = vmatprep.subr.mxu0 0.0
  %1787 = vmatpush1.msra.mxu0 %v1181
  %1788 = vmatprep.subr.mxu0 0.0
  %1789 = vmatpush1.msra.mxu0 %v1180
  %1790 = vmatprep.subr.mxu0 0.0
  %1791 = vmatpush1.msra.mxu0 %v1179
  %1792 = vmatprep.subr.mxu0 0.0
  %1793 = vmatpush1.msra.mxu0 %v1178
  %1794 = vmatprep.subr.mxu0 0.0
  %1795 = vmatpush1.msra.mxu0 %v1177
  %1796 = vmatprep.subr.mxu0 0.0
  %1797 = vmatpush1.msra.mxu0 %v1176
  %1798 = vmatprep.subr.mxu0 0.0
  %1799 = vmatpush1.msra.mxu0 %v1175
  %1800 = vmatprep.subr.mxu0 0.0
  %1801 = vmatpush1.msra.mxu0 %v1174
  %1802 = vmatprep.subr.mxu0 0.0
  %1803 = vmatpush1.msra.mxu0 %v1173
  %1804 = vmatprep.subr.mxu0 0.0
  %1805 = vmatpush1.msra.mxu0 %v1172
  %1806 = vmatprep.subr.mxu0 0.0
  %1807 = vmatpush1.msra.mxu0 %v1171
  %1808 = vmatprep.subr.mxu0 0.0
  %1809 = vmatpush2.msra.mxu0 %v1202
  %1810 = vmatprep.subr.mxu0 0.0
  %1811 = vmatpush2.msra.mxu0 %v1201
  %1812 = vmatprep.subr.mxu0 0.0
  %1813 = vmatpush2.msra.mxu0 %v1200
  %1814 = vmatprep.subr.mxu0 0.0
  %1815 = vmatpush2.msra.mxu0 %v1199
  %1816 = vmatprep.subr.mxu0 0.0
  %1817 = vmatpush2.msra.mxu0 %v1198
  %1818 = vmatprep.subr.mxu0 0.0
  %1819 = vmatpush2.msra.mxu0 %v1197
  %1820 = vmatprep.subr.mxu0 0.0
  %1821 = vmatpush2.msra.mxu0 %v1196
  %1822 = vmatprep.subr.mxu0 0.0
  %1823 = vmatpush2.msra.mxu0 %v1195
  %1824 = vmatprep.subr.mxu0 0.0
  %1825 = vmatpush2.msra.mxu0 %v1194
  %1826 = vmatprep.subr.mxu0 0.0
  %1827 = vmatpush2.msra.mxu0 %v1193
  %1828 = vmatprep.subr.mxu0 0.0
  %1829 = vmatpush2.msra.mxu0 %v1192
  %1830 = vmatprep.subr.mxu0 0.0
  %1831 = vmatpush2.msra.mxu0 %v1191
  %1832 = vmatprep.subr.mxu0 0.0
  %1833 = vmatpush2.msra.mxu0 %v1190
  %1834 = vmatprep.subr.mxu0 0.0
  %1835 = vmatpush2.msra.mxu0 %v1189
  %1836 = vmatprep.subr.mxu0 0.0
  %1837 = vmatpush2.msra.mxu0 %v1188
  %1838 = vmatprep.subr.mxu0 0.0
  %1839 = vmatpush2.msra.mxu0 %v1187
  %1840 = vmatprep.mubr.f32.mxu0 %v1152
  %1841 = vmatmul.mubr.f32.gmra.mxu0 %v1151
  %v1842 = vpop.f32.mrf.mxu0
  %v1843 = vadd.f32 %v1746, %v1842
  %v1844 = vpop.f32.mrf.mxu0
  %1845 = vmatprep.mubr.f32.mxu0 %v1157
  %1846 = vmatmul.mubr.f32.gmra.mxu0 %v1156
  %v1847 = vpop.f32.mrf.mxu0
  %v1848 = vadd.f32 %v1751, %v1847
  %v1849 = vpop.f32.mrf.mxu0
  %1850 = vmatprep.mubr.f32.mxu0 %v1162
  %1851 = vmatmul.mubr.f32.gmra.mxu0 %v1161
  %v1852 = vpop.f32.mrf.mxu0
  %v1853 = vadd.f32 %v1756, %v1852
  %v1854 = vpop.f32.mrf.mxu0
  %1855 = vmatprep.mubr.f32.mxu0 %v1167
  %1856 = vmatmul.mubr.f32.gmra.mxu0 %v1166
  %v1857 = vpop.f32.mrf.mxu0
  %v1858 = vadd.f32 %v1761, %v1857
  %v1859 = vpop.f32.mrf.mxu0
  %1860 = vdwg.mxu0
  %1861 = vmatprep.subr.mxu0 0.0
  %1862 = vmatpush1.msra.mxu0 %v1218
  %1863 = vmatprep.subr.mxu0 0.0
  %1864 = vmatpush1.msra.mxu0 %v1217
  %1865 = vmatprep.subr.mxu0 0.0
  %1866 = vmatpush1.msra.mxu0 %v1216
  %1867 = vmatprep.subr.mxu0 0.0
  %1868 = vmatpush1.msra.mxu0 %v1215
  %1869 = vmatprep.subr.mxu0 0.0
  %1870 = vmatpush1.msra.mxu0 %v1214
  %1871 = vmatprep.subr.mxu0 0.0
  %1872 = vmatpush1.msra.mxu0 %v1213
  %1873 = vmatprep.subr.mxu0 0.0
  %1874 = vmatpush1.msra.mxu0 %v1212
  %1875 = vmatprep.subr.mxu0 0.0
  %1876 = vmatpush1.msra.mxu0 %v1211
  %1877 = vmatprep.subr.mxu0 0.0
  %1878 = vmatpush1.msra.mxu0 %v1210
  %1879 = vmatprep.subr.mxu0 0.0
  %1880 = vmatpush1.msra.mxu0 %v1209
  %1881 = vmatprep.subr.mxu0 0.0
  %1882 = vmatpush1.msra.mxu0 %v1208
  %1883 = vmatprep.subr.mxu0 0.0
  %1884 = vmatpush1.msra.mxu0 %v1207
  %1885 = vmatprep.subr.mxu0 0.0
  %1886 = vmatpush1.msra.mxu0 %v1206
  %1887 = vmatprep.subr.mxu0 0.0
  %1888 = vmatpush1.msra.mxu0 %v1205
  %1889 = vmatprep.subr.mxu0 0.0
  %1890 = vmatpush1.msra.mxu0 %v1204
  %1891 = vmatprep.subr.mxu0 0.0
  %1892 = vmatpush1.msra.mxu0 %v1203
  %1893 = vmatprep.subr.mxu0 0.0
  %1894 = vmatpush2.msra.mxu0 %v1234
  %1895 = vmatprep.subr.mxu0 0.0
  %1896 = vmatpush2.msra.mxu0 %v1233
  %1897 = vmatprep.subr.mxu0 0.0
  %1898 = vmatpush2.msra.mxu0 %v1232
  %1899 = vmatprep.subr.mxu0 0.0
  %1900 = vmatpush2.msra.mxu0 %v1231
  %1901 = vmatprep.subr.mxu0 0.0
  %1902 = vmatpush2.msra.mxu0 %v1230
  %1903 = vmatprep.subr.mxu0 0.0
  %1904 = vmatpush2.msra.mxu0 %v1229
  %1905 = vmatprep.subr.mxu0 0.0
  %1906 = vmatpush2.msra.mxu0 %v1228
  %1907 = vmatprep.subr.mxu0 0.0
  %1908 = vmatpush2.msra.mxu0 %v1227
  %1909 = vmatprep.subr.mxu0 0.0
  %1910 = vmatpush2.msra.mxu0 %v1226
  %1911 = vmatprep.subr.mxu0 0.0
  %1912 = vmatpush2.msra.mxu0 %v1225
  %1913 = vmatprep.subr.mxu0 0.0
  %1914 = vmatpush2.msra.mxu0 %v1224
  %1915 = vmatprep.subr.mxu0 0.0
  %1916 = vmatpush2.msra.mxu0 %v1223
  %1917 = vmatprep.subr.mxu0 0.0
  %1918 = vmatpush2.msra.mxu0 %v1222
  %1919 = vmatprep.subr.mxu0 0.0
  %1920 = vmatpush2.msra.mxu0 %v1221
  %1921 = vmatprep.subr.mxu0 0.0
  %1922 = vmatpush2.msra.mxu0 %v1220
  %1923 = vmatprep.subr.mxu0 0.0
  %1924 = vmatpush2.msra.mxu0 %v1219
  %1925 = vmatprep.mubr.f32.mxu0 %v1154
  %1926 = vmatmul.mubr.f32.gmra.mxu0 %v1153
  %v1927 = vpop.f32.mrf.mxu0
  %v1928 = vadd.f32 %v1843, %v1927
  %v1929 = vpop.f32.mrf.mxu0
  %1930 = vmatprep.mubr.f32.mxu0 %v1159
  %1931 = vmatmul.mubr.f32.gmra.mxu0 %v1158
  %v1932 = vpop.f32.mrf.mxu0
  %v1933 = vadd.f32 %v1848, %v1932
  %v1934 = vpop.f32.mrf.mxu0
  %1935 = vmatprep.mubr.f32.mxu0 %v1164
  %1936 = vmatmul.mubr.f32.gmra.mxu0 %v1163
  %v1937 = vpop.f32.mrf.mxu0
  %v1938 = vadd.f32 %v1853, %v1937
  %v1939 = vpop.f32.mrf.mxu0
  %1940 = vmatprep.mubr.f32.mxu0 %v1169
  %1941 = vmatmul.mubr.f32.gmra.mxu0 %v1168
  %v1942 = vpop.f32.mrf.mxu0
  %v1943 = vadd.f32 %v1858, %v1942
  %v1944 = vpop.f32.mrf.mxu0
  %1945 = vdwg.mxu0
  %1946 = vmatprep.subr.mxu0 0.0
  %1947 = vmatpush1.msra.mxu0 0.0
  %1948 = vmatprep.subr.mxu0 0.0
  %1949 = vmatpush1.msra.mxu0 0.0
  %1950 = vmatprep.subr.mxu0 0.0
  %1951 = vmatpush1.msra.mxu0 0.0
  %1952 = vmatprep.subr.mxu0 0.0
  %1953 = vmatpush1.msra.mxu0 0.0
  %1954 = vmatprep.subr.mxu0 0.0
  %1955 = vmatpush1.msra.mxu0 0.0
  %1956 = vmatprep.subr.mxu0 0.0
  %1957 = vmatpush1.msra.mxu0 0.0
  %1958 = vmatprep.subr.mxu0 0.0
  %1959 = vmatpush1.msra.mxu0 0.0
  %1960 = vmatprep.subr.mxu0 0.0
  %1961 = vmatpush1.msra.mxu0 0.0
  %1962 = vmatprep.subr.mxu0 0.0
  %1963 = vmatpush1.msra.mxu0 %v1242
  %1964 = vmatprep.subr.mxu0 0.0
  %1965 = vmatpush1.msra.mxu0 %v1241
  %1966 = vmatprep.subr.mxu0 0.0
  %1967 = vmatpush1.msra.mxu0 %v1240
  %1968 = vmatprep.subr.mxu0 0.0
  %1969 = vmatpush1.msra.mxu0 %v1239
  %1970 = vmatprep.subr.mxu0 0.0
  %1971 = vmatpush1.msra.mxu0 %v1238
  %1972 = vmatprep.subr.mxu0 0.0
  %1973 = vmatpush1.msra.mxu0 %v1237
  %1974 = vmatprep.subr.mxu0 0.0
  %1975 = vmatpush1.msra.mxu0 %v1236
  %1976 = vmatprep.subr.mxu0 0.0
  %1977 = vmatpush1.msra.mxu0 %v1235
  %1978 = vmatprep.subr.mxu0 0.0
  %1979 = vmatpush2.msra.mxu0 0.0
  %1980 = vmatprep.subr.mxu0 0.0
  %1981 = vmatpush2.msra.mxu0 0.0
  %1982 = vmatprep.subr.mxu0 0.0
  %1983 = vmatpush2.msra.mxu0 0.0
  %1984 = vmatprep.subr.mxu0 0.0
  %1985 = vmatpush2.msra.mxu0 0.0
  %1986 = vmatprep.subr.mxu0 0.0
  %1987 = vmatpush2.msra.mxu0 0.0
  %1988 = vmatprep.subr.mxu0 0.0
  %1989 = vmatpush2.msra.mxu0 0.0
  %1990 = vmatprep.subr.mxu0 0.0
  %1991 = vmatpush2.msra.mxu0 0.0
  %1992 = vmatprep.subr.mxu0 0.0
  %1993 = vmatpush2.msra.mxu0 0.0
  %1994 = vmatprep.subr.mxu0 0.0
  %1995 = vmatpush2.msra.mxu0 0.0
  %1996 = vmatprep.subr.mxu0 0.0
  %1997 = vmatpush2.msra.mxu0 0.0
  %1998 = vmatprep.subr.mxu0 0.0
  %1999 = vmatpush2.msra.mxu0 0.0
  %2000 = vmatprep.subr.mxu0 0.0
  %2001 = vmatpush2.msra.mxu0 0.0
  %2002 = vmatprep.subr.mxu0 0.0
  %2003 = vmatpush2.msra.mxu0 0.0
  %2004 = vmatprep.subr.mxu0 0.0
  %2005 = vmatpush2.msra.mxu0 0.0
  %2006 = vmatprep.subr.mxu0 0.0
  %2007 = vmatpush2.msra.mxu0 0.0
  %2008 = vmatprep.subr.mxu0 0.0
  %2009 = vmatpush2.msra.mxu0 0.0
  %2010 = vmatprep.mubr.f32.mxu0 0.0
  %2011 = vmatmul.mubr.f32.gmra.mxu0 %v1765
  %v2012 = vpop.f32.mrf.mxu0
  %v2013 = vadd.f32 %v1928, %v2012
  %v2014 = vpop.f32.mrf.mxu0
  %2015 = vmatprep.mubr.f32.mxu0 0.0
  %2016 = vmatmul.mubr.f32.gmra.mxu0 %v1768
  %v2017 = vpop.f32.mrf.mxu0
  %v2018 = vadd.f32 %v1933, %v2017
  %v2019 = vpop.f32.mrf.mxu0
  %2020 = vmatprep.mubr.f32.mxu0 0.0
  %2021 = vmatmul.mubr.f32.gmra.mxu0 %v1771
  %v2022 = vpop.f32.mrf.mxu0
  %v2023 = vadd.f32 %v1938, %v2022
  %v2024 = vpop.f32.mrf.mxu0
  %2025 = vmatprep.mubr.f32.mxu0 0.0
  %2026 = vmatmul.mubr.f32.gmra.mxu0 %v1774
  %v2027 = vpop.f32.mrf.mxu0
  %v2028 = vadd.f32 %v1943, %v2027
  %v2029 = vpop.f32.mrf.mxu0
  %2030 = vdwg.mxu0
  %v2031 = vld [vmem:[%s0] sm:$0xfc]
  %v2032 = vld [vmem:[%s0 + $0x8] sm:$0xfc]
  %v2033 = vld [vmem:[%s0 + $0x10] sm:$0xfc]
  %v2034 = vld [vmem:[%s0 + $0x18] sm:$0xfc]
  %v2035 = vld [vmem:[%s0 + $0x20] sm:$0xfc]
  %v2036 = vld [vmem:[%s0 + $0x50] sm:$0x3]
  %v2037 = vld [vmem:[%s0 + $0x58] sm:$0x3]
  %v2038 = vld [vmem:[%s0 + $0x60] sm:$0x3]
  %v2039 = vld [vmem:[%s0 + $0x68] sm:$0x3]
  %v2040 = vld [vmem:[%s0 + $0x70] sm:$0x3]
  %v2041 = vld [vmem:[%s0 + $0x78] sm:$0xfc]
  %v2042 = vld [vmem:[%s0 + $0x80] sm:$0xfc]
  %v2043 = vld [vmem:[%s0 + $0x88] sm:$0xfc]
  %v2044 = vld [vmem:[%s0 + $0x90] sm:$0xfc]
  %v2045 = vld [vmem:[%s0 + $0x98] sm:$0xfc]
  %v2046 = vld [vmem:[%s0 + $0xc8] sm:$0x3]
  %v2047 = vld [vmem:[%s0 + $0xd0] sm:$0x3]
  %v2048 = vld [vmem:[%s0 + $0xd8] sm:$0x3]
  %v2049 = vld [vmem:[%s0 + $0xe0] sm:$0x3]
  %v2050 = vld [vmem:[%s0 + $0xe8] sm:$0x3]
  %vm2071 = vcmask 1045504
  %v2072 = vrot.slane %v2031, 2
  %v2073 = vrot.slane %v1088, 2
  %v2074 = vsel %vm2071, %v2072, %v2073
  %v2075 = vrot.slane %v2032, 2
  %v2076 = vrot.slane %v1089, 2
  %v2077 = vsel %vm2071, %v2075, %v2076
  %v2078 = vrot.slane %v2033, 2
  %v2079 = vrot.slane %v1090, 2
  %v2080 = vsel %vm2071, %v2078, %v2079
  %v2081 = vrot.slane %v2034, 2
  %v2082 = vrot.slane %v1091, 2
  %v2083 = vsel %vm2071, %v2081, %v2082
  %v2084 = vrot.slane %v2035, 2
  %v2085 = vrot.slane %v1092, 2
  %v2086 = vsel %vm2071, %v2084, %v2085
  %v2087 = vrot.slane %v2036, 2
  %v2088 = vsel %vm2071, %v2073, %v2087
  %v2089 = vrot.slane %v2037, 2
  %v2090 = vsel %vm2071, %v2076, %v2089
  %v2091 = vrot.slane %v2038, 2
  %v2092 = vsel %vm2071, %v2079, %v2091
  %v2093 = vrot.slane %v2039, 2
  %v2094 = vsel %vm2071, %v2082, %v2093
  %v2095 = vrot.slane %v2040, 2
  %v2096 = vsel %vm2071, %v2085, %v2095
  %v2097 = vrot.slane %v2041, 2
  %v2098 = vrot.slane %v1098, 2
  %v2099 = vsel %vm2071, %v2097, %v2098
  %v2100 = vrot.slane %v2042, 2
  %v2101 = vrot.slane %v1099, 2
  %v2102 = vsel %vm2071, %v2100, %v2101
  %v2103 = vrot.slane %v2043, 2
  %v2104 = vrot.slane %v1100, 2
  %v2105 = vsel %vm2071, %v2103, %v2104
  %v2106 = vrot.slane %v2044, 2
  %v2107 = vrot.slane %v1101, 2
  %v2108 = vsel %vm2071, %v2106, %v2107
  %v2109 = vrot.slane %v2045, 2
  %v2110 = vrot.slane %v1102, 2
  %v2111 = vsel %vm2071, %v2109, %v2110
  %v2112 = vrot.slane %v2046, 2
  %v2113 = vsel %vm2071, %v2098, %v2112
  %v2114 = vrot.slane %v2047, 2
  %v2115 = vsel %vm2071, %v2101, %v2114
  %v2116 = vrot.slane %v2048, 2
  %v2117 = vsel %vm2071, %v2104, %v2116
  %v2118 = vrot.slane %v2049, 2
  %v2119 = vsel %vm2071, %v2107, %v2118
  %v2120 = vrot.slane %v2050, 2
  %v2121 = vsel %vm2071, %v2110, %v2120
  %v2142 = vmul.f32 %v2074, %v1106
  %v2143 = vmul.f32 %v2077, %v1106
  %v2144 = vmul.f32 %v2080, %v1106
  %v2145 = vmul.f32 %v2083, %v1106
  %v2146 = vmul.f32 %v2086, %v1106
  %v2147 = vmul.f32 %v2088, %v1106
  %v2148 = vmul.f32 %v2090, %v1106
  %v2149 = vmul.f32 %v2092, %v1106
  %v2150 = vmul.f32 %v2094, %v1106
  %v2151 = vmul.f32 %v2096, %v1106
  %v2152 = vmul.f32 %v2099, %v1106
  %v2153 = vmul.f32 %v2102, %v1106
  %v2154 = vmul.f32 %v2105, %v1106
  %v2155 = vmul.f32 %v2108, %v1106
  %v2156 = vmul.f32 %v2111, %v1106
  %v2157 = vmul.f32 %v2113, %v1106
  %v2158 = vmul.f32 %v2115, %v1106
  %v2159 = vmul.f32 %v2117, %v1106
  %v2160 = vmul.f32 %v2119, %v1106
  %v2161 = vmul.f32 %v2121, %v1106
  %v2162 = vadd.f32 %v2142, %v1130
  %v2163 = vadd.f32 %v2143, %v1130
  %v2164 = vadd.f32 %v2144, %v1130
  %v2165 = vadd.f32 %v2145, %v1130
  %v2166 = vadd.f32 %v2146, %v1130
  %v2167 = vadd.f32 %v2147, %v1130
  %v2168 = vadd.f32 %v2148, %v1130
  %v2169 = vadd.f32 %v2149, %v1130
  %v2170 = vadd.f32 %v2150, %v1130
  %v2171 = vadd.f32 %v2151, %v1130
  %v2172 = vadd.f32 %v2152, %v1130
  %v2173 = vadd.f32 %v2153, %v1130
  %v2174 = vadd.f32 %v2154, %v1130
  %v2175 = vadd.f32 %v2155, %v1130
  %v2176 = vadd.f32 %v2156, %v1130
  %v2177 = vadd.f32 %v2157, %v1130
  %v2178 = vadd.f32 %v2158, %v1130
  %v2179 = vadd.f32 %v2159, %v1130
  %v2180 = vadd.f32 %v2160, %v1130
  %v2181 = vadd.f32 %v2161, %v1130
  %v2182 = vmax.f32 %v2162, 0.0
  %v2183 = vmax.f32 %v2163, 0.0
  %v2184 = vmax.f32 %v2164, 0.0
  %v2185 = vmax.f32 %v2165, 0.0
  %v2186 = vmax.f32 %v2166, 0.0
  %v2187 = vmax.f32 %v2167, 0.0
  %v2188 = vmax.f32 %v2168, 0.0
  %v2189 = vmax.f32 %v2169, 0.0
  %v2190 = vmax.f32 %v2170, 0.0
  %v2191 = vmax.f32 %v2171, 0.0
  %v2192 = vmax.f32 %v2172, 0.0
  %v2193 = vmax.f32 %v2173, 0.0
  %v2194 = vmax.f32 %v2174, 0.0
  %v2195 = vmax.f32 %v2175, 0.0
  %v2196 = vmax.f32 %v2176, 0.0
  %v2197 = vmax.f32 %v2177, 0.0
  %v2198 = vmax.f32 %v2178, 0.0
  %v2199 = vmax.f32 %v2179, 0.0
  %v2200 = vmax.f32 %v2180, 0.0
  %v2201 = vmax.f32 %v2181, 0.0
  %s2202 = scalar_lea.vmem [#allocation2], 1152
  %v2203 = vld [vmem:[%s2202] sm:$0xff]
  %v2204 = vld [vmem:[%s2202 + $0x8] sm:$0xff]
  %v2205 = vld [vmem:[%s2202 + $0x10] sm:$0xff]
  %v2206 = vld [vmem:[%s2202 + $0x18] sm:$0xff]
  %v2207 = vld [vmem:[%s2202 + $0x20] sm:$0xff]
  %v2208 = vld [vmem:[%s2202 + $0x28] sm:$0xff]
  %v2209 = vld [vmem:[%s2202 + $0x30] sm:$0xff]
  %v2210 = vld [vmem:[%s2202 + $0x38] sm:$0xff]
  %v2211 = vld [vmem:[%s2202 + $0x40] sm:$0xff]
  %v2212 = vld [vmem:[%s2202 + $0x48] sm:$0xff]
  %v2213 = vld [vmem:[%s2202 + $0x50] sm:$0xff]
  %v2214 = vld [vmem:[%s2202 + $0x58] sm:$0xff]
  %v2215 = vld [vmem:[%s2202 + $0x60] sm:$0xff]
  %v2216 = vld [vmem:[%s2202 + $0x68] sm:$0xff]
  %v2217 = vld [vmem:[%s2202 + $0x70] sm:$0xff]
  %v2218 = vld [vmem:[%s2202 + $0x78] sm:$0xff]
  %v2219 = vld [vmem:[%s2202 + $0x80] sm:$0xff]
  %v2220 = vld [vmem:[%s2202 + $0x88] sm:$0xff]
  %v2221 = vld [vmem:[%s2202 + $0x90] sm:$0xff]
  %v2222 = vld [vmem:[%s2202 + $0x98] sm:$0xff]
  %v2223 = vld [vmem:[%s2202 + $0xa0] sm:$0xff]
  %v2224 = vld [vmem:[%s2202 + $0xa8] sm:$0xff]
  %v2225 = vld [vmem:[%s2202 + $0xb0] sm:$0xff]
  %v2226 = vld [vmem:[%s2202 + $0xb8] sm:$0xff]
  %v2227 = vld [vmem:[%s2202 + $0xc0] sm:$0xff]
  %v2228 = vld [vmem:[%s2202 + $0xc8] sm:$0xff]
  %v2229 = vld [vmem:[%s2202 + $0xd0] sm:$0xff]
  %v2230 = vld [vmem:[%s2202 + $0xd8] sm:$0xff]
  %v2231 = vld [vmem:[%s2202 + $0xe0] sm:$0xff]
  %v2232 = vld [vmem:[%s2202 + $0xe8] sm:$0xff]
  %v2233 = vld [vmem:[%s2202 + $0xf0] sm:$0xff]
  %v2234 = vld [vmem:[%s2202 + $0xf8] sm:$0xff]
  %v2235 = vld [vmem:[%s2202 + $0x100] sm:$0xff]
  %v2236 = vld [vmem:[%s2202 + $0x108] sm:$0xff]
  %v2237 = vld [vmem:[%s2202 + $0x110] sm:$0xff]
  %v2238 = vld [vmem:[%s2202 + $0x118] sm:$0xff]
  %v2239 = vld [vmem:[%s2202 + $0x120] sm:$0xff]
  %v2240 = vld [vmem:[%s2202 + $0x128] sm:$0xff]
  %v2241 = vld [vmem:[%s2202 + $0x130] sm:$0xff]
  %v2242 = vld [vmem:[%s2202 + $0x138] sm:$0xff]
  %v2243 = vld [vmem:[%s2202 + $0x140] sm:$0xff]
  %v2244 = vld [vmem:[%s2202 + $0x148] sm:$0xff]
  %v2245 = vld [vmem:[%s2202 + $0x150] sm:$0xff]
  %v2246 = vld [vmem:[%s2202 + $0x158] sm:$0xff]
  %v2247 = vld [vmem:[%s2202 + $0x160] sm:$0xff]
  %v2248 = vld [vmem:[%s2202 + $0x168] sm:$0xff]
  %v2249 = vld [vmem:[%s2202 + $0x170] sm:$0xff]
  %v2250 = vld [vmem:[%s2202 + $0x178] sm:$0xff]
  %v2251 = vld [vmem:[%s2202 + $0x180] sm:$0xff]
  %v2252 = vld [vmem:[%s2202 + $0x188] sm:$0xff]
  %v2253 = vld [vmem:[%s2202 + $0x190] sm:$0xff]
  %v2254 = vld [vmem:[%s2202 + $0x198] sm:$0xff]
  %v2255 = vld [vmem:[%s2202 + $0x1a0] sm:$0xff]
  %v2256 = vld [vmem:[%s2202 + $0x1a8] sm:$0xff]
  %v2257 = vld [vmem:[%s2202 + $0x1b0] sm:$0xff]
  %v2258 = vld [vmem:[%s2202 + $0x1b8] sm:$0xff]
  %v2259 = vld [vmem:[%s2202 + $0x1c0] sm:$0xff]
  %v2260 = vld [vmem:[%s2202 + $0x1c8] sm:$0xff]
  %v2261 = vld [vmem:[%s2202 + $0x1d0] sm:$0xff]
  %v2262 = vld [vmem:[%s2202 + $0x1d8] sm:$0xff]
  %v2263 = vld [vmem:[%s2202 + $0x1e0] sm:$0xff]
  %v2264 = vld [vmem:[%s2202 + $0x1e8] sm:$0xff]
  %v2265 = vld [vmem:[%s2202 + $0x1f0] sm:$0xff]
  %v2266 = vld [vmem:[%s2202 + $0x1f8] sm:$0xff]
  %v2267 = vld [vmem:[%s2202 + $0x200] sm:$0xff]
  %v2268 = vld [vmem:[%s2202 + $0x208] sm:$0xff]
  %v2269 = vld [vmem:[%s2202 + $0x210] sm:$0xff]
  %v2270 = vld [vmem:[%s2202 + $0x218] sm:$0xff]
  %v2271 = vld [vmem:[%s2202 + $0x220] sm:$0xff]
  %v2272 = vld [vmem:[%s2202 + $0x228] sm:$0xff]
  %v2273 = vld [vmem:[%s2202 + $0x230] sm:$0xff]
  %v2274 = vld [vmem:[%s2202 + $0x238] sm:$0xff]
  %v2276 = vsel %vm717, %v2186, 0
  %v2279 = vsel %vm717, %v2191, 0
  %v2282 = vsel %vm717, %v2196, 0
  %v2285 = vsel %vm717, %v2201, 0
  %2287 = vmatprep.subr.mxu0 0.0
  %2288 = vmatpush1.msra.mxu0 %v2218
  %2289 = vmatprep.subr.mxu0 0.0
  %2290 = vmatpush1.msra.mxu0 %v2217
  %2291 = vmatprep.subr.mxu0 0.0
  %2292 = vmatpush1.msra.mxu0 %v2216
  %2293 = vmatprep.subr.mxu0 0.0
  %2294 = vmatpush1.msra.mxu0 %v2215
  %2295 = vmatprep.subr.mxu0 0.0
  %2296 = vmatpush1.msra.mxu0 %v2214
  %2297 = vmatprep.subr.mxu0 0.0
  %2298 = vmatpush1.msra.mxu0 %v2213
  %2299 = vmatprep.subr.mxu0 0.0
  %2300 = vmatpush1.msra.mxu0 %v2212
  %2301 = vmatprep.subr.mxu0 0.0
  %2302 = vmatpush1.msra.mxu0 %v2211
  %2303 = vmatprep.subr.mxu0 0.0
  %2304 = vmatpush1.msra.mxu0 %v2210
  %2305 = vmatprep.subr.mxu0 0.0
  %2306 = vmatpush1.msra.mxu0 %v2209
  %2307 = vmatprep.subr.mxu0 0.0
  %2308 = vmatpush1.msra.mxu0 %v2208
  %2309 = vmatprep.subr.mxu0 0.0
  %2310 = vmatpush1.msra.mxu0 %v2207
  %2311 = vmatprep.subr.mxu0 0.0
  %2312 = vmatpush1.msra.mxu0 %v2206
  %2313 = vmatprep.subr.mxu0 0.0
  %2314 = vmatpush1.msra.mxu0 %v2205
  %2315 = vmatprep.subr.mxu0 0.0
  %2316 = vmatpush1.msra.mxu0 %v2204
  %2317 = vmatprep.subr.mxu0 0.0
  %2318 = vmatpush1.msra.mxu0 %v2203
  %2319 = vmatprep.subr.mxu0 0.0
  %2320 = vmatpush2.msra.mxu0 %v2234
  %2321 = vmatprep.subr.mxu0 0.0
  %2322 = vmatpush2.msra.mxu0 %v2233
  %2323 = vmatprep.subr.mxu0 0.0
  %2324 = vmatpush2.msra.mxu0 %v2232
  %2325 = vmatprep.subr.mxu0 0.0
  %2326 = vmatpush2.msra.mxu0 %v2231
  %2327 = vmatprep.subr.mxu0 0.0
  %2328 = vmatpush2.msra.mxu0 %v2230
  %2329 = vmatprep.subr.mxu0 0.0
  %2330 = vmatpush2.msra.mxu0 %v2229
  %2331 = vmatprep.subr.mxu0 0.0
  %2332 = vmatpush2.msra.mxu0 %v2228
  %2333 = vmatprep.subr.mxu0 0.0
  %2334 = vmatpush2.msra.mxu0 %v2227
  %2335 = vmatprep.subr.mxu0 0.0
  %2336 = vmatpush2.msra.mxu0 %v2226
  %2337 = vmatprep.subr.mxu0 0.0
  %2338 = vmatpush2.msra.mxu0 %v2225
  %2339 = vmatprep.subr.mxu0 0.0
  %2340 = vmatpush2.msra.mxu0 %v2224
  %2341 = vmatprep.subr.mxu0 0.0
  %2342 = vmatpush2.msra.mxu0 %v2223
  %2343 = vmatprep.subr.mxu0 0.0
  %2344 = vmatpush2.msra.mxu0 %v2222
  %2345 = vmatprep.subr.mxu0 0.0
  %2346 = vmatpush2.msra.mxu0 %v2221
  %2347 = vmatprep.subr.mxu0 0.0
  %2348 = vmatpush2.msra.mxu0 %v2220
  %2349 = vmatprep.subr.mxu0 0.0
  %2350 = vmatpush2.msra.mxu0 %v2219
  %2351 = vmatprep.mubr.f32.mxu0 %v2183
  %2352 = vmatmul.mubr.f32.gmra.mxu0 %v2182
  %v2353 = vpop.f32.mrf.mxu0
  %v2354 = vadd.f32 0.0, %v2353
  %v2355 = vpop.f32.mrf.mxu0
  %2356 = vmatprep.mubr.f32.mxu0 %v2188
  %2357 = vmatmul.mubr.f32.gmra.mxu0 %v2187
  %v2358 = vpop.f32.mrf.mxu0
  %v2359 = vadd.f32 0.0, %v2358
  %v2360 = vpop.f32.mrf.mxu0
  %2361 = vmatprep.mubr.f32.mxu0 %v2193
  %2362 = vmatmul.mubr.f32.gmra.mxu0 %v2192
  %v2363 = vpop.f32.mrf.mxu0
  %v2364 = vadd.f32 0.0, %v2363
  %v2365 = vpop.f32.mrf.mxu0
  %2366 = vmatprep.mubr.f32.mxu0 %v2198
  %2367 = vmatmul.mubr.f32.gmra.mxu0 %v2197
  %v2368 = vpop.f32.mrf.mxu0
  %v2369 = vadd.f32 0.0, %v2368
  %v2370 = vpop.f32.mrf.mxu0
  %2371 = vdwg.mxu0
  %2372 = vmatprep.subr.mxu0 0.0
  %2373 = vmatpush1.msra.mxu0 %v2250
  %2374 = vmatprep.subr.mxu0 0.0
  %2375 = vmatpush1.msra.mxu0 %v2249
  %2376 = vmatprep.subr.mxu0 0.0
  %2377 = vmatpush1.msra.mxu0 %v2248
  %2378 = vmatprep.subr.mxu0 0.0
  %2379 = vmatpush1.msra.mxu0 %v2247
  %2380 = vmatprep.subr.mxu0 0.0
  %2381 = vmatpush1.msra.mxu0 %v2246
  %2382 = vmatprep.subr.mxu0 0.0
  %2383 = vmatpush1.msra.mxu0 %v2245
  %2384 = vmatprep.subr.mxu0 0.0
  %2385 = vmatpush1.msra.mxu0 %v2244
  %2386 = vmatprep.subr.mxu0 0.0
  %2387 = vmatpush1.msra.mxu0 %v2243
  %2388 = vmatprep.subr.mxu0 0.0
  %2389 = vmatpush1.msra.mxu0 %v2242
  %2390 = vmatprep.subr.mxu0 0.0
  %2391 = vmatpush1.msra.mxu0 %v2241
  %2392 = vmatprep.subr.mxu0 0.0
  %2393 = vmatpush1.msra.mxu0 %v2240
  %2394 = vmatprep.subr.mxu0 0.0
  %2395 = vmatpush1.msra.mxu0 %v2239
  %2396 = vmatprep.subr.mxu0 0.0
  %2397 = vmatpush1.msra.mxu0 %v2238
  %2398 = vmatprep.subr.mxu0 0.0
  %2399 = vmatpush1.msra.mxu0 %v2237
  %2400 = vmatprep.subr.mxu0 0.0
  %2401 = vmatpush1.msra.mxu0 %v2236
  %2402 = vmatprep.subr.mxu0 0.0
  %2403 = vmatpush1.msra.mxu0 %v2235
  %2404 = vmatprep.subr.mxu0 0.0
  %2405 = vmatpush2.msra.mxu0 %v2266
  %2406 = vmatprep.subr.mxu0 0.0
  %2407 = vmatpush2.msra.mxu0 %v2265
  %2408 = vmatprep.subr.mxu0 0.0
  %2409 = vmatpush2.msra.mxu0 %v2264
  %2410 = vmatprep.subr.mxu0 0.0
  %2411 = vmatpush2.msra.mxu0 %v2263
  %2412 = vmatprep.subr.mxu0 0.0
  %2413 = vmatpush2.msra.mxu0 %v2262
  %2414 = vmatprep.subr.mxu0 0.0
  %2415 = vmatpush2.msra.mxu0 %v2261
  %2416 = vmatprep.subr.mxu0 0.0
  %2417 = vmatpush2.msra.mxu0 %v2260
  %2418 = vmatprep.subr.mxu0 0.0
  %2419 = vmatpush2.msra.mxu0 %v2259
  %2420 = vmatprep.subr.mxu0 0.0
  %2421 = vmatpush2.msra.mxu0 %v2258
  %2422 = vmatprep.subr.mxu0 0.0
  %2423 = vmatpush2.msra.mxu0 %v2257
  %2424 = vmatprep.subr.mxu0 0.0
  %2425 = vmatpush2.msra.mxu0 %v2256
  %2426 = vmatprep.subr.mxu0 0.0
  %2427 = vmatpush2.msra.mxu0 %v2255
  %2428 = vmatprep.subr.mxu0 0.0
  %2429 = vmatpush2.msra.mxu0 %v2254
  %2430 = vmatprep.subr.mxu0 0.0
  %2431 = vmatpush2.msra.mxu0 %v2253
  %2432 = vmatprep.subr.mxu0 0.0
  %2433 = vmatpush2.msra.mxu0 %v2252
  %2434 = vmatprep.subr.mxu0 0.0
  %2435 = vmatpush2.msra.mxu0 %v2251
  %2436 = vmatprep.mubr.f32.mxu0 %v2185
  %2437 = vmatmul.mubr.f32.gmra.mxu0 %v2184
  %v2438 = vpop.f32.mrf.mxu0
  %v2439 = vadd.f32 %v2354, %v2438
  %v2440 = vpop.f32.mrf.mxu0
  %2441 = vmatprep.mubr.f32.mxu0 %v2190
  %2442 = vmatmul.mubr.f32.gmra.mxu0 %v2189
  %v2443 = vpop.f32.mrf.mxu0
  %v2444 = vadd.f32 %v2359, %v2443
  %v2445 = vpop.f32.mrf.mxu0
  %2446 = vmatprep.mubr.f32.mxu0 %v2195
  %2447 = vmatmul.mubr.f32.gmra.mxu0 %v2194
  %v2448 = vpop.f32.mrf.mxu0
  %v2449 = vadd.f32 %v2364, %v2448
  %v2450 = vpop.f32.mrf.mxu0
  %2451 = vmatprep.mubr.f32.mxu0 %v2200
  %2452 = vmatmul.mubr.f32.gmra.mxu0 %v2199
  %v2453 = vpop.f32.mrf.mxu0
  %v2454 = vadd.f32 %v2369, %v2453
  %v2455 = vpop.f32.mrf.mxu0
  %2456 = vdwg.mxu0
  %2457 = vmatprep.subr.mxu0 0.0
  %2458 = vmatpush1.msra.mxu0 0.0
  %2459 = vmatprep.subr.mxu0 0.0
  %2460 = vmatpush1.msra.mxu0 0.0
  %2461 = vmatprep.subr.mxu0 0.0
  %2462 = vmatpush1.msra.mxu0 0.0
  %2463 = vmatprep.subr.mxu0 0.0
  %2464 = vmatpush1.msra.mxu0 0.0
  %2465 = vmatprep.subr.mxu0 0.0
  %2466 = vmatpush1.msra.mxu0 0.0
  %2467 = vmatprep.subr.mxu0 0.0
  %2468 = vmatpush1.msra.mxu0 0.0
  %2469 = vmatprep.subr.mxu0 0.0
  %2470 = vmatpush1.msra.mxu0 0.0
  %2471 = vmatprep.subr.mxu0 0.0
  %2472 = vmatpush1.msra.mxu0 0.0
  %2473 = vmatprep.subr.mxu0 0.0
  %2474 = vmatpush1.msra.mxu0 %v2274
  %2475 = vmatprep.subr.mxu0 0.0
  %2476 = vmatpush1.msra.mxu0 %v2273
  %2477 = vmatprep.subr.mxu0 0.0
  %2478 = vmatpush1.msra.mxu0 %v2272
  %2479 = vmatprep.subr.mxu0 0.0
  %2480 = vmatpush1.msra.mxu0 %v2271
  %2481 = vmatprep.subr.mxu0 0.0
  %2482 = vmatpush1.msra.mxu0 %v2270
  %2483 = vmatprep.subr.mxu0 0.0
  %2484 = vmatpush1.msra.mxu0 %v2269
  %2485 = vmatprep.subr.mxu0 0.0
  %2486 = vmatpush1.msra.mxu0 %v2268
  %2487 = vmatprep.subr.mxu0 0.0
  %2488 = vmatpush1.msra.mxu0 %v2267
  %2489 = vmatprep.subr.mxu0 0.0
  %2490 = vmatpush2.msra.mxu0 0.0
  %2491 = vmatprep.subr.mxu0 0.0
  %2492 = vmatpush2.msra.mxu0 0.0
  %2493 = vmatprep.subr.mxu0 0.0
  %2494 = vmatpush2.msra.mxu0 0.0
  %2495 = vmatprep.subr.mxu0 0.0
  %2496 = vmatpush2.msra.mxu0 0.0
  %2497 = vmatprep.subr.mxu0 0.0
  %2498 = vmatpush2.msra.mxu0 0.0
  %2499 = vmatprep.subr.mxu0 0.0
  %2500 = vmatpush2.msra.mxu0 0.0
  %2501 = vmatprep.subr.mxu0 0.0
  %2502 = vmatpush2.msra.mxu0 0.0
  %2503 = vmatprep.subr.mxu0 0.0
  %2504 = vmatpush2.msra.mxu0 0.0
  %2505 = vmatprep.subr.mxu0 0.0
  %2506 = vmatpush2.msra.mxu0 0.0
  %2507 = vmatprep.subr.mxu0 0.0
  %2508 = vmatpush2.msra.mxu0 0.0
  %2509 = vmatprep.subr.mxu0 0.0
  %2510 = vmatpush2.msra.mxu0 0.0
  %2511 = vmatprep.subr.mxu0 0.0
  %2512 = vmatpush2.msra.mxu0 0.0
  %2513 = vmatprep.subr.mxu0 0.0
  %2514 = vmatpush2.msra.mxu0 0.0
  %2515 = vmatprep.subr.mxu0 0.0
  %2516 = vmatpush2.msra.mxu0 0.0
  %2517 = vmatprep.subr.mxu0 0.0
  %2518 = vmatpush2.msra.mxu0 0.0
  %2519 = vmatprep.subr.mxu0 0.0
  %2520 = vmatpush2.msra.mxu0 0.0
  %2521 = vmatprep.mubr.f32.mxu0 0.0
  %2522 = vmatmul.mubr.f32.gmra.mxu0 %v2276
  %v2523 = vpop.f32.mrf.mxu0
  %v2524 = vadd.f32 %v2439, %v2523
  %v2525 = vpop.f32.mrf.mxu0
  %2526 = vmatprep.mubr.f32.mxu0 0.0
  %2527 = vmatmul.mubr.f32.gmra.mxu0 %v2279
  %v2528 = vpop.f32.mrf.mxu0
  %v2529 = vadd.f32 %v2444, %v2528
  %v2530 = vpop.f32.mrf.mxu0
  %2531 = vmatprep.mubr.f32.mxu0 0.0
  %2532 = vmatmul.mubr.f32.gmra.mxu0 %v2282
  %v2533 = vpop.f32.mrf.mxu0
  %v2534 = vadd.f32 %v2449, %v2533
  %v2535 = vpop.f32.mrf.mxu0
  %2536 = vmatprep.mubr.f32.mxu0 0.0
  %2537 = vmatmul.mubr.f32.gmra.mxu0 %v2285
  %v2538 = vpop.f32.mrf.mxu0
  %v2539 = vadd.f32 %v2454, %v2538
  %v2540 = vpop.f32.mrf.mxu0
  %2541 = vdwg.mxu0
  %v2542 = vadd.f32 %v2013, %v2524
  %v2543 = vadd.f32 %v2018, %v2529
  %v2544 = vadd.f32 %v2023, %v2534
  %v2545 = vadd.f32 %v2028, %v2539
  %v2546 = vadd.f32 %v2542, %v2543
  %v2547 = vadd.f32 %v2546, %v2544
  %v2548 = vadd.f32 %v2547, %v2545
  %v2549 = vrot.slane %v2548, 4
  %v2550 = vadd.f32 %v2548, %v2549
  %v2551 = vrot.slane %v2550, 2
  %v2552 = vadd.f32 %v2550, %v2551
  %v2553 = vrot.slane %v2552, 1
  %v2554 = vadd.f32 %v2552, %v2553
  %2556 = vrot.lane.b32.xlu0 %v2554, 64
  %v2557 = vpop.permute.xlu0 %2556
  %v2559 = vadd.f32 %v2554, %v2557
  %2561 = vrot.lane.b32.xlu0 %v2559, 96
  %v2562 = vpop.permute.xlu0 %2561
  %v2564 = vadd.f32 %v2559, %v2562
  %2566 = vrot.lane.b32.xlu0 %v2564, 112
  %v2567 = vpop.permute.xlu0 %2566
  %v2569 = vadd.f32 %v2564, %v2567
  %2571 = vrot.lane.b32.xlu0 %v2569, 120
  %v2572 = vpop.permute.xlu0 %2571
  %v2574 = vadd.f32 %v2569, %v2572
  %v2575 = vrcp.pop 512.0
  %v2576 = vmul.f32 %v2574, %v2575
  %2578 = vrot.lane.b32.xlu0 %v2576, 8
  %v2579 = vpop.permute.xlu0 %2578
  %vm2581 = vcmask 64512
  %v2582 = vsel %vm2581, %v2576, %v2579
  %2584 = vrot.lane.b32.xlu0 %v2582, 16
  %v2585 = vpop.permute.xlu0 %2584
  %vm2587 = vcmask 130048
  %v2588 = vsel %vm2587, %v2582, %v2585
  %2590 = vrot.lane.b32.xlu0 %v2588, 32
  %v2591 = vpop.permute.xlu0 %2590
  %v2593 = vsel %vm839, %v2588, %v2591
  %2595 = vrot.lane.b32.xlu0 %v2593, 64
  %v2596 = vpop.permute.xlu0 %2595
  %v2598 = vsel %vm717, %v2593, %v2596
  %v2599 = vlaneseq
  %v2600 = vshrl.u32 %v2599, 7
  %v2601 = vsub.s32 0, %v2600
  %v2602 = vrot.slane %v2598, %v2601
  %v2603 = vsub.f32 %v2542, %v2602
  %v2604 = vsub.f32 %v2543, %v2602
  %v2605 = vsub.f32 %v2544, %v2602
  %v2606 = vsub.f32 %v2545, %v2602
  %v2607 = vmul.f32 %v2603, %v2603
  %v2608 = vmul.f32 %v2604, %v2604
  %v2609 = vmul.f32 %v2605, %v2605
  %v2610 = vmul.f32 %v2606, %v2606
  %v2611 = vadd.f32 %v2607, %v2608
  %v2612 = vadd.f32 %v2611, %v2609
  %v2613 = vadd.f32 %v2612, %v2610
  %v2614 = vrot.slane %v2613, 4
  %v2615 = vadd.f32 %v2613, %v2614
  %v2616 = vrot.slane %v2615, 2
  %v2617 = vadd.f32 %v2615, %v2616
  %v2618 = vrot.slane %v2617, 1
  %v2619 = vadd.f32 %v2617, %v2618
  %2621 = vrot.lane.b32.xlu0 %v2619, 64
  %v2622 = vpop.permute.xlu0 %2621
  %v2624 = vadd.f32 %v2619, %v2622
  %2626 = vrot.lane.b32.xlu0 %v2624, 96
  %v2627 = vpop.permute.xlu0 %2626
  %v2629 = vadd.f32 %v2624, %v2627
  %2631 = vrot.lane.b32.xlu0 %v2629, 112
  %v2632 = vpop.permute.xlu0 %2631
  %v2634 = vadd.f32 %v2629, %v2632
  %2636 = vrot.lane.b32.xlu0 %v2634, 120
  %v2637 = vpop.permute.xlu0 %2636
  %v2639 = vadd.f32 %v2634, %v2637
  %v2640 = vmul.f32 %v2639, %v2575
  %v2641 = vld [vmem:[%s3] sm:$0x1]
  %v2642 = vadd.f32 %v2640, 1e-05
  %v2643 = vrsqrt.pop %v2642
  %v2644 = vmul.f32 %v2641, %v2643
  %v2645 = vld [vmem:[%s4] sm:$0x1]
  %v2646 = vmul.f32 %v2576, %v2644
  %v2647 = vsub.f32 %v2645, %v2646
  %v2649 = vlaneseq
  %v2650 = vshrl.u32 %v2649, 7
  %v2651 = vsub.s32 0, %v2650
  %v2652 = vrot.slane %v2644, %v2651
  %2653 = vrot.lane.b32.xlu0 %v2652, 8
  %v2654 = vpop.permute.xlu0 %2653
  %v2656 = vsel %vm2581, %v2644, %v2654
  %2658 = vrot.lane.b32.xlu0 %v2656, 16
  %v2659 = vpop.permute.xlu0 %2658
  %v2661 = vsel %vm2587, %v2656, %v2659
  %2663 = vrot.lane.b32.xlu0 %v2661, 32
  %v2664 = vpop.permute.xlu0 %2663
  %v2666 = vsel %vm839, %v2661, %v2664
  %2668 = vrot.lane.b32.xlu0 %v2666, 64
  %v2669 = vpop.permute.xlu0 %2668
  %v2671 = vsel %vm717, %v2666, %v2669
  %v2673 = vlaneseq
  %v2674 = vshrl.u32 %v2673, 7
  %v2675 = vsub.s32 0, %v2674
  %v2676 = vrot.slane %v2647, %v2675
  %2677 = vrot.lane.b32.xlu0 %v2676, 8
  %v2678 = vpop.permute.xlu0 %2677
  %v2680 = vsel %vm2581, %v2647, %v2678
  %2682 = vrot.lane.b32.xlu0 %v2680, 16
  %v2683 = vpop.permute.xlu0 %2682
  %v2685 = vsel %vm2587, %v2680, %v2683
  %2687 = vrot.lane.b32.xlu0 %v2685, 32
  %v2688 = vpop.permute.xlu0 %2687
  %v2690 = vsel %vm839, %v2685, %v2688
  %2692 = vrot.lane.b32.xlu0 %v2690, 64
  %v2693 = vpop.permute.xlu0 %2692
  %v2695 = vsel %vm717, %v2690, %v2693
  %v2696 = vlaneseq
  %v2697 = vshrl.u32 %v2696, 7
  %v2698 = vsub.s32 0, %v2697
  %v2699 = vrot.slane %v2671, %v2698
  %v2700 = vmul.f32 %v2542, %v2699
  %v2701 = vmul.f32 %v2543, %v2699
  %v2702 = vmul.f32 %v2544, %v2699
  %v2703 = vmul.f32 %v2545, %v2699
  %v2704 = vlaneseq
  %v2705 = vshrl.u32 %v2704, 7
  %v2706 = vsub.s32 0, %v2705
  %v2707 = vrot.slane %v2695, %v2706
  %v2708 = vadd.f32 %v2700, %v2707
  %v2709 = vadd.f32 %v2701, %v2707
  %v2710 = vadd.f32 %v2702, %v2707
  %v2711 = vadd.f32 %v2703, %v2707
  %v2712 = vmax.f32 %v2708, 0.0
  %v2713 = vmax.f32 %v2709, 0.0
  %v2714 = vmax.f32 %v2710, 0.0
  %v2715 = vmax.f32 %v2711, 0.0
  %s2716 = smul.u32 8, 16
  %s2717 = smul.u32 %s2716, 4
  %s2718 = sshll.u32 %s2717, 4
  %2719 = dma.done %s495, %s2718
  %v2720 = vld [vmem:[#allocation3] sm:$0xff]
  %v2721 = vld [vmem:[#allocation3 + $0x8] sm:$0xff]
  %v2722 = vld [vmem:[#allocation3 + $0x10] sm:$0xff]
  %v2723 = vld [vmem:[#allocation3 + $0x18] sm:$0xff]
  %v2724 = vld [vmem:[#allocation3 + $0x20] sm:$0xff]
  %v2725 = vld [vmem:[#allocation3 + $0x28] sm:$0xff]
  %v2726 = vld [vmem:[#allocation3 + $0x30] sm:$0xff]
  %v2727 = vld [vmem:[#allocation3 + $0x38] sm:$0xff]
  %v2728 = vld [vmem:[#allocation3 + $0x40] sm:$0xff]
  %v2729 = vld [vmem:[#allocation3 + $0x48] sm:$0xff]
  %v2730 = vld [vmem:[#allocation3 + $0x50] sm:$0xff]
  %v2731 = vld [vmem:[#allocation3 + $0x58] sm:$0xff]
  %v2732 = vld [vmem:[#allocation3 + $0x60] sm:$0xff]
  %v2733 = vld [vmem:[#allocation3 + $0x68] sm:$0xff]
  %v2734 = vld [vmem:[#allocation3 + $0x70] sm:$0xff]
  %v2735 = vld [vmem:[#allocation3 + $0x78] sm:$0xff]
  %v2736 = vld [vmem:[#allocation3 + $0x80] sm:$0xff]
  %v2737 = vld [vmem:[#allocation3 + $0x88] sm:$0xff]
  %v2738 = vld [vmem:[#allocation3 + $0x90] sm:$0xff]
  %v2739 = vld [vmem:[#allocation3 + $0x98] sm:$0xff]
  %v2740 = vld [vmem:[#allocation3 + $0xa0] sm:$0xff]
  %v2741 = vld [vmem:[#allocation3 + $0xa8] sm:$0xff]
  %v2742 = vld [vmem:[#allocation3 + $0xb0] sm:$0xff]
  %v2743 = vld [vmem:[#allocation3 + $0xb8] sm:$0xff]
  %v2744 = vld [vmem:[#allocation3 + $0xc0] sm:$0xff]
  %v2745 = vld [vmem:[#allocation3 + $0xc8] sm:$0xff]
  %v2746 = vld [vmem:[#allocation3 + $0xd0] sm:$0xff]
  %v2747 = vld [vmem:[#allocation3 + $0xd8] sm:$0xff]
  %v2748 = vld [vmem:[#allocation3 + $0xe0] sm:$0xff]
  %v2749 = vld [vmem:[#allocation3 + $0xe8] sm:$0xff]
  %v2750 = vld [vmem:[#allocation3 + $0xf0] sm:$0xff]
  %v2751 = vld [vmem:[#allocation3 + $0xf8] sm:$0xff]
  %v2752 = vld [vmem:[#allocation3 + $0x100] sm:$0xff]
  %v2753 = vld [vmem:[#allocation3 + $0x108] sm:$0xff]
  %v2754 = vld [vmem:[#allocation3 + $0x110] sm:$0xff]
  %v2755 = vld [vmem:[#allocation3 + $0x118] sm:$0xff]
  %v2756 = vld [vmem:[#allocation3 + $0x120] sm:$0xff]
  %v2757 = vld [vmem:[#allocation3 + $0x128] sm:$0xff]
  %v2758 = vld [vmem:[#allocation3 + $0x130] sm:$0xff]
  %v2759 = vld [vmem:[#allocation3 + $0x138] sm:$0xff]
  %v2760 = vld [vmem:[#allocation3 + $0x140] sm:$0xff]
  %v2761 = vld [vmem:[#allocation3 + $0x148] sm:$0xff]
  %v2762 = vld [vmem:[#allocation3 + $0x150] sm:$0xff]
  %v2763 = vld [vmem:[#allocation3 + $0x158] sm:$0xff]
  %v2764 = vld [vmem:[#allocation3 + $0x160] sm:$0xff]
  %v2765 = vld [vmem:[#allocation3 + $0x168] sm:$0xff]
  %v2766 = vld [vmem:[#allocation3 + $0x170] sm:$0xff]
  %v2767 = vld [vmem:[#allocation3 + $0x178] sm:$0xff]
  %v2768 = vld [vmem:[#allocation3 + $0x180] sm:$0xff]
  %v2769 = vld [vmem:[#allocation3 + $0x188] sm:$0xff]
  %v2770 = vld [vmem:[#allocation3 + $0x190] sm:$0xff]
  %v2771 = vld [vmem:[#allocation3 + $0x198] sm:$0xff]
  %v2772 = vld [vmem:[#allocation3 + $0x1a0] sm:$0xff]
  %v2773 = vld [vmem:[#allocation3 + $0x1a8] sm:$0xff]
  %v2774 = vld [vmem:[#allocation3 + $0x1b0] sm:$0xff]
  %v2775 = vld [vmem:[#allocation3 + $0x1b8] sm:$0xff]
  %v2776 = vld [vmem:[#allocation3 + $0x1c0] sm:$0xff]
  %v2777 = vld [vmem:[#allocation3 + $0x1c8] sm:$0xff]
  %v2778 = vld [vmem:[#allocation3 + $0x1d0] sm:$0xff]
  %v2779 = vld [vmem:[#allocation3 + $0x1d8] sm:$0xff]
  %v2780 = vld [vmem:[#allocation3 + $0x1e0] sm:$0xff]
  %v2781 = vld [vmem:[#allocation3 + $0x1e8] sm:$0xff]
  %v2782 = vld [vmem:[#allocation3 + $0x1f0] sm:$0xff]
  %v2783 = vld [vmem:[#allocation3 + $0x1f8] sm:$0xff]
  %v2784 = vld [vmem:[%s0] sm:$0xfe]
  %v2785 = vld [vmem:[%s0 + $0x8] sm:$0xfe]
  %v2786 = vld [vmem:[%s0 + $0x10] sm:$0xfe]
  %v2787 = vld [vmem:[%s0 + $0x18] sm:$0xfe]
  %v2788 = vld [vmem:[%s0 + $0x20] sm:$0xfe]
  %v2789 = vld [vmem:[%s0 + $0x28] sm:$0xff]
  %v2790 = vld [vmem:[%s0 + $0x30] sm:$0xff]
  %v2791 = vld [vmem:[%s0 + $0x38] sm:$0xff]
  %v2792 = vld [vmem:[%s0 + $0x40] sm:$0xff]
  %v2793 = vld [vmem:[%s0 + $0x48] sm:$0xff]
  %v2794 = vld [vmem:[%s0 + $0x50] sm:$0x1]
  %v2795 = vld [vmem:[%s0 + $0x58] sm:$0x1]
  %v2796 = vld [vmem:[%s0 + $0x60] sm:$0x1]
  %v2797 = vld [vmem:[%s0 + $0x68] sm:$0x1]
  %v2798 = vld [vmem:[%s0 + $0x70] sm:$0x1]
  %v2799 = vld [vmem:[%s0 + $0x78] sm:$0xfe]
  %v2800 = vld [vmem:[%s0 + $0x80] sm:$0xfe]
  %v2801 = vld [vmem:[%s0 + $0x88] sm:$0xfe]
  %v2802 = vld [vmem:[%s0 + $0x90] sm:$0xfe]
  %v2803 = vld [vmem:[%s0 + $0x98] sm:$0xfe]
  %v2804 = vld [vmem:[%s0 + $0xa0] sm:$0xff]
  %v2805 = vld [vmem:[%s0 + $0xa8] sm:$0xff]
  %v2806 = vld [vmem:[%s0 + $0xb0] sm:$0xff]
  %v2807 = vld [vmem:[%s0 + $0xb8] sm:$0xff]
  %v2808 = vld [vmem:[%s0 + $0xc0] sm:$0xff]
  %v2809 = vld [vmem:[%s0 + $0xc8] sm:$0x1]
  %v2810 = vld [vmem:[%s0 + $0xd0] sm:$0x1]
  %v2811 = vld [vmem:[%s0 + $0xd8] sm:$0x1]
  %v2812 = vld [vmem:[%s0 + $0xe0] sm:$0x1]
  %v2813 = vld [vmem:[%s0 + $0xe8] sm:$0x1]
  %v2844 = vrot.slane %v2784, 1
  %v2845 = vrot.slane %v2789, 1
  %v2846 = vsel %vm1293, %v2844, %v2845
  %v2847 = vrot.slane %v2785, 1
  %v2848 = vrot.slane %v2790, 1
  %v2849 = vsel %vm1293, %v2847, %v2848
  %v2850 = vrot.slane %v2786, 1
  %v2851 = vrot.slane %v2791, 1
  %v2852 = vsel %vm1293, %v2850, %v2851
  %v2853 = vrot.slane %v2787, 1
  %v2854 = vrot.slane %v2792, 1
  %v2855 = vsel %vm1293, %v2853, %v2854
  %v2856 = vrot.slane %v2788, 1
  %v2857 = vrot.slane %v2793, 1
  %v2858 = vsel %vm1293, %v2856, %v2857
  %v2859 = vrot.slane %v2794, 1
  %v2860 = vsel %vm1293, %v2845, %v2859
  %v2861 = vrot.slane %v2795, 1
  %v2862 = vsel %vm1293, %v2848, %v2861
  %v2863 = vrot.slane %v2796, 1
  %v2864 = vsel %vm1293, %v2851, %v2863
  %v2865 = vrot.slane %v2797, 1
  %v2866 = vsel %vm1293, %v2854, %v2865
  %v2867 = vrot.slane %v2798, 1
  %v2868 = vsel %vm1293, %v2857, %v2867
  %v2869 = vrot.slane %v2799, 1
  %v2870 = vrot.slane %v2804, 1
  %v2871 = vsel %vm1293, %v2869, %v2870
  %v2872 = vrot.slane %v2800, 1
  %v2873 = vrot.slane %v2805, 1
  %v2874 = vsel %vm1293, %v2872, %v2873
  %v2875 = vrot.slane %v2801, 1
  %v2876 = vrot.slane %v2806, 1
  %v2877 = vsel %vm1293, %v2875, %v2876
  %v2878 = vrot.slane %v2802, 1
  %v2879 = vrot.slane %v2807, 1
  %v2880 = vsel %vm1293, %v2878, %v2879
  %v2881 = vrot.slane %v2803, 1
  %v2882 = vrot.slane %v2808, 1
  %v2883 = vsel %vm1293, %v2881, %v2882
  %v2884 = vrot.slane %v2809, 1
  %v2885 = vsel %vm1293, %v2870, %v2884
  %v2886 = vrot.slane %v2810, 1
  %v2887 = vsel %vm1293, %v2873, %v2886
  %v2888 = vrot.slane %v2811, 1
  %v2889 = vsel %vm1293, %v2876, %v2888
  %v2890 = vrot.slane %v2812, 1
  %v2891 = vsel %vm1293, %v2879, %v2890
  %v2892 = vrot.slane %v2813, 1
  %v2893 = vsel %vm1293, %v2882, %v2892
  %2894 = vrot.lane.b32.xlu0 %v2846, 96
  %v2895 = vpop.permute.xlu0 %2894
  %2896 = vrot.lane.b32.xlu0 %v2849, 96
  %v2897 = vpop.permute.xlu0 %2896
  %2898 = vrot.lane.b32.xlu0 %v2852, 96
  %v2899 = vpop.permute.xlu0 %2898
  %2900 = vrot.lane.b32.xlu0 %v2855, 96
  %v2901 = vpop.permute.xlu0 %2900
  %2902 = vrot.lane.b32.xlu0 %v2858, 96
  %v2903 = vpop.permute.xlu0 %2902
  %2904 = vrot.lane.b32.xlu0 %v2860, 96
  %v2905 = vpop.permute.xlu0 %2904
  %2906 = vrot.lane.b32.xlu0 %v2862, 96
  %v2907 = vpop.permute.xlu0 %2906
  %2908 = vrot.lane.b32.xlu0 %v2864, 96
  %v2909 = vpop.permute.xlu0 %2908
  %2910 = vrot.lane.b32.xlu0 %v2866, 96
  %v2911 = vpop.permute.xlu0 %2910
  %2912 = vrot.lane.b32.xlu0 %v2868, 96
  %v2913 = vpop.permute.xlu0 %2912
  %2914 = vrot.lane.b32.xlu0 %v2871, 96
  %v2915 = vpop.permute.xlu0 %2914
  %2916 = vrot.lane.b32.xlu0 %v2874, 96
  %v2917 = vpop.permute.xlu0 %2916
  %2918 = vrot.lane.b32.xlu0 %v2877, 96
  %v2919 = vpop.permute.xlu0 %2918
  %2920 = vrot.lane.b32.xlu0 %v2880, 96
  %v2921 = vpop.permute.xlu0 %2920
  %2922 = vrot.lane.b32.xlu0 %v2883, 96
  %v2923 = vpop.permute.xlu0 %2922
  %2924 = vrot.lane.b32.xlu0 %v2885, 96
  %v2925 = vpop.permute.xlu0 %2924
  %2926 = vrot.lane.b32.xlu0 %v2887, 96
  %v2927 = vpop.permute.xlu0 %2926
  %2928 = vrot.lane.b32.xlu0 %v2889, 96
  %v2929 = vpop.permute.xlu0 %2928
  %2930 = vrot.lane.b32.xlu0 %v2891, 96
  %v2931 = vpop.permute.xlu0 %2930
  %2932 = vrot.lane.b32.xlu0 %v2893, 96
  %v2933 = vpop.permute.xlu0 %2932
  %v2934 = vsel %vm812, %v2895, %v2897
  %v2935 = vsel %vm812, %v2897, %v2899
  %v2936 = vsel %vm812, %v2899, %v2901
  %v2937 = vsel %vm812, %v2901, %v2903
  %v2938 = vsel %vm812, %v2905, %v2907
  %v2939 = vsel %vm812, %v2907, %v2909
  %v2940 = vsel %vm812, %v2909, %v2911
  %v2941 = vsel %vm812, %v2911, %v2913
  %v2942 = vsel %vm812, %v2915, %v2917
  %v2943 = vsel %vm812, %v2917, %v2919
  %v2944 = vsel %vm812, %v2919, %v2921
  %v2945 = vsel %vm812, %v2921, %v2923
  %v2946 = vsel %vm812, %v2925, %v2927
  %v2947 = vsel %vm812, %v2927, %v2929
  %v2948 = vsel %vm812, %v2929, %v2931
  %v2949 = vsel %vm812, %v2931, %v2933
  %2966 = vmatprep.subr.mxu0 %v2781
  %2967 = vmatpush1.msra.mxu0 %v2780
  %2968 = vmatprep.subr.mxu0 %v2777
  %2969 = vmatpush1.msra.mxu0 %v2776
  %2970 = vmatprep.subr.mxu0 %v2773
  %2971 = vmatpush1.msra.mxu0 %v2772
  %2972 = vmatprep.subr.mxu0 %v2769
  %2973 = vmatpush1.msra.mxu0 %v2768
  %2974 = vmatprep.subr.mxu0 %v2765
  %2975 = vmatpush1.msra.mxu0 %v2764
  %2976 = vmatprep.subr.mxu0 %v2761
  %2977 = vmatpush1.msra.mxu0 %v2760
  %2978 = vmatprep.subr.mxu0 %v2757
  %2979 = vmatpush1.msra.mxu0 %v2756
  %2980 = vmatprep.subr.mxu0 %v2753
  %2981 = vmatpush1.msra.mxu0 %v2752
  %2982 = vmatprep.subr.mxu0 %v2749
  %2983 = vmatpush1.msra.mxu0 %v2748
  %2984 = vmatprep.subr.mxu0 %v2745
  %2985 = vmatpush1.msra.mxu0 %v2744
  %2986 = vmatprep.subr.mxu0 %v2741
  %2987 = vmatpush1.msra.mxu0 %v2740
  %2988 = vmatprep.subr.mxu0 %v2737
  %2989 = vmatpush1.msra.mxu0 %v2736
  %2990 = vmatprep.subr.mxu0 %v2733
  %2991 = vmatpush1.msra.mxu0 %v2732
  %2992 = vmatprep.subr.mxu0 %v2729
  %2993 = vmatpush1.msra.mxu0 %v2728
  %2994 = vmatprep.subr.mxu0 %v2725
  %2995 = vmatpush1.msra.mxu0 %v2724
  %2996 = vmatprep.subr.mxu0 %v2721
  %2997 = vmatpush1.msra.mxu0 %v2720
  %2998 = vmatprep.subr.mxu0 0.0
  %2999 = vmatpush2.msra.mxu0 0.0
  %3000 = vmatprep.subr.mxu0 0.0
  %3001 = vmatpush2.msra.mxu0 0.0
  %3002 = vmatprep.subr.mxu0 0.0
  %3003 = vmatpush2.msra.mxu0 0.0
  %3004 = vmatprep.subr.mxu0 0.0
  %3005 = vmatpush2.msra.mxu0 0.0
  %3006 = vmatprep.subr.mxu0 0.0
  %3007 = vmatpush2.msra.mxu0 0.0
  %3008 = vmatprep.subr.mxu0 0.0
  %3009 = vmatpush2.msra.mxu0 0.0
  %3010 = vmatprep.subr.mxu0 0.0
  %3011 = vmatpush2.msra.mxu0 0.0
  %3012 = vmatprep.subr.mxu0 0.0
  %3013 = vmatpush2.msra.mxu0 0.0
  %3014 = vmatprep.subr.mxu0 0.0
  %3015 = vmatpush2.msra.mxu0 0.0
  %3016 = vmatprep.subr.mxu0 0.0
  %3017 = vmatpush2.msra.mxu0 0.0
  %3018 = vmatprep.subr.mxu0 0.0
  %3019 = vmatpush2.msra.mxu0 0.0
  %3020 = vmatprep.subr.mxu0 0.0
  %3021 = vmatpush2.msra.mxu0 0.0
  %3022 = vmatprep.subr.mxu0 0.0
  %3023 = vmatpush2.msra.mxu0 0.0
  %3024 = vmatprep.subr.mxu0 0.0
  %3025 = vmatpush2.msra.mxu0 0.0
  %3026 = vmatprep.subr.mxu0 0.0
  %3027 = vmatpush2.msra.mxu0 0.0
  %3028 = vmatprep.subr.mxu0 0.0
  %3029 = vmatpush2.msra.mxu0 0.0
  %3030 = vmatprep.mubr.f32.mxu0 0.0
  %3031 = vmatmul.mubr.f32.gmra.mxu0 %v2712
  %v3032 = vpop.f32.mrf.mxu0
  %v3033 = vadd.f32 %v2934, %v3032
  %v3034 = vpop.f32.mrf.mxu0
  %v3035 = vadd.f32 %v2935, %v3034
  %3036 = vmatprep.mubr.f32.mxu0 0.0
  %3037 = vmatmul.mubr.f32.gmra.mxu0 %v2713
  %v3038 = vpop.f32.mrf.mxu0
  %v3039 = vadd.f32 %v2938, %v3038
  %v3040 = vpop.f32.mrf.mxu0
  %v3041 = vadd.f32 %v2939, %v3040
  %3042 = vmatprep.mubr.f32.mxu0 0.0
  %3043 = vmatmul.mubr.f32.gmra.mxu0 %v2714
  %v3044 = vpop.f32.mrf.mxu0
  %v3045 = vadd.f32 %v2942, %v3044
  %v3046 = vpop.f32.mrf.mxu0
  %v3047 = vadd.f32 %v2943, %v3046
  %3048 = vmatprep.mubr.f32.mxu0 0.0
  %3049 = vmatmul.mubr.f32.gmra.mxu0 %v2715
  %v3050 = vpop.f32.mrf.mxu0
  %v3051 = vadd.f32 %v2946, %v3050
  %v3052 = vpop.f32.mrf.mxu0
  %v3053 = vadd.f32 %v2947, %v3052
  %3054 = vdwg.mxu0
  %3055 = vmatprep.subr.mxu0 %v2783
  %3056 = vmatpush1.msra.mxu0 %v2782
  %3057 = vmatprep.subr.mxu0 %v2779
  %3058 = vmatpush1.msra.mxu0 %v2778
  %3059 = vmatprep.subr.mxu0 %v2775
  %3060 = vmatpush1.msra.mxu0 %v2774
  %3061 = vmatprep.subr.mxu0 %v2771
  %3062 = vmatpush1.msra.mxu0 %v2770
  %3063 = vmatprep.subr.mxu0 %v2767
  %3064 = vmatpush1.msra.mxu0 %v2766
  %3065 = vmatprep.subr.mxu0 %v2763
  %3066 = vmatpush1.msra.mxu0 %v2762
  %3067 = vmatprep.subr.mxu0 %v2759
  %3068 = vmatpush1.msra.mxu0 %v2758
  %3069 = vmatprep.subr.mxu0 %v2755
  %3070 = vmatpush1.msra.mxu0 %v2754
  %3071 = vmatprep.subr.mxu0 %v2751
  %3072 = vmatpush1.msra.mxu0 %v2750
  %3073 = vmatprep.subr.mxu0 %v2747
  %3074 = vmatpush1.msra.mxu0 %v2746
  %3075 = vmatprep.subr.mxu0 %v2743
  %3076 = vmatpush1.msra.mxu0 %v2742
  %3077 = vmatprep.subr.mxu0 %v2739
  %3078 = vmatpush1.msra.mxu0 %v2738
  %3079 = vmatprep.subr.mxu0 %v2735
  %3080 = vmatpush1.msra.mxu0 %v2734
  %3081 = vmatprep.subr.mxu0 %v2731
  %3082 = vmatpush1.msra.mxu0 %v2730
  %3083 = vmatprep.subr.mxu0 %v2727
  %3084 = vmatpush1.msra.mxu0 %v2726
  %3085 = vmatprep.subr.mxu0 %v2723
  %3086 = vmatpush1.msra.mxu0 %v2722
  %3087 = vmatprep.subr.mxu0 0.0
  %3088 = vmatpush2.msra.mxu0 0.0
  %3089 = vmatprep.subr.mxu0 0.0
  %3090 = vmatpush2.msra.mxu0 0.0
  %3091 = vmatprep.subr.mxu0 0.0
  %3092 = vmatpush2.msra.mxu0 0.0
  %3093 = vmatprep.subr.mxu0 0.0
  %3094 = vmatpush2.msra.mxu0 0.0
  %3095 = vmatprep.subr.mxu0 0.0
  %3096 = vmatpush2.msra.mxu0 0.0
  %3097 = vmatprep.subr.mxu0 0.0
  %3098 = vmatpush2.msra.mxu0 0.0
  %3099 = vmatprep.subr.mxu0 0.0
  %3100 = vmatpush2.msra.mxu0 0.0
  %3101 = vmatprep.subr.mxu0 0.0
  %3102 = vmatpush2.msra.mxu0 0.0
  %3103 = vmatprep.subr.mxu0 0.0
  %3104 = vmatpush2.msra.mxu0 0.0
  %3105 = vmatprep.subr.mxu0 0.0
  %3106 = vmatpush2.msra.mxu0 0.0
  %3107 = vmatprep.subr.mxu0 0.0
  %3108 = vmatpush2.msra.mxu0 0.0
  %3109 = vmatprep.subr.mxu0 0.0
  %3110 = vmatpush2.msra.mxu0 0.0
  %3111 = vmatprep.subr.mxu0 0.0
  %3112 = vmatpush2.msra.mxu0 0.0
  %3113 = vmatprep.subr.mxu0 0.0
  %3114 = vmatpush2.msra.mxu0 0.0
  %3115 = vmatprep.subr.mxu0 0.0
  %3116 = vmatpush2.msra.mxu0 0.0
  %3117 = vmatprep.subr.mxu0 0.0
  %3118 = vmatpush2.msra.mxu0 0.0
  %3119 = vmatprep.mubr.f32.mxu0 0.0
  %3120 = vmatmul.mubr.f32.gmra.mxu0 %v2712
  %v3121 = vpop.f32.mrf.mxu0
  %v3122 = vadd.f32 %v2936, %v3121
  %v3123 = vpop.f32.mrf.mxu0
  %v3124 = vadd.f32 %v2937, %v3123
  %3125 = vmatprep.mubr.f32.mxu0 0.0
  %3126 = vmatmul.mubr.f32.gmra.mxu0 %v2713
  %v3127 = vpop.f32.mrf.mxu0
  %v3128 = vadd.f32 %v2940, %v3127
  %v3129 = vpop.f32.mrf.mxu0
  %v3130 = vadd.f32 %v2941, %v3129
  %3131 = vmatprep.mubr.f32.mxu0 0.0
  %3132 = vmatmul.mubr.f32.gmra.mxu0 %v2714
  %v3133 = vpop.f32.mrf.mxu0
  %v3134 = vadd.f32 %v2944, %v3133
  %v3135 = vpop.f32.mrf.mxu0
  %v3136 = vadd.f32 %v2945, %v3135
  %3137 = vmatprep.mubr.f32.mxu0 0.0
  %3138 = vmatmul.mubr.f32.gmra.mxu0 %v2715
  %v3139 = vpop.f32.mrf.mxu0
  %v3140 = vadd.f32 %v2948, %v3139
  %v3141 = vpop.f32.mrf.mxu0
  %v3142 = vadd.f32 %v2949, %v3141
  %3143 = vdwg.mxu0
  %3144 = vst [vmem:[%s7] sm:$0xff] %v3033
  %3145 = vst [vmem:[%s7 + $0x8] sm:$0xff] %v3035
  %3146 = vst [vmem:[%s7 + $0x10] sm:$0xff] %v3122
  %3147 = vst [vmem:[%s7 + $0x18] sm:$0xff] %v3124
  %3148 = vst [vmem:[%s7 + $0x20] sm:$0xff] %v3039
  %3149 = vst [vmem:[%s7 + $0x28] sm:$0xff] %v3041
  %3150 = vst [vmem:[%s7 + $0x30] sm:$0xff] %v3128
  %3151 = vst [vmem:[%s7 + $0x38] sm:$0xff] %v3130
  %3152 = vst [vmem:[%s7 + $0x40] sm:$0xff] %v3045
  %3153 = vst [vmem:[%s7 + $0x48] sm:$0xff] %v3047
  %3154 = vst [vmem:[%s7 + $0x50] sm:$0xff] %v3134
  %3155 = vst [vmem:[%s7 + $0x58] sm:$0xff] %v3136
  %3156 = vst [vmem:[%s7 + $0x60] sm:$0xff] %v3051
  %3157 = vst [vmem:[%s7 + $0x68] sm:$0xff] %v3053
  %3158 = vst [vmem:[%s7 + $0x70] sm:$0xff] %v3140
  %3159 = vst [vmem:[%s7 + $0x78] sm:$0xff] %v3142
  // Predicated region
  $region90: #{resblock_forward.1} parent=0 // pred_check
    _
  $region91: #{resblock_forward.1} parent=0 // pred_check_branch
    %3161 = sbr.rel (0) target = $region93
  $region92: #{resblock_forward.1} parent=0 // pred_region
    _
  $region93: #{resblock_forward.1} parent=0 // pred_fallthru
    _
  // Predicated region
  $region94: #{resblock_forward.1} parent=0 // pred_check
    _
  $region95: #{resblock_forward.1} parent=0 // pred_check_branch
    %3163 = sbr.rel (0) target = $region97
  $region96: #{resblock_forward.1} parent=0 // pred_region
    _
  $region97: #{resblock_forward.1} parent=0 // pred_fallthru
    _
  %3164 = vsyncmov [#allocation4]
  %s3165 = vpop.sfrf %3164
  %p3166 = scmp.eq.s32.totalorder %s3165, 0
  %p3167 = pneg %p3166
  %3169 = shalt.err (%p3167)
  %s3170 = scalar_lea.sflag [#allocation4], 1
  %3171 = vsyncmov %s3170
  %s3172 = vpop.sfrf %3171
  %p3173 = scmp.eq.s32.totalorder %s3172, 0
  %p3174 = pneg %p3173
  %3176 = shalt.err (%p3174)

</llo_original>
